<compile_context>
chip_gen: v5e
topology: v5e:2x2
jax: 0.10.0
libtpu: 0.0.40
codegen_flags: <defaults>
</compile_context>

<pallas_src>
import jax
import jax.numpy as jnp
from jax.experimental import pallas as pl
from jax.experimental.pallas import tpu as pltpu


# ----------------------------------------------------------------------------
# In-kernel helpers (operate on VMEM values, one batch element at a time).
# ----------------------------------------------------------------------------
def _pad1(x):
    """Zero-pad an (H, W, C) value by 1 on each spatial side, in VMEM."""
    H, W, C = x.shape
    zr = jnp.zeros((1, W, C), x.dtype)
    x = jnp.concatenate([zr, x, zr], axis=0)
    zc = jnp.zeros((H + 2, 1, C), x.dtype)
    return jnp.concatenate([zc, x, zc], axis=1)


def _up2(x):
    """Nearest-neighbour 2x upsample of (H, W, C): out[i, j] = in[i//2, j//2]."""
    H, W, C = x.shape
    cols = []
    for j in range(W):
        c = x[:, j:j + 1, :]
        cols.extend((c, c))
    x = jnp.concatenate(cols, axis=1)            # (H, 2W, C)
    rows = []
    for i in range(H):
        r = x[i:i + 1, :, :]
        rows.extend((r, r))
    return jnp.concatenate(rows, axis=0)         # (2H, 2W, C)


def _cba_1x1(x, w, s, b):
    """1x1 conv (stride 1, pad 0) + folded-BN scale/bias + ReLU."""
    H, W, Cin = x.shape
    Cout = w.shape[1]
    y = jnp.dot(x.reshape(H * W, Cin), w, preferred_element_type=jnp.float32)
    y = jnp.maximum(y * s + b, 0.0)
    return y.reshape(H, W, Cout)


def _cba_3x3_s1(x, w, s, b):
    """3x3 conv (stride 1, pad 1) + scale/bias + ReLU via one im2col matmul."""
    H, W, Cin = x.shape
    Cout = w.shape[1]
    xp = _pad1(x)
    taps = [xp[kh:kh + H, kw:kw + W, :] for kh in range(3) for kw in range(3)]
    col = jnp.concatenate(taps, axis=-1).reshape(H * W, 9 * Cin)   # (H*W, 9*Cin)
    y = jnp.dot(col, w, preferred_element_type=jnp.float32)
    y = jnp.maximum(y * s + b, 0.0)
    return y.reshape(H, W, Cout)


def _cba_3x3_s2(x, w, s, b):
    """3x3 conv (stride 2, pad 1) + scale/bias + ReLU.

    Output positions are gathered with STATIC value indexing (the output is at
    most 2x2 here), so no strided ref loads are needed.
    """
    H, W, Cin = x.shape
    Ho, Wo = H // 2, W // 2
    Cout = w.shape[1]
    xp = _pad1(x)
    rows = []
    for oh in range(Ho):
        for ow in range(Wo):
            taps = [xp[2 * oh + kh, 2 * ow + kw:2 * ow + kw + 1, :]
                    for kh in range(3) for kw in range(3)]
            rows.append(jnp.concatenate(taps, axis=-1))            # (1, 9*Cin)
    col = jnp.concatenate(rows, axis=0)                            # (Ho*Wo, 9*Cin)
    y = jnp.dot(col, w, preferred_element_type=jnp.float32)
    y = jnp.maximum(y * s + b, 0.0)
    return y.reshape(Ho, Wo, Cout)


# ----------------------------------------------------------------------------
# Fused FPN kernel: one grid step = one batch element, everything in VMEM.
# ----------------------------------------------------------------------------
def _fpn_kernel(c3_ref, c4_ref, c5_ref,
                w51_ref, w52_ref, w41_ref, w42_ref, w31_ref, w6_ref, w72_ref,
                s_ref, b_ref,
                p3_ref, p4_ref, p5_ref, p6_ref, p7_ref):
    c3 = c3_ref[...]
    c4 = c4_ref[...]
    c5 = c5_ref[...]
    s_all = s_ref[...]          # (7, F) folded-BN scales
    b_all = b_ref[...]          # (7, F) folded-BN biases

    def sb(i):
        return s_all[i:i + 1, :], b_all[i:i + 1, :]

    # ---- top-down pathway (intermediates stay in VMEM) ----------------------
    s, b = sb(0)
    p5_1 = _cba_1x1(c5, w51_ref[...], s, b)                  # (4, 4, F)
    p5_up = _up2(p5_1)                                       # (8, 8, F)
    s, b = sb(1)
    p5_out = _cba_3x3_s1(p5_1, w52_ref[...], s, b)           # (4, 4, F)

    s, b = sb(2)
    p4_x = _cba_1x1(c4, w41_ref[...], s, b) + p5_up          # (8, 8, F) fused lateral add
    p4_up = _up2(p4_x)                                       # (16, 16, F)
    s, b = sb(3)
    p4_out = _cba_3x3_s1(p4_x, w42_ref[...], s, b)           # (8, 8, F)

    s, b = sb(4)
    p3_out = _cba_1x1(c3, w31_ref[...], s, b) + p4_up        # (16, 16, F)

    # ---- extra levels --------------------------------------------------------
    s, b = sb(5)
    p6_out = _cba_3x3_s2(c5, w6_ref[...], s, b)              # (2, 2, F)
    # P7_1 = ReLU(p6) is a no-op: ConvBnAct already ends with ReLU.
    s, b = sb(6)
    p7_out = _cba_3x3_s2(p6_out, w72_ref[...], s, b)         # (1, 1, F)

    p3_ref[...] = p3_out.astype(p3_ref.dtype)
    p4_ref[...] = p4_out.astype(p4_ref.dtype)
    p5_ref[...] = p5_out.astype(p5_ref.dtype)
    p6_ref[...] = p6_out.astype(p6_ref.dtype)
    p7_ref[...] = p7_out.astype(p7_ref.dtype)


# ----------------------------------------------------------------------------
# Wrapper: single pallas_call for the whole pyramid.
# ----------------------------------------------------------------------------
def feature_pyramid_forward(c3, c4, c5, params):
    """c3/c4/c5 in NHWC.  Returns [p3, p4, p5, p6, p7] in NHWC."""
    B, H3, W3, _ = c3.shape
    _, H4, W4, _ = c4.shape
    _, H5, W5, _ = c5.shape
    feat = params["P5_1"][0].shape[-1]
    dt = c3.dtype

    def flat_w(w):
        # (K, K, Cin, Cout) -> (K*K*Cin, Cout); row order (kh, kw, cin) matches
        # the im2col tap concatenation order inside the kernel.
        K, _, Cin, Cout = w.shape
        return w.reshape(K * K * Cin, Cout)

    names = ["P5_1", "P5_2", "P4_1", "P4_2", "P3_1", "P6", "P7_2"]
    ws = [flat_w(params[n][0]) for n in names]
    scales = jnp.stack([params[n][1] for n in names], axis=0)    # (7, feat)
    biases = jnp.stack([params[n][2] for n in names], axis=0)    # (7, feat)

    def act_spec(a):
        return pl.BlockSpec((None,) + a.shape[1:], lambda n: (n, 0, 0, 0))

    def full_spec(a):
        idx = (0,) * a.ndim
        return pl.BlockSpec(a.shape, lambda n, _idx=idx: _idx)

    in_specs = ([act_spec(c3), act_spec(c4), act_spec(c5)]
                + [full_spec(w) for w in ws]
                + [full_spec(scales), full_spec(biases)])

    out_shape = (
        jax.ShapeDtypeStruct((B, H3, W3, feat), dt),              # p3
        jax.ShapeDtypeStruct((B, H4, W4, feat), dt),              # p4
        jax.ShapeDtypeStruct((B, H5, W5, feat), dt),              # p5
        jax.ShapeDtypeStruct((B, H5 // 2, W5 // 2, feat), dt),    # p6
        jax.ShapeDtypeStruct((B, H5 // 4, W5 // 4, feat), dt),    # p7
    )
    out_specs = tuple(
        pl.BlockSpec((None,) + s.shape[1:], lambda n: (n, 0, 0, 0))
        for s in out_shape)

    # NOTE: at realistic FPN sizes (feat=256, c3 ~100x160), tile over output
    # rows and cast matmul inputs to bf16 on v6e/v7x; at these toy sizes the
    # whole per-image working set is <1 MiB so one block per batch element is
    # optimal and B=2 parallel grid steps feed both TensorCores on v7x.
    outs = pl.pallas_call(
        _fpn_kernel,
        out_shape=out_shape,
        grid=(B,),
        in_specs=in_specs,
        out_specs=out_specs,
        compiler_params=pltpu.CompilerParams(
            dimension_semantics=("parallel",),
            vmem_limit_bytes=32 * 1024 * 1024),
    )(c3, c4, c5, *ws, scales, biases)
    return list(outs)


# ----------------------------------------------------------------------------
# Parameter construction (deterministic, synthetic; BN folded for eval mode)
# ----------------------------------------------------------------------------
def make_conv_bn_act_params(key, cin, cout, k):
    kw_, kg, kb, km, kv = jax.random.split(key, 5)
    w = 0.05 * jax.random.normal(kw_, (k, k, cin, cout), jnp.float32)  # HWIO
    gamma = 1.0 + 0.1 * jax.random.normal(kg, (cout,), jnp.float32)
    beta = 0.1 * jax.random.normal(kb, (cout,), jnp.float32)
    mean = 0.1 * jax.random.normal(km, (cout,), jnp.float32)
    var = 1.0 + 0.2 * jax.random.uniform(kv, (cout,), jnp.float32)
    eps = 1e-5
    scale = gamma / jnp.sqrt(var + eps)
    bias = beta - mean * scale
    return (w, scale, bias)


def make_feature_pyramid_params(key, c3_size, c4_size, c5_size, feat):
    keys = jax.random.split(key, 9)
    return {
        "P5_1": make_conv_bn_act_params(keys[0], c5_size, feat, 1),
        "P5_2": make_conv_bn_act_params(keys[1], feat, feat, 3),
        "P4_1": make_conv_bn_act_params(keys[2], c4_size, feat, 1),
        "P4_2": make_conv_bn_act_params(keys[3], feat, feat, 3),
        "P3_1": make_conv_bn_act_params(keys[4], c3_size, feat, 1),
        "P3_2": make_conv_bn_act_params(keys[5], feat, feat, 3),  # exists in __init__, unused in forward
        "P6":   make_conv_bn_act_params(keys[6], c5_size, feat, 3),
        "P7_2": make_conv_bn_act_params(keys[7], feat, feat, 3),
    }


# ----------------------------------------------------------------------------
# Pure-JAX reference (for correctness check)
# ----------------------------------------------------------------------------
def ref_cba(x, w, scale, bias, stride, padding, residual=None):
    y = jax.lax.conv_general_dilated(
        x, w, (stride, stride), [(padding, padding), (padding, padding)],
        dimension_numbers=("NHWC", "HWIO", "NHWC"))
    y = jnp.maximum(y * scale + bias, 0.0)
    if residual is not None:
        y = y + residual
    return y


def ref_upsample2x(x):
    return jnp.repeat(jnp.repeat(x, 2, axis=1), 2, axis=2)


def ref_forward(c3, c4, c5, params):
    p5_1 = ref_cba(c5, *params["P5_1"], 1, 0)
    p5_up = ref_upsample2x(p5_1)
    p5_x = ref_cba(p5_1, *params["P5_2"], 1, 1)
    p4_x = ref_cba(c4, *params["P4_1"], 1, 0, residual=p5_up)
    p4_up = ref_upsample2x(p4_x)
    p4_out = ref_cba(p4_x, *params["P4_2"], 1, 1)
    p3_x = ref_cba(c3, *params["P3_1"], 1, 0, residual=p4_up)
    p6_x = ref_cba(c5, *params["P6"], 2, 1)
    p7_x = ref_cba(jnp.maximum(p6_x, 0.0), *params["P7_2"], 2, 1)
    return [p3_x, p4_out, p5_x, p6_x, p7_x]


# ----------------------------------------------------------------------------
if __name__ == "__main__":
    key = jax.random.PRNGKey(0)
    k_in, k_par = jax.random.split(key)

    # Small shapes: batch=2, c3=16ch@16x16, c4=24ch@8x8, c5=32ch@4x4, feat=32.
    B = 2
    c3_size, c4_size, c5_size, feat = 16, 24, 32, 32
    k3, k4, k5 = jax.random.split(k_in, 3)
    # Generated in NCHW (PyTorch convention), then moved to NHWC for the kernel.
    c3_nchw = jax.random.normal(k3, (B, c3_size, 16, 16), jnp.float32)
    c4_nchw = jax.random.normal(k4, (B, c4_size, 8, 8), jnp.float32)
    c5_nchw = jax.random.normal(k5, (B, c5_size, 4, 4), jnp.float32)
    c3 = jnp.transpose(c3_nchw, (0, 2, 3, 1))
    c4 = jnp.transpose(c4_nchw, (0, 2, 3, 1))
    c5 = jnp.transpose(c5_nchw, (0, 2, 3, 1))

    params = make_feature_pyramid_params(k_par, c3_size, c4_size, c5_size, feat)

    fwd = jax.jit(feature_pyramid_forward)
    outs = fwd(c3, c4, c5, params)
    outs = [jax.block_until_ready(o) for o in outs]

    # Correctness check against a pure-JAX reference (tolerance covers default
    # MXU bf16-pass precision differences between im2col matmul and XLA conv).
    refs = ref_forward(c3, c4, c5, params)
    for o, r in zip(outs, refs):
        assert o.shape == r.shape, (o.shape, r.shape)
        max_err = float(jnp.max(jnp.abs(o - r)))
        assert jnp.allclose(o, r, atol=2e-2, rtol=2e-2), max_err

    # Back to NCHW to match the PyTorch module's output layout.
    outs_nchw = [jnp.transpose(o, (0, 3, 1, 2)) for o in outs]
    expected_shapes = [(B, feat, 16, 16), (B, feat, 8, 8), (B, feat, 4, 4),
                       (B, feat, 2, 2), (B, feat, 1, 1)]
    assert [tuple(o.shape) for o in outs_nchw] == expected_shapes

    print("KERNEL_OK")
</pallas_src>

<mosaic_0001>
module attributes {stable_mosaic.version = 11 : i64} {
  func.func @_fpn_kernel(%arg0: i32, %arg1: memref<1x16x16x16xf32, #tpu.memory_space<vmem>>, %arg2: memref<1x8x8x24xf32, #tpu.memory_space<vmem>>, %arg3: memref<1x4x4x32xf32, #tpu.memory_space<vmem>>, %arg4: memref<32x32xf32, #tpu.memory_space<vmem>>, %arg5: memref<288x32xf32, #tpu.memory_space<vmem>>, %arg6: memref<24x32xf32, #tpu.memory_space<vmem>>, %arg7: memref<288x32xf32, #tpu.memory_space<vmem>>, %arg8: memref<16x32xf32, #tpu.memory_space<vmem>>, %arg9: memref<288x32xf32, #tpu.memory_space<vmem>>, %arg10: memref<288x32xf32, #tpu.memory_space<vmem>>, %arg11: memref<7x32xf32, #tpu.memory_space<vmem>>, %arg12: memref<7x32xf32, #tpu.memory_space<vmem>>, %arg13: memref<1x16x16x32xf32, #tpu.memory_space<vmem>>, %arg14: memref<1x8x8x32xf32, #tpu.memory_space<vmem>>, %arg15: memref<1x4x4x32xf32, #tpu.memory_space<vmem>>, %arg16: memref<1x2x2x32xf32, #tpu.memory_space<vmem>>, %arg17: memref<1x1x1x32xf32, #tpu.memory_space<vmem>>) attributes {dimension_semantics = [#tpu.dimension_semantics<parallel>], iteration_bounds = array<i64: 2>, scalar_prefetch = 0 : i64, scratch_operands = 0 : i64, tpu.core_type = #tpu.core_type<tc>, window_params = [{transform_indices = @transform_0, window_bounds = array<i64: 1, 16, 16, 16>}, {transform_indices = @transform_1, window_bounds = array<i64: 1, 8, 8, 24>}, {transform_indices = @transform_2, window_bounds = array<i64: 1, 4, 4, 32>}, {pipeline_mode = #tpu.pipeline_mode<synchronous>, transform_indices = @transform_3, window_bounds = array<i64: 32, 32>}, {pipeline_mode = #tpu.pipeline_mode<synchronous>, transform_indices = @transform_4, window_bounds = array<i64: 288, 32>}, {pipeline_mode = #tpu.pipeline_mode<synchronous>, transform_indices = @transform_5, window_bounds = array<i64: 24, 32>}, {pipeline_mode = #tpu.pipeline_mode<synchronous>, transform_indices = @transform_6, window_bounds = array<i64: 288, 32>}, {pipeline_mode = #tpu.pipeline_mode<synchronous>, transform_indices = @transform_7, window_bounds = array<i64: 16, 32>}, {pipeline_mode = #tpu.pipeline_mode<synchronous>, transform_indices = @transform_8, window_bounds = array<i64: 288, 32>}, {pipeline_mode = #tpu.pipeline_mode<synchronous>, transform_indices = @transform_9, window_bounds = array<i64: 288, 32>}, {pipeline_mode = #tpu.pipeline_mode<synchronous>, transform_indices = @transform_10, window_bounds = array<i64: 7, 32>}, {pipeline_mode = #tpu.pipeline_mode<synchronous>, transform_indices = @transform_11, window_bounds = array<i64: 7, 32>}, {transform_indices = @transform_12, window_bounds = array<i64: 1, 16, 16, 32>}, {transform_indices = @transform_13, window_bounds = array<i64: 1, 8, 8, 32>}, {transform_indices = @transform_14, window_bounds = array<i64: 1, 4, 4, 32>}, {transform_indices = @transform_15, window_bounds = array<i64: 1, 2, 2, 32>}, {transform_indices = @transform_16, window_bounds = array<i64: 1, 1, 1, 32>}]} {
    %c0 = arith.constant 0 : index
    %c0_0 = arith.constant 0 : index
    %c0_1 = arith.constant 0 : index
    %c0_2 = arith.constant 0 : index
    %0 = vector.load %arg1[%c0, %c0_0, %c0_1, %c0_2] : memref<1x16x16x16xf32, #tpu.memory_space<vmem>>, vector<1x16x16x16xf32>
    %1 = vector.shape_cast %0 : vector<1x16x16x16xf32> to vector<16x16x16xf32>
    %c0_3 = arith.constant 0 : index
    %c0_4 = arith.constant 0 : index
    %c0_5 = arith.constant 0 : index
    %c0_6 = arith.constant 0 : index
    %2 = vector.load %arg2[%c0_3, %c0_4, %c0_5, %c0_6] : memref<1x8x8x24xf32, #tpu.memory_space<vmem>>, vector<1x8x8x24xf32>
    %3 = vector.shape_cast %2 : vector<1x8x8x24xf32> to vector<8x8x24xf32>
    %c0_7 = arith.constant 0 : index
    %c0_8 = arith.constant 0 : index
    %c0_9 = arith.constant 0 : index
    %c0_10 = arith.constant 0 : index
    %4 = vector.load %arg3[%c0_7, %c0_8, %c0_9, %c0_10] : memref<1x4x4x32xf32, #tpu.memory_space<vmem>>, vector<1x4x4x32xf32>
    %5 = vector.shape_cast %4 : vector<1x4x4x32xf32> to vector<4x4x32xf32>
    %c0_11 = arith.constant 0 : index
    %c0_12 = arith.constant 0 : index
    %6 = vector.load %arg11[%c0_11, %c0_12] : memref<7x32xf32, #tpu.memory_space<vmem>>, vector<7x32xf32>
    %c0_13 = arith.constant 0 : index
    %c0_14 = arith.constant 0 : index
    %7 = vector.load %arg12[%c0_13, %c0_14] : memref<7x32xf32, #tpu.memory_space<vmem>>, vector<7x32xf32>
    %8 = vector.extract_strided_slice %6 {offsets = [0, 0], sizes = [1, 32], strides = [1, 1]} : vector<7x32xf32> to vector<1x32xf32>
    %9 = vector.extract_strided_slice %7 {offsets = [0, 0], sizes = [1, 32], strides = [1, 1]} : vector<7x32xf32> to vector<1x32xf32>
    %c0_15 = arith.constant 0 : index
    %c0_16 = arith.constant 0 : index
    %10 = vector.load %arg4[%c0_15, %c0_16] : memref<32x32xf32, #tpu.memory_space<vmem>>, vector<32x32xf32>
    %11 = vector.shape_cast %5 : vector<4x4x32xf32> to vector<16x32xf32>
    %cst = arith.constant dense<0.000000e+00> : vector<16x32xf32>
    %12 = tpu.matmul %11, %10, %cst {dimension_numbers = #tpu.dot_dimension_numbers<[1], [0], [0], [1], [0, 0, 1, 1], [], []>} : vector<16x32xf32>, vector<32x32xf32>, vector<16x32xf32> -> vector<16x32xf32>
    %13 = vector.broadcast %8 : vector<1x32xf32> to vector<16x32xf32>
    %14 = arith.mulf %12, %13 : vector<16x32xf32>
    %15 = vector.broadcast %9 : vector<1x32xf32> to vector<16x32xf32>
    %16 = arith.addf %14, %15 : vector<16x32xf32>
    %cst_17 = arith.constant 0.000000e+00 : f32
    %17 = vector.broadcast %cst_17 : f32 to vector<16x32xf32>
    %18 = arith.maximumf %16, %17 : vector<16x32xf32>
    %19 = vector.shape_cast %18 : vector<16x32xf32> to vector<4x4x32xf32>
    %20 = vector.extract_strided_slice %19 {offsets = [0, 0, 0], sizes = [4, 1, 32], strides = [1, 1, 1]} : vector<4x4x32xf32> to vector<4x1x32xf32>
    %21 = vector.extract_strided_slice %19 {offsets = [0, 1, 0], sizes = [4, 1, 32], strides = [1, 1, 1]} : vector<4x4x32xf32> to vector<4x1x32xf32>
    %22 = vector.extract_strided_slice %19 {offsets = [0, 2, 0], sizes = [4, 1, 32], strides = [1, 1, 1]} : vector<4x4x32xf32> to vector<4x1x32xf32>
    %23 = vector.extract_strided_slice %19 {offsets = [0, 3, 0], sizes = [4, 1, 32], strides = [1, 1, 1]} : vector<4x4x32xf32> to vector<4x1x32xf32>
    %24 = tpu.concatenate %20, %20, %21, %21, %22, %22, %23, %23 in 1 : vector<4x1x32xf32>, vector<4x1x32xf32>, vector<4x1x32xf32>, vector<4x1x32xf32>, vector<4x1x32xf32>, vector<4x1x32xf32>, vector<4x1x32xf32>, vector<4x1x32xf32> -> vector<4x8x32xf32>
    %25 = vector.extract_strided_slice %24 {offsets = [0, 0, 0], sizes = [1, 8, 32], strides = [1, 1, 1]} : vector<4x8x32xf32> to vector<1x8x32xf32>
    %26 = vector.extract_strided_slice %24 {offsets = [1, 0, 0], sizes = [1, 8, 32], strides = [1, 1, 1]} : vector<4x8x32xf32> to vector<1x8x32xf32>
    %27 = vector.extract_strided_slice %24 {offsets = [2, 0, 0], sizes = [1, 8, 32], strides = [1, 1, 1]} : vector<4x8x32xf32> to vector<1x8x32xf32>
    %28 = vector.extract_strided_slice %24 {offsets = [3, 0, 0], sizes = [1, 8, 32], strides = [1, 1, 1]} : vector<4x8x32xf32> to vector<1x8x32xf32>
    %29 = tpu.concatenate %25, %25, %26, %26, %27, %27, %28, %28 in 0 : vector<1x8x32xf32>, vector<1x8x32xf32>, vector<1x8x32xf32>, vector<1x8x32xf32>, vector<1x8x32xf32>, vector<1x8x32xf32>, vector<1x8x32xf32>, vector<1x8x32xf32> -> vector<8x8x32xf32>
    %30 = vector.extract_strided_slice %6 {offsets = [1, 0], sizes = [1, 32], strides = [1, 1]} : vector<7x32xf32> to vector<1x32xf32>
    %31 = vector.extract_strided_slice %7 {offsets = [1, 0], sizes = [1, 32], strides = [1, 1]} : vector<7x32xf32> to vector<1x32xf32>
    %c0_18 = arith.constant 0 : index
    %c0_19 = arith.constant 0 : index
    %32 = vector.load %arg5[%c0_18, %c0_19] : memref<288x32xf32, #tpu.memory_space<vmem>>, vector<288x32xf32>
    %cst_20 = arith.constant 0.000000e+00 : f32
    %33 = vector.broadcast %cst_20 : f32 to vector<1x4x32xf32>
    %34 = tpu.concatenate %33, %19, %33 in 0 : vector<1x4x32xf32>, vector<4x4x32xf32>, vector<1x4x32xf32> -> vector<6x4x32xf32>
    %cst_21 = arith.constant 0.000000e+00 : f32
    %35 = vector.broadcast %cst_21 : f32 to vector<6x1x32xf32>
    %36 = tpu.concatenate %35, %34, %35 in 1 : vector<6x1x32xf32>, vector<6x4x32xf32>, vector<6x1x32xf32> -> vector<6x6x32xf32>
    %37 = vector.extract_strided_slice %36 {offsets = [0, 0, 0], sizes = [4, 4, 32], strides = [1, 1, 1]} : vector<6x6x32xf32> to vector<4x4x32xf32>
    %38 = vector.extract_strided_slice %36 {offsets = [0, 1, 0], sizes = [4, 4, 32], strides = [1, 1, 1]} : vector<6x6x32xf32> to vector<4x4x32xf32>
    %39 = vector.extract_strided_slice %36 {offsets = [0, 2, 0], sizes = [4, 4, 32], strides = [1, 1, 1]} : vector<6x6x32xf32> to vector<4x4x32xf32>
    %40 = vector.extract_strided_slice %36 {offsets = [1, 0, 0], sizes = [4, 4, 32], strides = [1, 1, 1]} : vector<6x6x32xf32> to vector<4x4x32xf32>
    %41 = vector.extract_strided_slice %36 {offsets = [1, 1, 0], sizes = [4, 4, 32], strides = [1, 1, 1]} : vector<6x6x32xf32> to vector<4x4x32xf32>
    %42 = vector.extract_strided_slice %36 {offsets = [1, 2, 0], sizes = [4, 4, 32], strides = [1, 1, 1]} : vector<6x6x32xf32> to vector<4x4x32xf32>
    %43 = vector.extract_strided_slice %36 {offsets = [2, 0, 0], sizes = [4, 4, 32], strides = [1, 1, 1]} : vector<6x6x32xf32> to vector<4x4x32xf32>
    %44 = vector.extract_strided_slice %36 {offsets = [2, 1, 0], sizes = [4, 4, 32], strides = [1, 1, 1]} : vector<6x6x32xf32> to vector<4x4x32xf32>
    %45 = vector.extract_strided_slice %36 {offsets = [2, 2, 0], sizes = [4, 4, 32], strides = [1, 1, 1]} : vector<6x6x32xf32> to vector<4x4x32xf32>
    %46 = tpu.concatenate %37, %38, %39, %40, %41, %42, %43, %44, %45 in 2 : vector<4x4x32xf32>, vector<4x4x32xf32>, vector<4x4x32xf32>, vector<4x4x32xf32>, vector<4x4x32xf32>, vector<4x4x32xf32>, vector<4x4x32xf32>, vector<4x4x32xf32>, vector<4x4x32xf32> -> vector<4x4x288xf32>
    %47 = vector.shape_cast %46 : vector<4x4x288xf32> to vector<16x288xf32>
    %cst_22 = arith.constant dense<0.000000e+00> : vector<16x32xf32>
    %48 = tpu.matmul %47, %32, %cst_22 {dimension_numbers = #tpu.dot_dimension_numbers<[1], [0], [0], [1], [0, 0, 1, 1], [], []>} : vector<16x288xf32>, vector<288x32xf32>, vector<16x32xf32> -> vector<16x32xf32>
    %49 = vector.broadcast %30 : vector<1x32xf32> to vector<16x32xf32>
    %50 = arith.mulf %48, %49 : vector<16x32xf32>
    %51 = vector.broadcast %31 : vector<1x32xf32> to vector<16x32xf32>
    %52 = arith.addf %50, %51 : vector<16x32xf32>
    %cst_23 = arith.constant 0.000000e+00 : f32
    %53 = vector.broadcast %cst_23 : f32 to vector<16x32xf32>
    %54 = arith.maximumf %52, %53 : vector<16x32xf32>
    %55 = vector.shape_cast %54 : vector<16x32xf32> to vector<4x4x32xf32>
    %56 = vector.extract_strided_slice %6 {offsets = [2, 0], sizes = [1, 32], strides = [1, 1]} : vector<7x32xf32> to vector<1x32xf32>
    %57 = vector.extract_strided_slice %7 {offsets = [2, 0], sizes = [1, 32], strides = [1, 1]} : vector<7x32xf32> to vector<1x32xf32>
    %c0_24 = arith.constant 0 : index
    %c0_25 = arith.constant 0 : index
    %58 = vector.load %arg6[%c0_24, %c0_25] : memref<24x32xf32, #tpu.memory_space<vmem>>, vector<24x32xf32>
    %59 = vector.shape_cast %3 : vector<8x8x24xf32> to vector<64x24xf32>
    %cst_26 = arith.constant dense<0.000000e+00> : vector<64x32xf32>
    %60 = tpu.matmul %59, %58, %cst_26 {dimension_numbers = #tpu.dot_dimension_numbers<[1], [0], [0], [1], [0, 0, 1, 1], [], []>} : vector<64x24xf32>, vector<24x32xf32>, vector<64x32xf32> -> vector<64x32xf32>
    %61 = vector.broadcast %56 : vector<1x32xf32> to vector<64x32xf32>
    %62 = arith.mulf %60, %61 : vector<64x32xf32>
    %63 = vector.broadcast %57 : vector<1x32xf32> to vector<64x32xf32>
    %64 = arith.addf %62, %63 : vector<64x32xf32>
    %cst_27 = arith.constant 0.000000e+00 : f32
    %65 = vector.broadcast %cst_27 : f32 to vector<64x32xf32>
    %66 = arith.maximumf %64, %65 : vector<64x32xf32>
    %67 = vector.shape_cast %66 : vector<64x32xf32> to vector<8x8x32xf32>
    %68 = arith.addf %67, %29 : vector<8x8x32xf32>
    %69 = vector.extract_strided_slice %68 {offsets = [0, 0, 0], sizes = [8, 1, 32], strides = [1, 1, 1]} : vector<8x8x32xf32> to vector<8x1x32xf32>
    %70 = vector.extract_strided_slice %68 {offsets = [0, 1, 0], sizes = [8, 1, 32], strides = [1, 1, 1]} : vector<8x8x32xf32> to vector<8x1x32xf32>
    %71 = vector.extract_strided_slice %68 {offsets = [0, 2, 0], sizes = [8, 1, 32], strides = [1, 1, 1]} : vector<8x8x32xf32> to vector<8x1x32xf32>
    %72 = vector.extract_strided_slice %68 {offsets = [0, 3, 0], sizes = [8, 1, 32], strides = [1, 1, 1]} : vector<8x8x32xf32> to vector<8x1x32xf32>
    %73 = vector.extract_strided_slice %68 {offsets = [0, 4, 0], sizes = [8, 1, 32], strides = [1, 1, 1]} : vector<8x8x32xf32> to vector<8x1x32xf32>
    %74 = vector.extract_strided_slice %68 {offsets = [0, 5, 0], sizes = [8, 1, 32], strides = [1, 1, 1]} : vector<8x8x32xf32> to vector<8x1x32xf32>
    %75 = vector.extract_strided_slice %68 {offsets = [0, 6, 0], sizes = [8, 1, 32], strides = [1, 1, 1]} : vector<8x8x32xf32> to vector<8x1x32xf32>
    %76 = vector.extract_strided_slice %68 {offsets = [0, 7, 0], sizes = [8, 1, 32], strides = [1, 1, 1]} : vector<8x8x32xf32> to vector<8x1x32xf32>
    %77 = tpu.concatenate %69, %69, %70, %70, %71, %71, %72, %72, %73, %73, %74, %74, %75, %75, %76, %76 in 1 : vector<8x1x32xf32>, vector<8x1x32xf32>, vector<8x1x32xf32>, vector<8x1x32xf32>, vector<8x1x32xf32>, vector<8x1x32xf32>, vector<8x1x32xf32>, vector<8x1x32xf32>, vector<8x1x32xf32>, vector<8x1x32xf32>, vector<8x1x32xf32>, vector<8x1x32xf32>, vector<8x1x32xf32>, vector<8x1x32xf32>, vector<8x1x32xf32>, vector<8x1x32xf32> -> vector<8x16x32xf32>
    %78 = vector.extract_strided_slice %77 {offsets = [0, 0, 0], sizes = [1, 16, 32], strides = [1, 1, 1]} : vector<8x16x32xf32> to vector<1x16x32xf32>
    %79 = vector.extract_strided_slice %77 {offsets = [1, 0, 0], sizes = [1, 16, 32], strides = [1, 1, 1]} : vector<8x16x32xf32> to vector<1x16x32xf32>
    %80 = vector.extract_strided_slice %77 {offsets = [2, 0, 0], sizes = [1, 16, 32], strides = [1, 1, 1]} : vector<8x16x32xf32> to vector<1x16x32xf32>
    %81 = vector.extract_strided_slice %77 {offsets = [3, 0, 0], sizes = [1, 16, 32], strides = [1, 1, 1]} : vector<8x16x32xf32> to vector<1x16x32xf32>
    %82 = vector.extract_strided_slice %77 {offsets = [4, 0, 0], sizes = [1, 16, 32], strides = [1, 1, 1]} : vector<8x16x32xf32> to vector<1x16x32xf32>
    %83 = vector.extract_strided_slice %77 {offsets = [5, 0, 0], sizes = [1, 16, 32], strides = [1, 1, 1]} : vector<8x16x32xf32> to vector<1x16x32xf32>
    %84 = vector.extract_strided_slice %77 {offsets = [6, 0, 0], sizes = [1, 16, 32], strides = [1, 1, 1]} : vector<8x16x32xf32> to vector<1x16x32xf32>
    %85 = vector.extract_strided_slice %77 {offsets = [7, 0, 0], sizes = [1, 16, 32], strides = [1, 1, 1]} : vector<8x16x32xf32> to vector<1x16x32xf32>
    %86 = tpu.concatenate %78, %78, %79, %79, %80, %80, %81, %81, %82, %82, %83, %83, %84, %84, %85, %85 in 0 : vector<1x16x32xf32>, vector<1x16x32xf32>, vector<1x16x32xf32>, vector<1x16x32xf32>, vector<1x16x32xf32>, vector<1x16x32xf32>, vector<1x16x32xf32>, vector<1x16x32xf32>, vector<1x16x32xf32>, vector<1x16x32xf32>, vector<1x16x32xf32>, vector<1x16x32xf32>, vector<1x16x32xf32>, vector<1x16x32xf32>, vector<1x16x32xf32>, vector<1x16x32xf32> -> vector<16x16x32xf32>
    %87 = vector.extract_strided_slice %6 {offsets = [3, 0], sizes = [1, 32], strides = [1, 1]} : vector<7x32xf32> to vector<1x32xf32>
    %88 = vector.extract_strided_slice %7 {offsets = [3, 0], sizes = [1, 32], strides = [1, 1]} : vector<7x32xf32> to vector<1x32xf32>
    %c0_28 = arith.constant 0 : index
    %c0_29 = arith.constant 0 : index
    %89 = vector.load %arg7[%c0_28, %c0_29] : memref<288x32xf32, #tpu.memory_space<vmem>>, vector<288x32xf32>
    %cst_30 = arith.constant 0.000000e+00 : f32
    %90 = vector.broadcast %cst_30 : f32 to vector<1x8x32xf32>
    %91 = tpu.concatenate %90, %68, %90 in 0 : vector<1x8x32xf32>, vector<8x8x32xf32>, vector<1x8x32xf32> -> vector<10x8x32xf32>
    %cst_31 = arith.constant 0.000000e+00 : f32
    %92 = vector.broadcast %cst_31 : f32 to vector<10x1x32xf32>
    %93 = tpu.concatenate %92, %91, %92 in 1 : vector<10x1x32xf32>, vector<10x8x32xf32>, vector<10x1x32xf32> -> vector<10x10x32xf32>
    %94 = vector.extract_strided_slice %93 {offsets = [0, 0, 0], sizes = [8, 8, 32], strides = [1, 1, 1]} : vector<10x10x32xf32> to vector<8x8x32xf32>
    %95 = vector.extract_strided_slice %93 {offsets = [0, 1, 0], sizes = [8, 8, 32], strides = [1, 1, 1]} : vector<10x10x32xf32> to vector<8x8x32xf32>
    %96 = vector.extract_strided_slice %93 {offsets = [0, 2, 0], sizes = [8, 8, 32], strides = [1, 1, 1]} : vector<10x10x32xf32> to vector<8x8x32xf32>
    %97 = vector.extract_strided_slice %93 {offsets = [1, 0, 0], sizes = [8, 8, 32], strides = [1, 1, 1]} : vector<10x10x32xf32> to vector<8x8x32xf32>
    %98 = vector.extract_strided_slice %93 {offsets = [1, 1, 0], sizes = [8, 8, 32], strides = [1, 1, 1]} : vector<10x10x32xf32> to vector<8x8x32xf32>
    %99 = vector.extract_strided_slice %93 {offsets = [1, 2, 0], sizes = [8, 8, 32], strides = [1, 1, 1]} : vector<10x10x32xf32> to vector<8x8x32xf32>
    %100 = vector.extract_strided_slice %93 {offsets = [2, 0, 0], sizes = [8, 8, 32], strides = [1, 1, 1]} : vector<10x10x32xf32> to vector<8x8x32xf32>
    %101 = vector.extract_strided_slice %93 {offsets = [2, 1, 0], sizes = [8, 8, 32], strides = [1, 1, 1]} : vector<10x10x32xf32> to vector<8x8x32xf32>
    %102 = vector.extract_strided_slice %93 {offsets = [2, 2, 0], sizes = [8, 8, 32], strides = [1, 1, 1]} : vector<10x10x32xf32> to vector<8x8x32xf32>
    %103 = tpu.concatenate %94, %95, %96, %97, %98, %99, %100, %101, %102 in 2 : vector<8x8x32xf32>, vector<8x8x32xf32>, vector<8x8x32xf32>, vector<8x8x32xf32>, vector<8x8x32xf32>, vector<8x8x32xf32>, vector<8x8x32xf32>, vector<8x8x32xf32>, vector<8x8x32xf32> -> vector<8x8x288xf32>
    %104 = vector.shape_cast %103 : vector<8x8x288xf32> to vector<64x288xf32>
    %cst_32 = arith.constant dense<0.000000e+00> : vector<64x32xf32>
    %105 = tpu.matmul %104, %89, %cst_32 {dimension_numbers = #tpu.dot_dimension_numbers<[1], [0], [0], [1], [0, 0, 1, 1], [], []>} : vector<64x288xf32>, vector<288x32xf32>, vector<64x32xf32> -> vector<64x32xf32>
    %106 = vector.broadcast %87 : vector<1x32xf32> to vector<64x32xf32>
    %107 = arith.mulf %105, %106 : vector<64x32xf32>
    %108 = vector.broadcast %88 : vector<1x32xf32> to vector<64x32xf32>
    %109 = arith.addf %107, %108 : vector<64x32xf32>
    %cst_33 = arith.constant 0.000000e+00 : f32
    %110 = vector.broadcast %cst_33 : f32 to vector<64x32xf32>
    %111 = arith.maximumf %109, %110 : vector<64x32xf32>
    %112 = vector.shape_cast %111 : vector<64x32xf32> to vector<8x8x32xf32>
    %113 = vector.extract_strided_slice %6 {offsets = [4, 0], sizes = [1, 32], strides = [1, 1]} : vector<7x32xf32> to vector<1x32xf32>
    %114 = vector.extract_strided_slice %7 {offsets = [4, 0], sizes = [1, 32], strides = [1, 1]} : vector<7x32xf32> to vector<1x32xf32>
    %c0_34 = arith.constant 0 : index
    %c0_35 = arith.constant 0 : index
    %115 = vector.load %arg8[%c0_34, %c0_35] : memref<16x32xf32, #tpu.memory_space<vmem>>, vector<16x32xf32>
    %116 = vector.shape_cast %1 : vector<16x16x16xf32> to vector<256x16xf32>
    %cst_36 = arith.constant dense<0.000000e+00> : vector<256x32xf32>
    %117 = tpu.matmul %116, %115, %cst_36 {dimension_numbers = #tpu.dot_dimension_numbers<[1], [0], [0], [1], [0, 0, 1, 1], [], []>} : vector<256x16xf32>, vector<16x32xf32>, vector<256x32xf32> -> vector<256x32xf32>
    %118 = vector.broadcast %113 : vector<1x32xf32> to vector<256x32xf32>
    %119 = arith.mulf %117, %118 : vector<256x32xf32>
    %120 = vector.broadcast %114 : vector<1x32xf32> to vector<256x32xf32>
    %121 = arith.addf %119, %120 : vector<256x32xf32>
    %cst_37 = arith.constant 0.000000e+00 : f32
    %122 = vector.broadcast %cst_37 : f32 to vector<256x32xf32>
    %123 = arith.maximumf %121, %122 : vector<256x32xf32>
    %124 = vector.shape_cast %123 : vector<256x32xf32> to vector<16x16x32xf32>
    %125 = arith.addf %124, %86 : vector<16x16x32xf32>
    %126 = vector.extract_strided_slice %6 {offsets = [5, 0], sizes = [1, 32], strides = [1, 1]} : vector<7x32xf32> to vector<1x32xf32>
    %127 = vector.extract_strided_slice %7 {offsets = [5, 0], sizes = [1, 32], strides = [1, 1]} : vector<7x32xf32> to vector<1x32xf32>
    %c0_38 = arith.constant 0 : index
    %c0_39 = arith.constant 0 : index
    %128 = vector.load %arg9[%c0_38, %c0_39] : memref<288x32xf32, #tpu.memory_space<vmem>>, vector<288x32xf32>
    %cst_40 = arith.constant 0.000000e+00 : f32
    %129 = vector.broadcast %cst_40 : f32 to vector<1x4x32xf32>
    %130 = tpu.concatenate %129, %5, %129 in 0 : vector<1x4x32xf32>, vector<4x4x32xf32>, vector<1x4x32xf32> -> vector<6x4x32xf32>
    %cst_41 = arith.constant 0.000000e+00 : f32
    %131 = vector.broadcast %cst_41 : f32 to vector<6x1x32xf32>
    %132 = tpu.concatenate %131, %130, %131 in 1 : vector<6x1x32xf32>, vector<6x4x32xf32>, vector<6x1x32xf32> -> vector<6x6x32xf32>
    %133 = vector.extract_strided_slice %132 {offsets = [0, 0, 0], sizes = [1, 1, 32], strides = [1, 1, 1]} : vector<6x6x32xf32> to vector<1x1x32xf32>
    %134 = vector.shape_cast %133 : vector<1x1x32xf32> to vector<1x32xf32>
    %135 = vector.extract_strided_slice %132 {offsets = [0, 1, 0], sizes = [1, 1, 32], strides = [1, 1, 1]} : vector<6x6x32xf32> to vector<1x1x32xf32>
    %136 = vector.shape_cast %135 : vector<1x1x32xf32> to vector<1x32xf32>
    %137 = vector.extract_strided_slice %132 {offsets = [0, 2, 0], sizes = [1, 1, 32], strides = [1, 1, 1]} : vector<6x6x32xf32> to vector<1x1x32xf32>
    %138 = vector.shape_cast %137 : vector<1x1x32xf32> to vector<1x32xf32>
    %139 = vector.extract_strided_slice %132 {offsets = [1, 0, 0], sizes = [1, 1, 32], strides = [1, 1, 1]} : vector<6x6x32xf32> to vector<1x1x32xf32>
    %140 = vector.shape_cast %139 : vector<1x1x32xf32> to vector<1x32xf32>
    %141 = vector.extract_strided_slice %132 {offsets = [1, 1, 0], sizes = [1, 1, 32], strides = [1, 1, 1]} : vector<6x6x32xf32> to vector<1x1x32xf32>
    %142 = vector.shape_cast %141 : vector<1x1x32xf32> to vector<1x32xf32>
    %143 = vector.extract_strided_slice %132 {offsets = [1, 2, 0], sizes = [1, 1, 32], strides = [1, 1, 1]} : vector<6x6x32xf32> to vector<1x1x32xf32>
    %144 = vector.shape_cast %143 : vector<1x1x32xf32> to vector<1x32xf32>
    %145 = vector.extract_strided_slice %132 {offsets = [2, 0, 0], sizes = [1, 1, 32], strides = [1, 1, 1]} : vector<6x6x32xf32> to vector<1x1x32xf32>
    %146 = vector.shape_cast %145 : vector<1x1x32xf32> to vector<1x32xf32>
    %147 = vector.extract_strided_slice %132 {offsets = [2, 1, 0], sizes = [1, 1, 32], strides = [1, 1, 1]} : vector<6x6x32xf32> to vector<1x1x32xf32>
    %148 = vector.shape_cast %147 : vector<1x1x32xf32> to vector<1x32xf32>
    %149 = vector.extract_strided_slice %132 {offsets = [2, 2, 0], sizes = [1, 1, 32], strides = [1, 1, 1]} : vector<6x6x32xf32> to vector<1x1x32xf32>
    %150 = vector.shape_cast %149 : vector<1x1x32xf32> to vector<1x32xf32>
    %151 = tpu.concatenate %134, %136, %138, %140, %142, %144, %146, %148, %150 in 1 : vector<1x32xf32>, vector<1x32xf32>, vector<1x32xf32>, vector<1x32xf32>, vector<1x32xf32>, vector<1x32xf32>, vector<1x32xf32>, vector<1x32xf32>, vector<1x32xf32> -> vector<1x288xf32>
    %152 = vector.extract_strided_slice %132 {offsets = [0, 2, 0], sizes = [1, 1, 32], strides = [1, 1, 1]} : vector<6x6x32xf32> to vector<1x1x32xf32>
    %153 = vector.shape_cast %152 : vector<1x1x32xf32> to vector<1x32xf32>
    %154 = vector.extract_strided_slice %132 {offsets = [0, 3, 0], sizes = [1, 1, 32], strides = [1, 1, 1]} : vector<6x6x32xf32> to vector<1x1x32xf32>
    %155 = vector.shape_cast %154 : vector<1x1x32xf32> to vector<1x32xf32>
    %156 = vector.extract_strided_slice %132 {offsets = [0, 4, 0], sizes = [1, 1, 32], strides = [1, 1, 1]} : vector<6x6x32xf32> to vector<1x1x32xf32>
    %157 = vector.shape_cast %156 : vector<1x1x32xf32> to vector<1x32xf32>
    %158 = vector.extract_strided_slice %132 {offsets = [1, 2, 0], sizes = [1, 1, 32], strides = [1, 1, 1]} : vector<6x6x32xf32> to vector<1x1x32xf32>
    %159 = vector.shape_cast %158 : vector<1x1x32xf32> to vector<1x32xf32>
    %160 = vector.extract_strided_slice %132 {offsets = [1, 3, 0], sizes = [1, 1, 32], strides = [1, 1, 1]} : vector<6x6x32xf32> to vector<1x1x32xf32>
    %161 = vector.shape_cast %160 : vector<1x1x32xf32> to vector<1x32xf32>
    %162 = vector.extract_strided_slice %132 {offsets = [1, 4, 0], sizes = [1, 1, 32], strides = [1, 1, 1]} : vector<6x6x32xf32> to vector<1x1x32xf32>
    %163 = vector.shape_cast %162 : vector<1x1x32xf32> to vector<1x32xf32>
    %164 = vector.extract_strided_slice %132 {offsets = [2, 2, 0], sizes = [1, 1, 32], strides = [1, 1, 1]} : vector<6x6x32xf32> to vector<1x1x32xf32>
    %165 = vector.shape_cast %164 : vector<1x1x32xf32> to vector<1x32xf32>
    %166 = vector.extract_strided_slice %132 {offsets = [2, 3, 0], sizes = [1, 1, 32], strides = [1, 1, 1]} : vector<6x6x32xf32> to vector<1x1x32xf32>
    %167 = vector.shape_cast %166 : vector<1x1x32xf32> to vector<1x32xf32>
    %168 = vector.extract_strided_slice %132 {offsets = [2, 4, 0], sizes = [1, 1, 32], strides = [1, 1, 1]} : vector<6x6x32xf32> to vector<1x1x32xf32>
    %169 = vector.shape_cast %168 : vector<1x1x32xf32> to vector<1x32xf32>
    %170 = tpu.concatenate %153, %155, %157, %159, %161, %163, %165, %167, %169 in 1 : vector<1x32xf32>, vector<1x32xf32>, vector<1x32xf32>, vector<1x32xf32>, vector<1x32xf32>, vector<1x32xf32>, vector<1x32xf32>, vector<1x32xf32>, vector<1x32xf32> -> vector<1x288xf32>
    %171 = vector.extract_strided_slice %132 {offsets = [2, 0, 0], sizes = [1, 1, 32], strides = [1, 1, 1]} : vector<6x6x32xf32> to vector<1x1x32xf32>
    %172 = vector.shape_cast %171 : vector<1x1x32xf32> to vector<1x32xf32>
    %173 = vector.extract_strided_slice %132 {offsets = [2, 1, 0], sizes = [1, 1, 32], strides = [1, 1, 1]} : vector<6x6x32xf32> to vector<1x1x32xf32>
    %174 = vector.shape_cast %173 : vector<1x1x32xf32> to vector<1x32xf32>
    %175 = vector.extract_strided_slice %132 {offsets = [2, 2, 0], sizes = [1, 1, 32], strides = [1, 1, 1]} : vector<6x6x32xf32> to vector<1x1x32xf32>
    %176 = vector.shape_cast %175 : vector<1x1x32xf32> to vector<1x32xf32>
    %177 = vector.extract_strided_slice %132 {offsets = [3, 0, 0], sizes = [1, 1, 32], strides = [1, 1, 1]} : vector<6x6x32xf32> to vector<1x1x32xf32>
    %178 = vector.shape_cast %177 : vector<1x1x32xf32> to vector<1x32xf32>
    %179 = vector.extract_strided_slice %132 {offsets = [3, 1, 0], sizes = [1, 1, 32], strides = [1, 1, 1]} : vector<6x6x32xf32> to vector<1x1x32xf32>
    %180 = vector.shape_cast %179 : vector<1x1x32xf32> to vector<1x32xf32>
    %181 = vector.extract_strided_slice %132 {offsets = [3, 2, 0], sizes = [1, 1, 32], strides = [1, 1, 1]} : vector<6x6x32xf32> to vector<1x1x32xf32>
    %182 = vector.shape_cast %181 : vector<1x1x32xf32> to vector<1x32xf32>
    %183 = vector.extract_strided_slice %132 {offsets = [4, 0, 0], sizes = [1, 1, 32], strides = [1, 1, 1]} : vector<6x6x32xf32> to vector<1x1x32xf32>
    %184 = vector.shape_cast %183 : vector<1x1x32xf32> to vector<1x32xf32>
    %185 = vector.extract_strided_slice %132 {offsets = [4, 1, 0], sizes = [1, 1, 32], strides = [1, 1, 1]} : vector<6x6x32xf32> to vector<1x1x32xf32>
    %186 = vector.shape_cast %185 : vector<1x1x32xf32> to vector<1x32xf32>
    %187 = vector.extract_strided_slice %132 {offsets = [4, 2, 0], sizes = [1, 1, 32], strides = [1, 1, 1]} : vector<6x6x32xf32> to vector<1x1x32xf32>
    %188 = vector.shape_cast %187 : vector<1x1x32xf32> to vector<1x32xf32>
    %189 = tpu.concatenate %172, %174, %176, %178, %180, %182, %184, %186, %188 in 1 : vector<1x32xf32>, vector<1x32xf32>, vector<1x32xf32>, vector<1x32xf32>, vector<1x32xf32>, vector<1x32xf32>, vector<1x32xf32>, vector<1x32xf32>, vector<1x32xf32> -> vector<1x288xf32>
    %190 = vector.extract_strided_slice %132 {offsets = [2, 2, 0], sizes = [1, 1, 32], strides = [1, 1, 1]} : vector<6x6x32xf32> to vector<1x1x32xf32>
    %191 = vector.shape_cast %190 : vector<1x1x32xf32> to vector<1x32xf32>
    %192 = vector.extract_strided_slice %132 {offsets = [2, 3, 0], sizes = [1, 1, 32], strides = [1, 1, 1]} : vector<6x6x32xf32> to vector<1x1x32xf32>
    %193 = vector.shape_cast %192 : vector<1x1x32xf32> to vector<1x32xf32>
    %194 = vector.extract_strided_slice %132 {offsets = [2, 4, 0], sizes = [1, 1, 32], strides = [1, 1, 1]} : vector<6x6x32xf32> to vector<1x1x32xf32>
    %195 = vector.shape_cast %194 : vector<1x1x32xf32> to vector<1x32xf32>
    %196 = vector.extract_strided_slice %132 {offsets = [3, 2, 0], sizes = [1, 1, 32], strides = [1, 1, 1]} : vector<6x6x32xf32> to vector<1x1x32xf32>
    %197 = vector.shape_cast %196 : vector<1x1x32xf32> to vector<1x32xf32>
    %198 = vector.extract_strided_slice %132 {offsets = [3, 3, 0], sizes = [1, 1, 32], strides = [1, 1, 1]} : vector<6x6x32xf32> to vector<1x1x32xf32>
    %199 = vector.shape_cast %198 : vector<1x1x32xf32> to vector<1x32xf32>
    %200 = vector.extract_strided_slice %132 {offsets = [3, 4, 0], sizes = [1, 1, 32], strides = [1, 1, 1]} : vector<6x6x32xf32> to vector<1x1x32xf32>
    %201 = vector.shape_cast %200 : vector<1x1x32xf32> to vector<1x32xf32>
    %202 = vector.extract_strided_slice %132 {offsets = [4, 2, 0], sizes = [1, 1, 32], strides = [1, 1, 1]} : vector<6x6x32xf32> to vector<1x1x32xf32>
    %203 = vector.shape_cast %202 : vector<1x1x32xf32> to vector<1x32xf32>
    %204 = vector.extract_strided_slice %132 {offsets = [4, 3, 0], sizes = [1, 1, 32], strides = [1, 1, 1]} : vector<6x6x32xf32> to vector<1x1x32xf32>
    %205 = vector.shape_cast %204 : vector<1x1x32xf32> to vector<1x32xf32>
    %206 = vector.extract_strided_slice %132 {offsets = [4, 4, 0], sizes = [1, 1, 32], strides = [1, 1, 1]} : vector<6x6x32xf32> to vector<1x1x32xf32>
    %207 = vector.shape_cast %206 : vector<1x1x32xf32> to vector<1x32xf32>
    %208 = tpu.concatenate %191, %193, %195, %197, %199, %201, %203, %205, %207 in 1 : vector<1x32xf32>, vector<1x32xf32>, vector<1x32xf32>, vector<1x32xf32>, vector<1x32xf32>, vector<1x32xf32>, vector<1x32xf32>, vector<1x32xf32>, vector<1x32xf32> -> vector<1x288xf32>
    %209 = tpu.concatenate %151, %170, %189, %208 in 0 : vector<1x288xf32>, vector<1x288xf32>, vector<1x288xf32>, vector<1x288xf32> -> vector<4x288xf32>
    %cst_42 = arith.constant dense<0.000000e+00> : vector<4x32xf32>
    %210 = tpu.matmul %209, %128, %cst_42 {dimension_numbers = #tpu.dot_dimension_numbers<[1], [0], [0], [1], [0, 0, 1, 1], [], []>} : vector<4x288xf32>, vector<288x32xf32>, vector<4x32xf32> -> vector<4x32xf32>
    %211 = vector.broadcast %126 : vector<1x32xf32> to vector<4x32xf32>
    %212 = arith.mulf %210, %211 : vector<4x32xf32>
    %213 = vector.broadcast %127 : vector<1x32xf32> to vector<4x32xf32>
    %214 = arith.addf %212, %213 : vector<4x32xf32>
    %cst_43 = arith.constant 0.000000e+00 : f32
    %215 = vector.broadcast %cst_43 : f32 to vector<4x32xf32>
    %216 = arith.maximumf %214, %215 : vector<4x32xf32>
    %217 = vector.shape_cast %216 : vector<4x32xf32> to vector<2x2x32xf32>
    %218 = vector.extract_strided_slice %6 {offsets = [6, 0], sizes = [1, 32], strides = [1, 1]} : vector<7x32xf32> to vector<1x32xf32>
    %219 = vector.extract_strided_slice %7 {offsets = [6, 0], sizes = [1, 32], strides = [1, 1]} : vector<7x32xf32> to vector<1x32xf32>
    %c0_44 = arith.constant 0 : index
    %c0_45 = arith.constant 0 : index
    %220 = vector.load %arg10[%c0_44, %c0_45] : memref<288x32xf32, #tpu.memory_space<vmem>>, vector<288x32xf32>
    %cst_46 = arith.constant 0.000000e+00 : f32
    %221 = vector.broadcast %cst_46 : f32 to vector<1x2x32xf32>
    %222 = tpu.concatenate %221, %217, %221 in 0 : vector<1x2x32xf32>, vector<2x2x32xf32>, vector<1x2x32xf32> -> vector<4x2x32xf32>
    %cst_47 = arith.constant 0.000000e+00 : f32
    %223 = vector.broadcast %cst_47 : f32 to vector<4x1x32xf32>
    %224 = tpu.concatenate %223, %222, %223 in 1 : vector<4x1x32xf32>, vector<4x2x32xf32>, vector<4x1x32xf32> -> vector<4x4x32xf32>
    %225 = vector.extract_strided_slice %224 {offsets = [0, 0, 0], sizes = [1, 1, 32], strides = [1, 1, 1]} : vector<4x4x32xf32> to vector<1x1x32xf32>
    %226 = vector.shape_cast %225 : vector<1x1x32xf32> to vector<1x32xf32>
    %227 = vector.extract_strided_slice %224 {offsets = [0, 1, 0], sizes = [1, 1, 32], strides = [1, 1, 1]} : vector<4x4x32xf32> to vector<1x1x32xf32>
    %228 = vector.shape_cast %227 : vector<1x1x32xf32> to vector<1x32xf32>
    %229 = vector.extract_strided_slice %224 {offsets = [0, 2, 0], sizes = [1, 1, 32], strides = [1, 1, 1]} : vector<4x4x32xf32> to vector<1x1x32xf32>
    %230 = vector.shape_cast %229 : vector<1x1x32xf32> to vector<1x32xf32>
    %231 = vector.extract_strided_slice %224 {offsets = [1, 0, 0], sizes = [1, 1, 32], strides = [1, 1, 1]} : vector<4x4x32xf32> to vector<1x1x32xf32>
    %232 = vector.shape_cast %231 : vector<1x1x32xf32> to vector<1x32xf32>
    %233 = vector.extract_strided_slice %224 {offsets = [1, 1, 0], sizes = [1, 1, 32], strides = [1, 1, 1]} : vector<4x4x32xf32> to vector<1x1x32xf32>
    %234 = vector.shape_cast %233 : vector<1x1x32xf32> to vector<1x32xf32>
    %235 = vector.extract_strided_slice %224 {offsets = [1, 2, 0], sizes = [1, 1, 32], strides = [1, 1, 1]} : vector<4x4x32xf32> to vector<1x1x32xf32>
    %236 = vector.shape_cast %235 : vector<1x1x32xf32> to vector<1x32xf32>
    %237 = vector.extract_strided_slice %224 {offsets = [2, 0, 0], sizes = [1, 1, 32], strides = [1, 1, 1]} : vector<4x4x32xf32> to vector<1x1x32xf32>
    %238 = vector.shape_cast %237 : vector<1x1x32xf32> to vector<1x32xf32>
    %239 = vector.extract_strided_slice %224 {offsets = [2, 1, 0], sizes = [1, 1, 32], strides = [1, 1, 1]} : vector<4x4x32xf32> to vector<1x1x32xf32>
    %240 = vector.shape_cast %239 : vector<1x1x32xf32> to vector<1x32xf32>
    %241 = vector.extract_strided_slice %224 {offsets = [2, 2, 0], sizes = [1, 1, 32], strides = [1, 1, 1]} : vector<4x4x32xf32> to vector<1x1x32xf32>
    %242 = vector.shape_cast %241 : vector<1x1x32xf32> to vector<1x32xf32>
    %243 = tpu.concatenate %226, %228, %230, %232, %234, %236, %238, %240, %242 in 1 : vector<1x32xf32>, vector<1x32xf32>, vector<1x32xf32>, vector<1x32xf32>, vector<1x32xf32>, vector<1x32xf32>, vector<1x32xf32>, vector<1x32xf32>, vector<1x32xf32> -> vector<1x288xf32>
    %cst_48 = arith.constant dense<0.000000e+00> : vector<1x32xf32>
    %244 = tpu.matmul %243, %220, %cst_48 {dimension_numbers = #tpu.dot_dimension_numbers<[1], [0], [0], [1], [0, 0, 1, 1], [], []>} : vector<1x288xf32>, vector<288x32xf32>, vector<1x32xf32> -> vector<1x32xf32>
    %245 = arith.mulf %244, %218 : vector<1x32xf32>
    %246 = arith.addf %245, %219 : vector<1x32xf32>
    %cst_49 = arith.constant 0.000000e+00 : f32
    %247 = vector.broadcast %cst_49 : f32 to vector<1x32xf32>
    %248 = arith.maximumf %246, %247 : vector<1x32xf32>
    %249 = vector.shape_cast %248 : vector<1x32xf32> to vector<1x1x32xf32>
    %c0_50 = arith.constant 0 : index
    %c0_51 = arith.constant 0 : index
    %c0_52 = arith.constant 0 : index
    %c0_53 = arith.constant 0 : index
    %250 = vector.load %arg13[%c0_50, %c0_51, %c0_52, %c0_53] : memref<1x16x16x32xf32, #tpu.memory_space<vmem>>, vector<1x16x16x32xf32>
    %251 = vector.shape_cast %250 : vector<1x16x16x32xf32> to vector<16x16x32xf32>
    %252 = vector.shape_cast %125 : vector<16x16x32xf32> to vector<1x16x16x32xf32>
    tpu.vector_store %arg13[%c0_50, %c0_51, %c0_52, %c0_53], %252 {strides = array<i32>} : memref<1x16x16x32xf32, #tpu.memory_space<vmem>>, vector<1x16x16x32xf32>,
    %c0_54 = arith.constant 0 : index
    %c0_55 = arith.constant 0 : index
    %c0_56 = arith.constant 0 : index
    %c0_57 = arith.constant 0 : index
    %253 = vector.load %arg14[%c0_54, %c0_55, %c0_56, %c0_57] : memref<1x8x8x32xf32, #tpu.memory_space<vmem>>, vector<1x8x8x32xf32>
    %254 = vector.shape_cast %253 : vector<1x8x8x32xf32> to vector<8x8x32xf32>
    %255 = vector.shape_cast %112 : vector<8x8x32xf32> to vector<1x8x8x32xf32>
    tpu.vector_store %arg14[%c0_54, %c0_55, %c0_56, %c0_57], %255 {strides = array<i32>} : memref<1x8x8x32xf32, #tpu.memory_space<vmem>>, vector<1x8x8x32xf32>,
    %c0_58 = arith.constant 0 : index
    %c0_59 = arith.constant 0 : index
    %c0_60 = arith.constant 0 : index
    %c0_61 = arith.constant 0 : index
    %256 = vector.load %arg15[%c0_58, %c0_59, %c0_60, %c0_61] : memref<1x4x4x32xf32, #tpu.memory_space<vmem>>, vector<1x4x4x32xf32>
    %257 = vector.shape_cast %256 : vector<1x4x4x32xf32> to vector<4x4x32xf32>
    %258 = vector.shape_cast %55 : vector<4x4x32xf32> to vector<1x4x4x32xf32>
    tpu.vector_store %arg15[%c0_58, %c0_59, %c0_60, %c0_61], %258 {strides = array<i32>} : memref<1x4x4x32xf32, #tpu.memory_space<vmem>>, vector<1x4x4x32xf32>,
    %c0_62 = arith.constant 0 : index
    %c0_63 = arith.constant 0 : index
    %c0_64 = arith.constant 0 : index
    %c0_65 = arith.constant 0 : index
    %259 = vector.load %arg16[%c0_62, %c0_63, %c0_64, %c0_65] : memref<1x2x2x32xf32, #tpu.memory_space<vmem>>, vector<1x2x2x32xf32>
    %260 = vector.shape_cast %259 : vector<1x2x2x32xf32> to vector<2x2x32xf32>
    %261 = vector.shape_cast %217 : vector<2x2x32xf32> to vector<1x2x2x32xf32>
    tpu.vector_store %arg16[%c0_62, %c0_63, %c0_64, %c0_65], %261 {strides = array<i32>} : memref<1x2x2x32xf32, #tpu.memory_space<vmem>>, vector<1x2x2x32xf32>,
    %c0_66 = arith.constant 0 : index
    %c0_67 = arith.constant 0 : index
    %c0_68 = arith.constant 0 : index
    %c0_69 = arith.constant 0 : index
    %262 = vector.load %arg17[%c0_66, %c0_67, %c0_68, %c0_69] : memref<1x1x1x32xf32, #tpu.memory_space<vmem>>, vector<1x1x1x32xf32>
    %263 = vector.shape_cast %262 : vector<1x1x1x32xf32> to vector<1x1x32xf32>
    %264 = vector.shape_cast %249 : vector<1x1x32xf32> to vector<1x1x1x32xf32>
    tpu.vector_store %arg17[%c0_66, %c0_67, %c0_68, %c0_69], %264 {strides = array<i32>} : memref<1x1x1x32xf32, #tpu.memory_space<vmem>>, vector<1x1x1x32xf32>,
    return
  }
  func.func @transform_0(%arg0: i32) -> (i32, i32, i32, i32) {
    %c0_i32 = arith.constant 0 : i32
    %c0_i32_0 = arith.constant 0 : i32
    %c0_i32_1 = arith.constant 0 : i32
    %c0_i32_2 = arith.constant 0 : i32
    return %arg0, %c0_i32, %c0_i32_0, %c0_i32_1 : i32, i32, i32, i32
  }
  func.func @transform_1(%arg0: i32) -> (i32, i32, i32, i32) {
    %c0_i32 = arith.constant 0 : i32
    %c0_i32_0 = arith.constant 0 : i32
    %c0_i32_1 = arith.constant 0 : i32
    %c0_i32_2 = arith.constant 0 : i32
    return %arg0, %c0_i32, %c0_i32_0, %c0_i32_1 : i32, i32, i32, i32
  }
  func.func @transform_2(%arg0: i32) -> (i32, i32, i32, i32) {
    %c0_i32 = arith.constant 0 : i32
    %c0_i32_0 = arith.constant 0 : i32
    %c0_i32_1 = arith.constant 0 : i32
    %c0_i32_2 = arith.constant 0 : i32
    return %arg0, %c0_i32, %c0_i32_0, %c0_i32_1 : i32, i32, i32, i32
  }
  func.func @transform_3(%arg0: i32) -> (i32, i32) {
    %c0_i32 = arith.constant 0 : i32
    %c0_i32_0 = arith.constant 0 : i32
    %c0_i32_1 = arith.constant 0 : i32
    return %c0_i32, %c0_i32_0 : i32, i32
  }
  func.func @transform_4(%arg0: i32) -> (i32, i32) {
    %c0_i32 = arith.constant 0 : i32
    %c0_i32_0 = arith.constant 0 : i32
    %c0_i32_1 = arith.constant 0 : i32
    return %c0_i32, %c0_i32_0 : i32, i32
  }
  func.func @transform_5(%arg0: i32) -> (i32, i32) {
    %c0_i32 = arith.constant 0 : i32
    %c0_i32_0 = arith.constant 0 : i32
    %c0_i32_1 = arith.constant 0 : i32
    return %c0_i32, %c0_i32_0 : i32, i32
  }
  func.func @transform_6(%arg0: i32) -> (i32, i32) {
    %c0_i32 = arith.constant 0 : i32
    %c0_i32_0 = arith.constant 0 : i32
    %c0_i32_1 = arith.constant 0 : i32
    return %c0_i32, %c0_i32_0 : i32, i32
  }
  func.func @transform_7(%arg0: i32) -> (i32, i32) {
    %c0_i32 = arith.constant 0 : i32
    %c0_i32_0 = arith.constant 0 : i32
    %c0_i32_1 = arith.constant 0 : i32
    return %c0_i32, %c0_i32_0 : i32, i32
  }
  func.func @transform_8(%arg0: i32) -> (i32, i32) {
    %c0_i32 = arith.constant 0 : i32
    %c0_i32_0 = arith.constant 0 : i32
    %c0_i32_1 = arith.constant 0 : i32
    return %c0_i32, %c0_i32_0 : i32, i32
  }
  func.func @transform_9(%arg0: i32) -> (i32, i32) {
    %c0_i32 = arith.constant 0 : i32
    %c0_i32_0 = arith.constant 0 : i32
    %c0_i32_1 = arith.constant 0 : i32
    return %c0_i32, %c0_i32_0 : i32, i32
  }
  func.func @transform_10(%arg0: i32) -> (i32, i32) {
    %c0_i32 = arith.constant 0 : i32
    %c0_i32_0 = arith.constant 0 : i32
    %c0_i32_1 = arith.constant 0 : i32
    return %c0_i32, %c0_i32_0 : i32, i32
  }
  func.func @transform_11(%arg0: i32) -> (i32, i32) {
    %c0_i32 = arith.constant 0 : i32
    %c0_i32_0 = arith.constant 0 : i32
    %c0_i32_1 = arith.constant 0 : i32
    return %c0_i32, %c0_i32_0 : i32, i32
  }
  func.func @transform_12(%arg0: i32) -> (i32, i32, i32, i32) {
    %c0_i32 = arith.constant 0 : i32
    %c0_i32_0 = arith.constant 0 : i32
    %c0_i32_1 = arith.constant 0 : i32
    %c0_i32_2 = arith.constant 0 : i32
    return %arg0, %c0_i32, %c0_i32_0, %c0_i32_1 : i32, i32, i32, i32
  }
  func.func @transform_13(%arg0: i32) -> (i32, i32, i32, i32) {
    %c0_i32 = arith.constant 0 : i32
    %c0_i32_0 = arith.constant 0 : i32
    %c0_i32_1 = arith.constant 0 : i32
    %c0_i32_2 = arith.constant 0 : i32
    return %arg0, %c0_i32, %c0_i32_0, %c0_i32_1 : i32, i32, i32, i32
  }
  func.func @transform_14(%arg0: i32) -> (i32, i32, i32, i32) {
    %c0_i32 = arith.constant 0 : i32
    %c0_i32_0 = arith.constant 0 : i32
    %c0_i32_1 = arith.constant 0 : i32
    %c0_i32_2 = arith.constant 0 : i32
    return %arg0, %c0_i32, %c0_i32_0, %c0_i32_1 : i32, i32, i32, i32
  }
  func.func @transform_15(%arg0: i32) -> (i32, i32, i32, i32) {
    %c0_i32 = arith.constant 0 : i32
    %c0_i32_0 = arith.constant 0 : i32
    %c0_i32_1 = arith.constant 0 : i32
    %c0_i32_2 = arith.constant 0 : i32
    return %arg0, %c0_i32, %c0_i32_0, %c0_i32_1 : i32, i32, i32, i32
  }
  func.func @transform_16(%arg0: i32) -> (i32, i32, i32, i32) {
    %c0_i32 = arith.constant 0 : i32
    %c0_i32_0 = arith.constant 0 : i32
    %c0_i32_1 = arith.constant 0 : i32
    %c0_i32_2 = arith.constant 0 : i32
    return %arg0, %c0_i32, %c0_i32_0, %c0_i32_1 : i32, i32, i32, i32
  }
}

</mosaic_0001>

<llo_original>
// kernel: feature_pyramid_forward.1
$region0: #{feature_pyramid_forward.1}
  #allocation0 [shape = 'u32[]', space=smem, size = 0x4, offset = 0x4, fixed_abs, tag = 'smem constant byte address 0x4 - core index']
  #allocation1 [shape = 'u32[72,128]{1,0:T(1,128)}', space=vmem, size = 0x9000, scoped, tag = 'internal scratch']
  %s0 = inlined_call_operand.hbm [shape: f32[2,16,16,16], index: 0, kind: input, shape index: {}]
  %s1 = inlined_call_operand.hbm [shape: f32[2,8,8,24], index: 1, kind: input, shape index: {}]
  %s2 = inlined_call_operand.hbm [shape: f32[2,4,4,32], index: 2, kind: input, shape index: {}]
  %s3 = inlined_call_operand.hbm [shape: f32[32,32], index: 3, kind: input, shape index: {}]
  %s4 = inlined_call_operand.hbm [shape: f32[288,32], index: 4, kind: input, shape index: {}]
  %s5 = inlined_call_operand.hbm [shape: f32[24,32], index: 5, kind: input, shape index: {}]
  %s6 = inlined_call_operand.hbm [shape: f32[288,32], index: 6, kind: input, shape index: {}]
  %s7 = inlined_call_operand.vmem [shape: f32[16,32], index: 7, kind: input, shape index: {}]
  %s8 = inlined_call_operand.hbm [shape: f32[288,32], index: 8, kind: input, shape index: {}]
  %s9 = inlined_call_operand.hbm [shape: f32[288,32], index: 9, kind: input, shape index: {}]
  %s10 = inlined_call_operand.vmem [shape: f32[7,32], index: 10, kind: input, shape index: {}]
  %s11 = inlined_call_operand.vmem [shape: f32[7,32], index: 11, kind: input, shape index: {}]
  %s12 = inlined_call_operand.hbm [shape: f32[2,16,16,32], index: 12, kind: output, shape index: {0}]
  %s13 = inlined_call_operand.hbm [shape: f32[2,8,8,32], index: 13, kind: output, shape index: {1}]
  %s14 = inlined_call_operand.hbm [shape: f32[2,4,4,32], index: 14, kind: output, shape index: {2}]
  %s15 = inlined_call_operand.hbm [shape: f32[2,2,2,32], index: 15, kind: output, shape index: {3}]
  %s16 = inlined_call_operand.hbm [shape: f32[2,1,1,32], index: 16, kind: output, shape index: {4}]
  %17 = xla_tuple %s12, %s13, %s14, %s15, %s16
  %s18 = sld [smem:[#allocation0]]
  $region149: #{feature_pyramid_forward.1} parent=0
    _
  %s20 = ssub.s32 1, %s18
  %s21 = scalar_select 0, %s20, %s18
  $region1: #{feature_pyramid_forward.1} parent=0
    #allocation2 [shape = 'u8[262144]{0}', space=vmem, size = 0x40000, scoped, tag = 'input window, operand 0']
    #allocation3 [shape = 's32[2]{0}', space=sflag, size = 0x8, scoped, tag = 'scoped memory for feature_pyramid_forward.1']
    #allocation4 [shape = 's32[2]{0}', space=sflag, size = 0x8, scoped, tag = 'scoped memory for feature_pyramid_forward.1']
    #allocation5 [shape = 'u8[65536]{0}', space=vmem, size = 0x10000, scoped, tag = 'input window, operand 1']
    #allocation6 [shape = 's32[2]{0}', space=sflag, size = 0x8, scoped, tag = 'scoped memory for feature_pyramid_forward.1']
    #allocation7 [shape = 'u8[16384]{0}', space=vmem, size = 0x4000, scoped, tag = 'input window, operand 2']
    #allocation8 [shape = 'u8[16384]{0}', space=vmem, size = 0x4000, scoped, tag = 'input window, operand 3, single buffered']
    #allocation9 [shape = 's32[1]{0}', space=sflag, size = 0x4, scoped, tag = 'scoped memory for feature_pyramid_forward.1']
    #allocation10 [shape = 'u8[147456]{0}', space=vmem, size = 0x24000, scoped, tag = 'input window, operand 4, single buffered']
    #allocation11 [shape = 'u8[12288]{0}', space=vmem, size = 0x3000, scoped, tag = 'input window, operand 5, single buffered']
    #allocation12 [shape = 's32[1]{0}', space=sflag, size = 0x4, scoped, tag = 'scoped memory for feature_pyramid_forward.1']
    #allocation13 [shape = 'u8[147456]{0}', space=vmem, size = 0x24000, scoped, tag = 'input window, operand 6, single buffered']
    #allocation14 [shape = 'u8[147456]{0}', space=vmem, size = 0x24000, scoped, tag = 'input window, operand 8, single buffered']
    #allocation15 [shape = 's32[1]{0}', space=sflag, size = 0x4, scoped, tag = 'scoped memory for feature_pyramid_forward.1']
    #allocation16 [shape = 'u8[147456]{0}', space=vmem, size = 0x24000, scoped, tag = 'input window, operand 9, single buffered']
    #allocation17 [shape = 'u8[262144]{0}', space=vmem, size = 0x40000, scoped, tag = 'output window, operand 0']
    #allocation18 [shape = 'u8[65536]{0}', space=vmem, size = 0x10000, scoped, tag = 'output window, operand 1']
    #allocation19 [shape = 's32[2]{0}', space=sflag, size = 0x8, scoped, tag = 'scoped memory for feature_pyramid_forward.1']
    #allocation20 [shape = 'u8[16384]{0}', space=vmem, size = 0x4000, scoped, tag = 'output window, operand 2']
    #allocation21 [shape = 'u8[4096]{0}', space=vmem, size = 0x1000, scoped, tag = 'output window, operand 3']
    #allocation22 [shape = 's32[2]{0}', space=sflag, size = 0x8, scoped, tag = 'scoped memory for feature_pyramid_forward.1']
    #allocation23 [shape = 'u8[1024]{0}', space=vmem, size = 0x400, scoped, tag = 'output window, operand 4']
    %22 = vsyncpa [#allocation3], 0
    %s23 = scalar_lea.sflag [#allocation3], 1
    %24 = vsyncpa %s23, 0
    %25 = vsyncpa [#allocation6], 0
    %s26 = scalar_lea.sflag [#allocation6], 1
    %27 = vsyncpa %s26, 0
    %28 = vsyncpa [#allocation9], 0
    %29 = vsyncpa [#allocation12], 0
    %30 = vsyncpa [#allocation15], 0
    %31 = vsyncpa [#allocation4], 0
    %s32 = scalar_lea.sflag [#allocation4], 1
    %33 = vsyncpa %s32, 0
    %34 = vsyncpa [#allocation19], 0
    %s35 = scalar_lea.sflag [#allocation19], 1
    %36 = vsyncpa %s35, 0
    %37 = vsyncpa [#allocation22], 0
    %s38 = scalar_lea.sflag [#allocation22], 1
    %39 = vsyncpa %s38, 0
    loop: start=0, step=1, limit=4
    $region2: #{feature_pyramid_forward.1} parent=1 // loop_pre_header
      _
    $region3: #{feature_pyramid_forward.1} parent=1 // loop_header
      %s41 = sphi 0, %s45
      %p42 = scmp.ge.s32.totalorder %s41, 4
      %s51 = sphi 0, %s53
      %s54 = sphi 0, %s51
      %s55 = sphi 0, %s54
      %s71 = sphi 0, %s55
      %s77 = sphi 0, %s79
      %s80 = sphi 0, %s77
      %s81 = sphi 0, %s80
      %s97 = sphi 0, %s81
      %s103 = sphi 0, %s105
      %s106 = sphi 0, %s103
      %s107 = sphi 0, %s106
      %s123 = sphi 0, %s107
      %s127 = sphi 0, %s127
      %s129 = sphi 0, %s127
      %s130 = sphi 0, %s129
      %s144 = sphi 0, %s130
      %s148 = sphi 0, %s148
      %s150 = sphi 0, %s148
      %s151 = sphi 0, %s150
      %s165 = sphi 0, %s151
      %s169 = sphi 0, %s169
      %s171 = sphi 0, %s169
      %s172 = sphi 0, %s171
      %s186 = sphi 0, %s172
      %s190 = sphi 0, %s190
      %s192 = sphi 0, %s190
      %s193 = sphi 0, %s192
      %s207 = sphi 0, %s193
      %s211 = sphi 0, %s211
      %s213 = sphi 0, %s211
      %s214 = sphi 0, %s213
      %s228 = sphi 0, %s214
      %s232 = sphi 0, %s232
      %s234 = sphi 0, %s232
      %s235 = sphi 0, %s234
      %s249 = sphi 0, %s235
      %s253 = sphi 0, %s253
      %s255 = sphi 0, %s253
      %s256 = sphi 0, %s255
      %s270 = sphi 0, %s256
      %s274 = sphi 0, %s274
      %s276 = sphi 0, %s274
      %s277 = sphi 0, %s276
      %s291 = sphi 0, %s277
      %s295 = sphi 0, %s295
      %s297 = sphi 0, %s295
      %s298 = sphi 0, %s297
      %s312 = sphi 0, %s298
      %s318 = sphi 0, %s320
      %s321 = sphi 0, %s318
      %s322 = sphi 0, %s321
      %s338 = sphi 0, %s322
      %s344 = sphi 0, %s346
      %s347 = sphi 0, %s344
      %s348 = sphi 0, %s347
      %s364 = sphi 0, %s348
      %s370 = sphi 0, %s372
      %s373 = sphi 0, %s370
      %s374 = sphi 0, %s373
      %s390 = sphi 0, %s374
      %s396 = sphi 0, %s398
      %s399 = sphi 0, %s396
      %s400 = sphi 0, %s399
      %s416 = sphi 0, %s400
      %s422 = sphi 0, %s424
      %s425 = sphi 0, %s422
      %s426 = sphi 0, %s425
      %s442 = sphi 0, %s426
    $region4: #{feature_pyramid_forward.1} parent=1 // loop_header_branch
      %44 = sbr.rel (%p42) target = $region8
    $region5: #{feature_pyramid_forward.1} parent=1 // loop_body
      %s46 = ssub.s32 %s41, 1
      %s47 = ssub.s32 %s41, 2
      %s48 = sadd.s32 %s41, 1
      %s49 = ssub.s32 %s41, %s48
      %p50 = scmp.eq.s32.totalorder %s49, 0
      %s52 = sadd.s32 %s51, 1
      %s53 = scalar_select %p50, %s51, %s52
      %p56 = pneg %p50
      %p57 = scmp.eq.s32.totalorder %s41, 1
      %p58 = por %p56, %p57
      %p59 = scmp.ne.s32.totalorder %s51, %s54
      %p60 = scmp.eq.s32.totalorder %s41, 0
      %p61 = por %p59, %p60
      %p62 = scmp.ne.s32.totalorder %s51, %s54
      %p63 = scmp.eq.s32.totalorder %s46, 1
      %p64 = por %p62, %p63
      %p65 = scmp.ne.s32.totalorder %s54, %s55
      %p66 = scmp.eq.s32.totalorder %s46, 0
      %p67 = por %p65, %p66
      %p68 = scmp.ne.s32.totalorder %s54, %s55
      %p69 = scmp.eq.s32.totalorder %s47, 1
      %p70 = por %p68, %p69
      %p72 = scmp.ne.s32.totalorder %s55, %s71
      %p73 = scmp.eq.s32.totalorder %s47, 0
      %p74 = por %p72, %p73
      %s75 = ssub.s32 %s41, %s48
      %p76 = scmp.eq.s32.totalorder %s75, 0
      %s78 = sadd.s32 %s77, 1
      %s79 = scalar_select %p76, %s77, %s78
      %p82 = pneg %p76
      %p83 = scmp.eq.s32.totalorder %s41, 1
      %p84 = por %p82, %p83
      %p85 = scmp.ne.s32.totalorder %s77, %s80
      %p86 = scmp.eq.s32.totalorder %s41, 0
      %p87 = por %p85, %p86
      %p88 = scmp.ne.s32.totalorder %s77, %s80
      %p89 = scmp.eq.s32.totalorder %s46, 1
      %p90 = por %p88, %p89
      %p91 = scmp.ne.s32.totalorder %s80, %s81
      %p92 = scmp.eq.s32.totalorder %s46, 0
      %p93 = por %p91, %p92
      %p94 = scmp.ne.s32.totalorder %s80, %s81
      %p95 = scmp.eq.s32.totalorder %s47, 1
      %p96 = por %p94, %p95
      %p98 = scmp.ne.s32.totalorder %s81, %s97
      %p99 = scmp.eq.s32.totalorder %s47, 0
      %p100 = por %p98, %p99
      %s101 = ssub.s32 %s41, %s48
      %p102 = scmp.eq.s32.totalorder %s101, 0
      %s104 = sadd.s32 %s103, 1
      %s105 = scalar_select %p102, %s103, %s104
      %p108 = pneg %p102
      %p109 = scmp.eq.s32.totalorder %s41, 1
      %p110 = por %p108, %p109
      %p111 = scmp.ne.s32.totalorder %s103, %s106
      %p112 = scmp.eq.s32.totalorder %s41, 0
      %p113 = por %p111, %p112
      %p114 = scmp.ne.s32.totalorder %s103, %s106
      %p115 = scmp.eq.s32.totalorder %s46, 1
      %p116 = por %p114, %p115
      %p117 = scmp.ne.s32.totalorder %s106, %s107
      %p118 = scmp.eq.s32.totalorder %s46, 0
      %p119 = por %p117, %p118
      %p120 = scmp.ne.s32.totalorder %s106, %s107
      %p121 = scmp.eq.s32.totalorder %s47, 1
      %p122 = por %p120, %p121
      %p124 = scmp.ne.s32.totalorder %s107, %s123
      %p125 = scmp.eq.s32.totalorder %s47, 0
      %p126 = por %p124, %p125
      %s128 = sadd.s32 %s127, 1
      %p131 = scmp.eq.s32.totalorder %s41, 1
      %p132 = scmp.ne.s32.totalorder %s127, %s129
      %p133 = scmp.eq.s32.totalorder %s41, 0
      %p134 = por %p132, %p133
      %p135 = scmp.ne.s32.totalorder %s127, %s129
      %p136 = scmp.eq.s32.totalorder %s46, 1
      %p137 = por %p135, %p136
      %p138 = scmp.ne.s32.totalorder %s129, %s130
      %p139 = scmp.eq.s32.totalorder %s46, 0
      %p140 = por %p138, %p139
      %p141 = scmp.ne.s32.totalorder %s129, %s130
      %p142 = scmp.eq.s32.totalorder %s47, 1
      %p143 = por %p141, %p142
      %p145 = scmp.ne.s32.totalorder %s130, %s144
      %p146 = scmp.eq.s32.totalorder %s47, 0
      %p147 = por %p145, %p146
      %s149 = sadd.s32 %s148, 1
      %p152 = scmp.eq.s32.totalorder %s41, 1
      %p153 = scmp.ne.s32.totalorder %s148, %s150
      %p154 = scmp.eq.s32.totalorder %s41, 0
      %p155 = por %p153, %p154
      %p156 = scmp.ne.s32.totalorder %s148, %s150
      %p157 = scmp.eq.s32.totalorder %s46, 1
      %p158 = por %p156, %p157
      %p159 = scmp.ne.s32.totalorder %s150, %s151
      %p160 = scmp.eq.s32.totalorder %s46, 0
      %p161 = por %p159, %p160
      %p162 = scmp.ne.s32.totalorder %s150, %s151
      %p163 = scmp.eq.s32.totalorder %s47, 1
      %p164 = por %p162, %p163
      %p166 = scmp.ne.s32.totalorder %s151, %s165
      %p167 = scmp.eq.s32.totalorder %s47, 0
      %p168 = por %p166, %p167
      %s170 = sadd.s32 %s169, 1
      %p173 = scmp.eq.s32.totalorder %s41, 1
      %p174 = scmp.ne.s32.totalorder %s169, %s171
      %p175 = scmp.eq.s32.totalorder %s41, 0
      %p176 = por %p174, %p175
      %p177 = scmp.ne.s32.totalorder %s169, %s171
      %p178 = scmp.eq.s32.totalorder %s46, 1
      %p179 = por %p177, %p178
      %p180 = scmp.ne.s32.totalorder %s171, %s172
      %p181 = scmp.eq.s32.totalorder %s46, 0
      %p182 = por %p180, %p181
      %p183 = scmp.ne.s32.totalorder %s171, %s172
      %p184 = scmp.eq.s32.totalorder %s47, 1
      %p185 = por %p183, %p184
      %p187 = scmp.ne.s32.totalorder %s172, %s186
      %p188 = scmp.eq.s32.totalorder %s47, 0
      %p189 = por %p187, %p188
      %s191 = sadd.s32 %s190, 1
      %p194 = scmp.eq.s32.totalorder %s41, 1
      %p195 = scmp.ne.s32.totalorder %s190, %s192
      %p196 = scmp.eq.s32.totalorder %s41, 0
      %p197 = por %p195, %p196
      %p198 = scmp.ne.s32.totalorder %s190, %s192
      %p199 = scmp.eq.s32.totalorder %s46, 1
      %p200 = por %p198, %p199
      %p201 = scmp.ne.s32.totalorder %s192, %s193
      %p202 = scmp.eq.s32.totalorder %s46, 0
      %p203 = por %p201, %p202
      %p204 = scmp.ne.s32.totalorder %s192, %s193
      %p205 = scmp.eq.s32.totalorder %s47, 1
      %p206 = por %p204, %p205
      %p208 = scmp.ne.s32.totalorder %s193, %s207
      %p209 = scmp.eq.s32.totalorder %s47, 0
      %p210 = por %p208, %p209
      %s212 = sadd.s32 %s211, 1
      %p215 = scmp.eq.s32.totalorder %s41, 1
      %p216 = scmp.ne.s32.totalorder %s211, %s213
      %p217 = scmp.eq.s32.totalorder %s41, 0
      %p218 = por %p216, %p217
      %p219 = scmp.ne.s32.totalorder %s211, %s213
      %p220 = scmp.eq.s32.totalorder %s46, 1
      %p221 = por %p219, %p220
      %p222 = scmp.ne.s32.totalorder %s213, %s214
      %p223 = scmp.eq.s32.totalorder %s46, 0
      %p224 = por %p222, %p223
      %p225 = scmp.ne.s32.totalorder %s213, %s214
      %p226 = scmp.eq.s32.totalorder %s47, 1
      %p227 = por %p225, %p226
      %p229 = scmp.ne.s32.totalorder %s214, %s228
      %p230 = scmp.eq.s32.totalorder %s47, 0
      %p231 = por %p229, %p230
      %s233 = sadd.s32 %s232, 1
      %p236 = scmp.eq.s32.totalorder %s41, 1
      %p237 = scmp.ne.s32.totalorder %s232, %s234
      %p238 = scmp.eq.s32.totalorder %s41, 0
      %p239 = por %p237, %p238
      %p240 = scmp.ne.s32.totalorder %s232, %s234
      %p241 = scmp.eq.s32.totalorder %s46, 1
      %p242 = por %p240, %p241
      %p243 = scmp.ne.s32.totalorder %s234, %s235
      %p244 = scmp.eq.s32.totalorder %s46, 0
      %p245 = por %p243, %p244
      %p246 = scmp.ne.s32.totalorder %s234, %s235
      %p247 = scmp.eq.s32.totalorder %s47, 1
      %p248 = por %p246, %p247
      %p250 = scmp.ne.s32.totalorder %s235, %s249
      %p251 = scmp.eq.s32.totalorder %s47, 0
      %p252 = por %p250, %p251
      %s254 = sadd.s32 %s253, 1
      %p257 = scmp.eq.s32.totalorder %s41, 1
      %p258 = scmp.ne.s32.totalorder %s253, %s255
      %p259 = scmp.eq.s32.totalorder %s41, 0
      %p260 = por %p258, %p259
      %p261 = scmp.ne.s32.totalorder %s253, %s255
      %p262 = scmp.eq.s32.totalorder %s46, 1
      %p263 = por %p261, %p262
      %p264 = scmp.ne.s32.totalorder %s255, %s256
      %p265 = scmp.eq.s32.totalorder %s46, 0
      %p266 = por %p264, %p265
      %p267 = scmp.ne.s32.totalorder %s255, %s256
      %p268 = scmp.eq.s32.totalorder %s47, 1
      %p269 = por %p267, %p268
      %p271 = scmp.ne.s32.totalorder %s256, %s270
      %p272 = scmp.eq.s32.totalorder %s47, 0
      %p273 = por %p271, %p272
      %s275 = sadd.s32 %s274, 1
      %p278 = scmp.eq.s32.totalorder %s41, 1
      %p279 = scmp.ne.s32.totalorder %s274, %s276
      %p280 = scmp.eq.s32.totalorder %s41, 0
      %p281 = por %p279, %p280
      %p282 = scmp.ne.s32.totalorder %s274, %s276
      %p283 = scmp.eq.s32.totalorder %s46, 1
      %p284 = por %p282, %p283
      %p285 = scmp.ne.s32.totalorder %s276, %s277
      %p286 = scmp.eq.s32.totalorder %s46, 0
      %p287 = por %p285, %p286
      %p288 = scmp.ne.s32.totalorder %s276, %s277
      %p289 = scmp.eq.s32.totalorder %s47, 1
      %p290 = por %p288, %p289
      %p292 = scmp.ne.s32.totalorder %s277, %s291
      %p293 = scmp.eq.s32.totalorder %s47, 0
      %p294 = por %p292, %p293
      %s296 = sadd.s32 %s295, 1
      %p299 = scmp.eq.s32.totalorder %s41, 1
      %p300 = scmp.ne.s32.totalorder %s295, %s297
      %p301 = scmp.eq.s32.totalorder %s41, 0
      %p302 = por %p300, %p301
      %p303 = scmp.ne.s32.totalorder %s295, %s297
      %p304 = scmp.eq.s32.totalorder %s46, 1
      %p305 = por %p303, %p304
      %p306 = scmp.ne.s32.totalorder %s297, %s298
      %p307 = scmp.eq.s32.totalorder %s46, 0
      %p308 = por %p306, %p307
      %p309 = scmp.ne.s32.totalorder %s297, %s298
      %p310 = scmp.eq.s32.totalorder %s47, 1
      %p311 = por %p309, %p310
      %p313 = scmp.ne.s32.totalorder %s298, %s312
      %p314 = scmp.eq.s32.totalorder %s47, 0
      %p315 = por %p313, %p314
      %s316 = ssub.s32 %s41, %s48
      %p317 = scmp.eq.s32.totalorder %s316, 0
      %s319 = sadd.s32 %s318, 1
      %s320 = scalar_select %p317, %s318, %s319
      %p323 = pneg %p317
      %p324 = scmp.eq.s32.totalorder %s41, 1
      %p325 = por %p323, %p324
      %p326 = scmp.ne.s32.totalorder %s318, %s321
      %p327 = scmp.eq.s32.totalorder %s41, 0
      %p328 = por %p326, %p327
      %p329 = scmp.ne.s32.totalorder %s318, %s321
      %p330 = scmp.eq.s32.totalorder %s46, 1
      %p331 = por %p329, %p330
      %p332 = scmp.ne.s32.totalorder %s321, %s322
      %p333 = scmp.eq.s32.totalorder %s46, 0
      %p334 = por %p332, %p333
      %p335 = scmp.ne.s32.totalorder %s321, %s322
      %p336 = scmp.eq.s32.totalorder %s47, 1
      %p337 = por %p335, %p336
      %p339 = scmp.ne.s32.totalorder %s322, %s338
      %p340 = scmp.eq.s32.totalorder %s47, 0
      %p341 = por %p339, %p340
      %s342 = ssub.s32 %s41, %s48
      %p343 = scmp.eq.s32.totalorder %s342, 0
      %s345 = sadd.s32 %s344, 1
      %s346 = scalar_select %p343, %s344, %s345
      %p349 = pneg %p343
      %p350 = scmp.eq.s32.totalorder %s41, 1
      %p351 = por %p349, %p350
      %p352 = scmp.ne.s32.totalorder %s344, %s347
      %p353 = scmp.eq.s32.totalorder %s41, 0
      %p354 = por %p352, %p353
      %p355 = scmp.ne.s32.totalorder %s344, %s347
      %p356 = scmp.eq.s32.totalorder %s46, 1
      %p357 = por %p355, %p356
      %p358 = scmp.ne.s32.totalorder %s347, %s348
      %p359 = scmp.eq.s32.totalorder %s46, 0
      %p360 = por %p358, %p359
      %p361 = scmp.ne.s32.totalorder %s347, %s348
      %p362 = scmp.eq.s32.totalorder %s47, 1
      %p363 = por %p361, %p362
      %p365 = scmp.ne.s32.totalorder %s348, %s364
      %p366 = scmp.eq.s32.totalorder %s47, 0
      %p367 = por %p365, %p366
      %s368 = ssub.s32 %s41, %s48
      %p369 = scmp.eq.s32.totalorder %s368, 0
      %s371 = sadd.s32 %s370, 1
      %s372 = scalar_select %p369, %s370, %s371
      %p375 = pneg %p369
      %p376 = scmp.eq.s32.totalorder %s41, 1
      %p377 = por %p375, %p376
      %p378 = scmp.ne.s32.totalorder %s370, %s373
      %p379 = scmp.eq.s32.totalorder %s41, 0
      %p380 = por %p378, %p379
      %p381 = scmp.ne.s32.totalorder %s370, %s373
      %p382 = scmp.eq.s32.totalorder %s46, 1
      %p383 = por %p381, %p382
      %p384 = scmp.ne.s32.totalorder %s373, %s374
      %p385 = scmp.eq.s32.totalorder %s46, 0
      %p386 = por %p384, %p385
      %p387 = scmp.ne.s32.totalorder %s373, %s374
      %p388 = scmp.eq.s32.totalorder %s47, 1
      %p389 = por %p387, %p388
      %p391 = scmp.ne.s32.totalorder %s374, %s390
      %p392 = scmp.eq.s32.totalorder %s47, 0
      %p393 = por %p391, %p392
      %s394 = ssub.s32 %s41, %s48
      %p395 = scmp.eq.s32.totalorder %s394, 0
      %s397 = sadd.s32 %s396, 1
      %s398 = scalar_select %p395, %s396, %s397
      %p401 = pneg %p395
      %p402 = scmp.eq.s32.totalorder %s41, 1
      %p403 = por %p401, %p402
      %p404 = scmp.ne.s32.totalorder %s396, %s399
      %p405 = scmp.eq.s32.totalorder %s41, 0
      %p406 = por %p404, %p405
      %p407 = scmp.ne.s32.totalorder %s396, %s399
      %p408 = scmp.eq.s32.totalorder %s46, 1
      %p409 = por %p407, %p408
      %p410 = scmp.ne.s32.totalorder %s399, %s400
      %p411 = scmp.eq.s32.totalorder %s46, 0
      %p412 = por %p410, %p411
      %p413 = scmp.ne.s32.totalorder %s399, %s400
      %p414 = scmp.eq.s32.totalorder %s47, 1
      %p415 = por %p413, %p414
      %p417 = scmp.ne.s32.totalorder %s400, %s416
      %p418 = scmp.eq.s32.totalorder %s47, 0
      %p419 = por %p417, %p418
      %s420 = ssub.s32 %s41, %s48
      %p421 = scmp.eq.s32.totalorder %s420, 0
      %s423 = sadd.s32 %s422, 1
      %s424 = scalar_select %p421, %s422, %s423
      %p427 = pneg %p421
      %p428 = scmp.eq.s32.totalorder %s41, 1
      %p429 = por %p427, %p428
      %p430 = scmp.ne.s32.totalorder %s422, %s425
      %p431 = scmp.eq.s32.totalorder %s41, 0
      %p432 = por %p430, %p431
      %p433 = scmp.ne.s32.totalorder %s422, %s425
      %p434 = scmp.eq.s32.totalorder %s46, 1
      %p435 = por %p433, %p434
      %p436 = scmp.ne.s32.totalorder %s425, %s426
      %p437 = scmp.eq.s32.totalorder %s46, 0
      %p438 = por %p436, %p437
      %p439 = scmp.ne.s32.totalorder %s425, %s426
      %p440 = scmp.eq.s32.totalorder %s47, 1
      %p441 = por %p439, %p440
      %p443 = scmp.ne.s32.totalorder %s426, %s442
      %p444 = scmp.eq.s32.totalorder %s47, 0
      %p445 = por %p443, %p444
      %p446 = scmp.le.s32.totalorder 1, %s41
      %p447 = scmp.lt.s32.totalorder %s41, 3
      %p448 = pnand %p446, %p447
      %p449 = pneg %p448
      // Predicated region
      $region9: #{feature_pyramid_forward.1} parent=5 // pred_check
        _
      $region10: #{feature_pyramid_forward.1} parent=5 // pred_check_branch
        %451 = sbr.rel (%p448) target = $region12
      $region11: #{feature_pyramid_forward.1} parent=5 // pred_region
        %s452 = ssub.s32 %s41, 1
        // Predicated region
        $region13: #{feature_pyramid_forward.1} parent=11 // pred_check
          %p453 = pneg %p140
        $region14: #{feature_pyramid_forward.1} parent=11 // pred_check_branch
          %455 = sbr.rel (%p453) target = $region16
        $region15: #{feature_pyramid_forward.1} parent=11 // pred_region
          %457 = vsyncadd [#allocation9], 0
          %s458 = sshll.u32 %s3, 4
          %s459 = int_to_ptr.hbm [resolvable:$true] %s458
          %s460 = sshll.u32 [#allocation8], 4
          %s461 = int_to_ptr.vmem [resolvable:$true] %s460
          %466 = dma.hbm_to_vmem [thread:$0]  %s459, 512, %s461, [#allocation9], 128, 128, 8
        $region16: #{feature_pyramid_forward.1} parent=11 // pred_fallthru
          _
        // Predicated region
        $region17: #{feature_pyramid_forward.1} parent=11 // pred_check
          %p467 = pneg %p161
        $region18: #{feature_pyramid_forward.1} parent=11 // pred_check_branch
          %469 = sbr.rel (%p467) target = $region20
        $region19: #{feature_pyramid_forward.1} parent=11 // pred_region
          %471 = vsyncadd [#allocation9], 0
          %s472 = sshll.u32 %s4, 4
          %s473 = int_to_ptr.hbm [resolvable:$true] %s472
          %s474 = sshll.u32 [#allocation10], 4
          %s475 = int_to_ptr.vmem [resolvable:$true] %s474
          %480 = dma.hbm_to_vmem [thread:$0]  %s473, 4608, %s475, [#allocation9], 128, 128, 8
        $region20: #{feature_pyramid_forward.1} parent=11 // pred_fallthru
          _
        // Predicated region
        $region21: #{feature_pyramid_forward.1} parent=11 // pred_check
          %p481 = pneg %p182
        $region22: #{feature_pyramid_forward.1} parent=11 // pred_check_branch
          %483 = sbr.rel (%p481) target = $region24
        $region23: #{feature_pyramid_forward.1} parent=11 // pred_region
          %485 = vsyncadd [#allocation12], 0
          %s486 = sshll.u32 %s5, 4
          %s487 = int_to_ptr.hbm [resolvable:$true] %s486
          %s488 = sshll.u32 [#allocation11], 4
          %s489 = int_to_ptr.vmem [resolvable:$true] %s488
          %494 = dma.hbm_to_vmem [thread:$0]  %s487, 384, %s489, [#allocation12], 128, 128, 8
        $region24: #{feature_pyramid_forward.1} parent=11 // pred_fallthru
          _
        // Predicated region
        $region25: #{feature_pyramid_forward.1} parent=11 // pred_check
          %p495 = pneg %p203
        $region26: #{feature_pyramid_forward.1} parent=11 // pred_check_branch
          %497 = sbr.rel (%p495) target = $region28
        $region27: #{feature_pyramid_forward.1} parent=11 // pred_region
          %499 = vsyncadd [#allocation12], 0
          %s500 = sshll.u32 %s6, 4
          %s501 = int_to_ptr.hbm [resolvable:$true] %s500
          %s502 = sshll.u32 [#allocation13], 4
          %s503 = int_to_ptr.vmem [resolvable:$true] %s502
          %508 = dma.hbm_to_vmem [thread:$0]  %s501, 4608, %s503, [#allocation12], 128, 128, 8
        $region28: #{feature_pyramid_forward.1} parent=11 // pred_fallthru
          _
        // Predicated region
        $region29: #{feature_pyramid_forward.1} parent=11 // pred_check
          %p509 = pneg %p224
        $region30: #{feature_pyramid_forward.1} parent=11 // pred_check_branch
          %511 = sbr.rel (%p509) target = $region32
        $region31: #{feature_pyramid_forward.1} parent=11 // pred_region
          _
        $region32: #{feature_pyramid_forward.1} parent=11 // pred_fallthru
          _
        // Predicated region
        $region33: #{feature_pyramid_forward.1} parent=11 // pred_check
          %p512 = pneg %p245
        $region34: #{feature_pyramid_forward.1} parent=11 // pred_check_branch
          %514 = sbr.rel (%p512) target = $region36
        $region35: #{feature_pyramid_forward.1} parent=11 // pred_region
          %516 = vsyncadd [#allocation15], 0
          %s517 = sshll.u32 %s8, 4
          %s518 = int_to_ptr.hbm [resolvable:$true] %s517
          %s519 = sshll.u32 [#allocation14], 4
          %s520 = int_to_ptr.vmem [resolvable:$true] %s519
          %525 = dma.hbm_to_vmem [thread:$0]  %s518, 4608, %s520, [#allocation15], 128, 128, 8
        $region36: #{feature_pyramid_forward.1} parent=11 // pred_fallthru
          _
        // Predicated region
        $region37: #{feature_pyramid_forward.1} parent=11 // pred_check
          %p526 = pneg %p266
        $region38: #{feature_pyramid_forward.1} parent=11 // pred_check_branch
          %528 = sbr.rel (%p526) target = $region40
        $region39: #{feature_pyramid_forward.1} parent=11 // pred_region
          %530 = vsyncadd [#allocation15], 0
          %s531 = sshll.u32 %s9, 4
          %s532 = int_to_ptr.hbm [resolvable:$true] %s531
          %s533 = sshll.u32 [#allocation16], 4
          %s534 = int_to_ptr.vmem [resolvable:$true] %s533
          %539 = dma.hbm_to_vmem [thread:$0]  %s532, 4608, %s534, [#allocation15], 128, 128, 8
        $region40: #{feature_pyramid_forward.1} parent=11 // pred_fallthru
          _
        // Predicated region
        $region41: #{feature_pyramid_forward.1} parent=11 // pred_check
          %p540 = pneg %p287
        $region42: #{feature_pyramid_forward.1} parent=11 // pred_check_branch
          %542 = sbr.rel (%p540) target = $region44
        $region43: #{feature_pyramid_forward.1} parent=11 // pred_region
          _
        $region44: #{feature_pyramid_forward.1} parent=11 // pred_fallthru
          _
        // Predicated region
        $region45: #{feature_pyramid_forward.1} parent=11 // pred_check
          %p543 = pneg %p308
        $region46: #{feature_pyramid_forward.1} parent=11 // pred_check_branch
          %545 = sbr.rel (%p543) target = $region48
        $region47: #{feature_pyramid_forward.1} parent=11 // pred_region
          _
        $region48: #{feature_pyramid_forward.1} parent=11 // pred_fallthru
          _
      $region12: #{feature_pyramid_forward.1} parent=5 // pred_fallthru
        _
      %p546 = scmp.lt.s32.totalorder %s41, 2
      // Predicated region
      $region49: #{feature_pyramid_forward.1} parent=5 // pred_check
        %p547 = pneg %p546
      $region50: #{feature_pyramid_forward.1} parent=5 // pred_check_branch
        %549 = sbr.rel (%p547) target = $region52
      $region51: #{feature_pyramid_forward.1} parent=5 // pred_region
        // Predicated region
        $region53: #{feature_pyramid_forward.1} parent=51 // pred_check
          %p550 = pneg %p61
        $region54: #{feature_pyramid_forward.1} parent=51 // pred_check_branch
          %552 = sbr.rel (%p550) target = $region56
        $region55: #{feature_pyramid_forward.1} parent=51 // pred_region
          %s553 = sand.u32 %s51, 1
          %s554 = scalar_lea.sflag [#allocation3], %s553
          %s555 = sand.u32 %s51, 1
          %s556 = smul.addr %s555, 256
          %s557 = scalar_lea.vmem [#allocation2], %s556
          %559 = vsyncadd %s554, 0
          %s560 = smul.addr %s41, 32
          %s561 = smul.addr %s560, 8
          %s562 = scalar_lea.hbm %s0, %s561
          %s563 = sshll.u32 %s562, 4
          %s564 = int_to_ptr.hbm [resolvable:$true] %s563
          %s565 = sshll.u32 %s557, 4
          %s566 = int_to_ptr.vmem [resolvable:$true] %s565
          %571 = dma.hbm_to_vmem [thread:$0]  %s564, 4096, %s566, %s554, 128, 128, 8
        $region56: #{feature_pyramid_forward.1} parent=51 // pred_fallthru
          _
        // Predicated region
        $region57: #{feature_pyramid_forward.1} parent=51 // pred_check
          %p572 = pneg %p87
        $region58: #{feature_pyramid_forward.1} parent=51 // pred_check_branch
          %574 = sbr.rel (%p572) target = $region60
        $region59: #{feature_pyramid_forward.1} parent=51 // pred_region
          %s575 = sand.u32 %s41, 1
          %s576 = scalar_lea.sflag [#allocation6], %s575
          %s577 = sand.u32 %s77, 1
          %s578 = smul.addr %s577, 64
          %s579 = scalar_lea.vmem [#allocation5], %s578
          %581 = vsyncadd %s576, 0
          %s582 = smul.addr %s41, 8
          %s583 = smul.addr %s582, 8
          %s584 = scalar_lea.hbm %s1, %s583
          %s585 = sshll.u32 %s584, 4
          %s586 = int_to_ptr.hbm [resolvable:$true] %s585
          %s587 = sshll.u32 %s579, 4
          %s588 = int_to_ptr.vmem [resolvable:$true] %s587
          %593 = dma.hbm_to_vmem [thread:$0]  %s586, 1024, %s588, %s576, 128, 128, 8
        $region60: #{feature_pyramid_forward.1} parent=51 // pred_fallthru
          _
        // Predicated region
        $region61: #{feature_pyramid_forward.1} parent=51 // pred_check
          %p594 = pneg %p113
        $region62: #{feature_pyramid_forward.1} parent=51 // pred_check_branch
          %596 = sbr.rel (%p594) target = $region64
        $region63: #{feature_pyramid_forward.1} parent=51 // pred_region
          %s597 = sand.u32 %s41, 1
          %s598 = scalar_lea.sflag [#allocation6], %s597
          %s599 = sand.u32 %s103, 1
          %s600 = smul.addr %s599, 16
          %s601 = scalar_lea.vmem [#allocation7], %s600
          %603 = vsyncadd %s598, 0
          %s604 = smul.addr %s41, 4
          %s605 = smul.addr %s604, 4
          %s606 = scalar_lea.hbm %s2, %s605
          %s607 = sshll.u32 %s606, 4
          %s608 = int_to_ptr.hbm [resolvable:$true] %s607
          %s609 = sshll.u32 %s601, 4
          %s610 = int_to_ptr.vmem [resolvable:$true] %s609
          %615 = dma.hbm_to_vmem [thread:$0]  %s608, 256, %s610, %s598, 64, 64, 4
        $region64: #{feature_pyramid_forward.1} parent=51 // pred_fallthru
          _
      $region52: #{feature_pyramid_forward.1} parent=5 // pred_fallthru
        _
      %p616 = scmp.le.s32.totalorder 1, %s41
      %p617 = scmp.lt.s32.totalorder %s41, 3
      %p618 = pnand %p616, %p617
      %p619 = pneg %p618
      // Predicated region
      $region65: #{feature_pyramid_forward.1} parent=5 // pred_check
        _
      $region66: #{feature_pyramid_forward.1} parent=5 // pred_check_branch
        %621 = sbr.rel (%p618) target = $region68
      $region67: #{feature_pyramid_forward.1} parent=5 // pred_region
        %s622 = ssub.s32 %s41, 1
        %s623 = sand.u32 %s54, 1
        %s624 = scalar_lea.sflag [#allocation3], %s623
        %s625 = sand.u32 %s54, 1
        %s626 = smul.addr %s625, 256
        %s627 = scalar_lea.vmem [#allocation2], %s626
        // Predicated region
        $region69: #{feature_pyramid_forward.1} parent=67 // pred_check
          %p628 = pneg %p67
        $region70: #{feature_pyramid_forward.1} parent=67 // pred_check_branch
          %630 = sbr.rel (%p628) target = $region72
        $region71: #{feature_pyramid_forward.1} parent=67 // pred_region
          %632 = dma.done %s624, 4096
        $region72: #{feature_pyramid_forward.1} parent=67 // pred_fallthru
          _
        %s633 = sand.u32 %s46, 1
        %s634 = scalar_lea.sflag [#allocation6], %s633
        %s635 = sand.u32 %s80, 1
        %s636 = smul.addr %s635, 64
        %s637 = scalar_lea.vmem [#allocation5], %s636
        // Predicated region
        $region73: #{feature_pyramid_forward.1} parent=67 // pred_check
          %p638 = pneg %p93
        $region74: #{feature_pyramid_forward.1} parent=67 // pred_check_branch
          %640 = sbr.rel (%p638) target = $region76
        $region75: #{feature_pyramid_forward.1} parent=67 // pred_region
          %642 = dma.done %s634, 1024
        $region76: #{feature_pyramid_forward.1} parent=67 // pred_fallthru
          _
        %s643 = sand.u32 %s46, 1
        %s644 = scalar_lea.sflag [#allocation6], %s643
        %s645 = sand.u32 %s106, 1
        %s646 = smul.addr %s645, 16
        %s647 = scalar_lea.vmem [#allocation7], %s646
        // Predicated region
        $region77: #{feature_pyramid_forward.1} parent=67 // pred_check
          %p648 = pneg %p119
        $region78: #{feature_pyramid_forward.1} parent=67 // pred_check_branch
          %650 = sbr.rel (%p648) target = $region80
        $region79: #{feature_pyramid_forward.1} parent=67 // pred_region
          %652 = dma.done %s644, 256
        $region80: #{feature_pyramid_forward.1} parent=67 // pred_fallthru
          _
        // Predicated region
        $region81: #{feature_pyramid_forward.1} parent=67 // pred_check
          %p653 = pneg %p140
        $region82: #{feature_pyramid_forward.1} parent=67 // pred_check_branch
          %655 = sbr.rel (%p653) target = $region84
        $region83: #{feature_pyramid_forward.1} parent=67 // pred_region
          %657 = dma.done [#allocation9], 512
        $region84: #{feature_pyramid_forward.1} parent=67 // pred_fallthru
          _
        // Predicated region
        $region85: #{feature_pyramid_forward.1} parent=67 // pred_check
          %p658 = pneg %p161
        $region86: #{feature_pyramid_forward.1} parent=67 // pred_check_branch
          %660 = sbr.rel (%p658) target = $region88
        $region87: #{feature_pyramid_forward.1} parent=67 // pred_region
          %662 = dma.done [#allocation9], 4608
        $region88: #{feature_pyramid_forward.1} parent=67 // pred_fallthru
          _
        // Predicated region
        $region89: #{feature_pyramid_forward.1} parent=67 // pred_check
          %p663 = pneg %p182
        $region90: #{feature_pyramid_forward.1} parent=67 // pred_check_branch
          %665 = sbr.rel (%p663) target = $region92
        $region91: #{feature_pyramid_forward.1} parent=67 // pred_region
          %667 = dma.done [#allocation12], 384
        $region92: #{feature_pyramid_forward.1} parent=67 // pred_fallthru
          _
        // Predicated region
        $region93: #{feature_pyramid_forward.1} parent=67 // pred_check
          %p668 = pneg %p203
        $region94: #{feature_pyramid_forward.1} parent=67 // pred_check_branch
          %670 = sbr.rel (%p668) target = $region96
        $region95: #{feature_pyramid_forward.1} parent=67 // pred_region
          %672 = dma.done [#allocation12], 4608
        $region96: #{feature_pyramid_forward.1} parent=67 // pred_fallthru
          _
        // Predicated region
        $region97: #{feature_pyramid_forward.1} parent=67 // pred_check
          %p673 = pneg %p245
        $region98: #{feature_pyramid_forward.1} parent=67 // pred_check_branch
          %675 = sbr.rel (%p673) target = $region100
        $region99: #{feature_pyramid_forward.1} parent=67 // pred_region
          %677 = dma.done [#allocation15], 4608
        $region100: #{feature_pyramid_forward.1} parent=67 // pred_fallthru
          _
        // Predicated region
        $region101: #{feature_pyramid_forward.1} parent=67 // pred_check
          %p678 = pneg %p266
        $region102: #{feature_pyramid_forward.1} parent=67 // pred_check_branch
          %680 = sbr.rel (%p678) target = $region104
        $region103: #{feature_pyramid_forward.1} parent=67 // pred_region
          %682 = dma.done [#allocation15], 4608
        $region104: #{feature_pyramid_forward.1} parent=67 // pred_fallthru
          _
        %s683 = sand.u32 %s54, 1
        %s684 = scalar_lea.sflag [#allocation3], %s683
        %s685 = sand.u32 %s54, 1
        %s686 = smul.addr %s685, 256
        %s687 = scalar_lea.vmem [#allocation2], %s686
        %p688 = pneg %p67
        %p689 = pneg %p64
        %s690 = sand.u32 %s46, 1
        %s691 = scalar_lea.sflag [#allocation6], %s690
        %s692 = sand.u32 %s80, 1
        %s693 = smul.addr %s692, 64
        %s694 = scalar_lea.vmem [#allocation5], %s693
        %p695 = pneg %p93
        %p696 = pneg %p90
        %s697 = sand.u32 %s46, 1
        %s698 = scalar_lea.sflag [#allocation6], %s697
        %s699 = sand.u32 %s106, 1
        %s700 = smul.addr %s699, 16
        %s701 = scalar_lea.vmem [#allocation7], %s700
        %p702 = pneg %p119
        %p703 = pneg %p116
        %p704 = pneg %p140
        %p705 = pneg %p137
        %p706 = pneg %p161
        %p707 = pneg %p158
        %p708 = pneg %p182
        %p709 = pneg %p179
        %p710 = pneg %p203
        %p711 = pneg %p200
        %p712 = pneg %p224
        %p713 = pneg %p221
        %p714 = pneg %p245
        %p715 = pneg %p242
        %p716 = pneg %p266
        %p717 = pneg %p263
        %p718 = pneg %p287
        %p719 = pneg %p284
        %p720 = pneg %p308
        %p721 = pneg %p305
        %p722 = pneg %p334
        %p723 = pneg %p331
        %s724 = sand.u32 %s321, 1
        %s725 = scalar_lea.sflag [#allocation4], %s724
        %s726 = sand.u32 %s321, 1
        %s727 = smul.addr %s726, 256
        %s728 = scalar_lea.vmem [#allocation17], %s727
        %p729 = pneg %p360
        %p730 = pneg %p357
        %s731 = sand.u32 %s46, 1
        %s732 = scalar_lea.sflag [#allocation19], %s731
        %s733 = sand.u32 %s347, 1
        %s734 = smul.addr %s733, 64
        %s735 = scalar_lea.vmem [#allocation18], %s734
        %p736 = pneg %p386
        %p737 = pneg %p383
        %s738 = sand.u32 %s46, 1
        %s739 = scalar_lea.sflag [#allocation19], %s738
        %s740 = sand.u32 %s373, 1
        %s741 = smul.addr %s740, 16
        %s742 = scalar_lea.vmem [#allocation20], %s741
        %p743 = pneg %p412
        %p744 = pneg %p409
        %s745 = sand.u32 %s46, 1
        %s746 = scalar_lea.sflag [#allocation22], %s745
        %s747 = sand.u32 %s399, 1
        %s748 = smul.addr %s747, 4
        %s749 = scalar_lea.vmem [#allocation21], %s748
        %p750 = pneg %p438
        %p751 = pneg %p435
        %s752 = sand.u32 %s46, 1
        %s753 = scalar_lea.sflag [#allocation22], %s752
        %s754 = sand.u32 %s425, 1
        %s755 = scalar_lea.vmem [#allocation23], %s754
        %v756 = vld [vmem:[%s627] sm:$0xff]
        %v757 = vld [vmem:[%s627 + $0x8] sm:$0xff]
        %v758 = vld [vmem:[%s627 + $0x10] sm:$0xff]
        %v759 = vld [vmem:[%s627 + $0x18] sm:$0xff]
        %v760 = vld [vmem:[%s627 + $0x20] sm:$0xff]
        %v761 = vld [vmem:[%s627 + $0x28] sm:$0xff]
        %v762 = vld [vmem:[%s627 + $0x30] sm:$0xff]
        %v763 = vld [vmem:[%s627 + $0x38] sm:$0xff]
        %v764 = vld [vmem:[%s627 + $0x40] sm:$0xff]
        %v765 = vld [vmem:[%s627 + $0x48] sm:$0xff]
        %v766 = vld [vmem:[%s627 + $0x50] sm:$0xff]
        %v767 = vld [vmem:[%s627 + $0x58] sm:$0xff]
        %v768 = vld [vmem:[%s627 + $0x60] sm:$0xff]
        %v769 = vld [vmem:[%s627 + $0x68] sm:$0xff]
        %v770 = vld [vmem:[%s627 + $0x70] sm:$0xff]
        %v771 = vld [vmem:[%s627 + $0x78] sm:$0xff]
        %v772 = vld [vmem:[%s627 + $0x80] sm:$0xff]
        %v773 = vld [vmem:[%s627 + $0x88] sm:$0xff]
        %v774 = vld [vmem:[%s627 + $0x90] sm:$0xff]
        %v775 = vld [vmem:[%s627 + $0x98] sm:$0xff]
        %v776 = vld [vmem:[%s627 + $0xa0] sm:$0xff]
        %v777 = vld [vmem:[%s627 + $0xa8] sm:$0xff]
        %v778 = vld [vmem:[%s627 + $0xb0] sm:$0xff]
        %v779 = vld [vmem:[%s627 + $0xb8] sm:$0xff]
        %v780 = vld [vmem:[%s627 + $0xc0] sm:$0xff]
        %v781 = vld [vmem:[%s627 + $0xc8] sm:$0xff]
        %v782 = vld [vmem:[%s627 + $0xd0] sm:$0xff]
        %v783 = vld [vmem:[%s627 + $0xd8] sm:$0xff]
        %v784 = vld [vmem:[%s627 + $0xe0] sm:$0xff]
        %v785 = vld [vmem:[%s627 + $0xe8] sm:$0xff]
        %v786 = vld [vmem:[%s627 + $0xf0] sm:$0xff]
        %v787 = vld [vmem:[%s627 + $0xf8] sm:$0xff]
        %v788 = vld [vmem:[%s637] sm:$0xff]
        %v789 = vld [vmem:[%s637 + $0x8] sm:$0xff]
        %v790 = vld [vmem:[%s637 + $0x10] sm:$0xff]
        %v791 = vld [vmem:[%s637 + $0x18] sm:$0xff]
        %v792 = vld [vmem:[%s637 + $0x20] sm:$0xff]
        %v793 = vld [vmem:[%s637 + $0x28] sm:$0xff]
        %v794 = vld [vmem:[%s637 + $0x30] sm:$0xff]
        %v795 = vld [vmem:[%s637 + $0x38] sm:$0xff]
        %v796 = vld [vmem:[%s647] sm:$0xf]
        %v797 = vld [vmem:[%s647 + $0x4] sm:$0xf]
        %v798 = vld [vmem:[%s647 + $0x8] sm:$0xf]
        %v799 = vld [vmem:[%s647 + $0xc] sm:$0xf]
        %v800 = vld [vmem:[%s10] sm:$0x7f]
        %v801 = vld [vmem:[%s11] sm:$0x7f]
        %v802 = vld [vmem:[#allocation8] sm:$0xff]
        %v803 = vld [vmem:[#allocation8 + $0x8] sm:$0xff]
        %v804 = vld [vmem:[#allocation8 + $0x10] sm:$0xff]
        %v805 = vld [vmem:[#allocation8 + $0x18] sm:$0xff]
        %810 = vst [vmem:[#allocation1] ss:$2 sm:$0xff] %v796
        %s811 = scalar_lea.vmem [#allocation1], 1
        %812 = vst [vmem:[%s811] ss:$2 sm:$0xff] %v797
        %s813 = scalar_lea.vmem [#allocation1], 16
        %814 = vst [vmem:[%s813] ss:$2 sm:$0xff] %v798
        %s815 = scalar_lea.vmem [#allocation1], 17
        %816 = vst [vmem:[%s815] ss:$2 sm:$0xff] %v799
        %v817 = vld.sshfl [vmem:[#allocation1] sm:$0xff pattern:$0x75316420]
        %v818 = vld.sshfl [vmem:[#allocation1 + $0x10] sm:$0xff pattern:$0x75316420]
        %vm819 = vcmask 261120
        %v820 = vsel %vm819, %v817, 0
        %v822 = vsel %vm819, %v818, 0
        %824 = vmatpush.msra.mxu0 0.0
        %825 = vmatpush.msra.mxu0 0.0
        %826 = vmatpush.msra.mxu0 0.0
        %827 = vmatpush.msra.mxu0 0.0
        %828 = vmatpush.msra.mxu0 0.0
        %829 = vmatpush.msra.mxu0 0.0
        %830 = vmatpush.msra.mxu0 0.0
        %831 = vmatpush.msra.mxu0 0.0
        %832 = vmatpush.msra.mxu0 0.0
        %833 = vmatpush.msra.mxu0 0.0
        %834 = vmatpush.msra.mxu0 0.0
        %835 = vmatpush.msra.mxu0 0.0
        %836 = vmatpush.msra.mxu0 %v805
        %837 = vmatpush.msra.mxu0 %v804
        %838 = vmatpush.msra.mxu0 %v803
        %839 = vmatpush.msra.mxu0 %v802
        %840 = vmatmul.f32.gmra.mxu0 %v820
        %v841 = vpop.f32.mrf.mxu0
        %v842 = vadd.f32 0.0, %v841
        %843 = vmatmul.f32.gmra.mxu0 %v822
        %v844 = vpop.f32.mrf.mxu0
        %v845 = vadd.f32 0.0, %v844
        %846 = vdwg.mxu0
        %v847 = vperm.slane %v800, 0
        %v848 = vmul.f32 %v842, %v847
        %v849 = vmul.f32 %v845, %v847
        %v850 = vperm.slane %v801, 0
        %v851 = vadd.f32 %v848, %v850
        %v852 = vadd.f32 %v849, %v850
        %v853 = vmax.f32 %v851, 0.0
        %v854 = vmax.f32 %v852, 0.0
        %v857 = vrot.slane %v853, 4
        %v858 = vrot.slane %v854, 4
        %v861 = vperm.slane %v853, 0
        %v862 = vperm.slane %v857, 0
        %v863 = vperm.slane %v854, 0
        %v864 = vperm.slane %v858, 0
        %v869 = vperm.slane %v853, 1
        %v870 = vperm.slane %v857, 1
        %v871 = vperm.slane %v854, 1
        %v872 = vperm.slane %v858, 1
        %v877 = vperm.slane %v853, 2
        %v878 = vperm.slane %v857, 2
        %v879 = vperm.slane %v854, 2
        %v880 = vperm.slane %v858, 2
        %v885 = vperm.slane %v853, 3
        %v886 = vperm.slane %v857, 3
        %v887 = vperm.slane %v854, 3
        %v888 = vperm.slane %v858, 3
        %vm893 = vcmask 1040384
        %v894 = vsel %vm893, %v853, %v861
        %v895 = vsel %vm893, %v857, %v862
        %v896 = vsel %vm893, %v854, %v863
        %v897 = vsel %vm893, %v858, %v864
        %vm898 = vcmask 1041408
        %v899 = vsel %vm898, %v894, %v869
        %v900 = vsel %vm898, %v895, %v870
        %v901 = vsel %vm898, %v896, %v871
        %v902 = vsel %vm898, %v897, %v872
        %vm903 = vcmask 1042432
        %v904 = vsel %vm903, %v899, %v869
        %v905 = vsel %vm903, %v900, %v870
        %v906 = vsel %vm903, %v901, %v871
        %v907 = vsel %vm903, %v902, %v872
        %vm908 = vcmask 1043456
        %v909 = vsel %vm908, %v904, %v877
        %v910 = vsel %vm908, %v905, %v878
        %v911 = vsel %vm908, %v906, %v879
        %v912 = vsel %vm908, %v907, %v880
        %vm913 = vcmask 1044480
        %v914 = vsel %vm913, %v909, %v877
        %v915 = vsel %vm913, %v910, %v878
        %v916 = vsel %vm913, %v911, %v879
        %v917 = vsel %vm913, %v912, %v880
        %vm918 = vcmask 1045504
        %v919 = vsel %vm918, %v914, %v885
        %v920 = vsel %vm918, %v915, %v886
        %v921 = vsel %vm918, %v916, %v887
        %v922 = vsel %vm918, %v917, %v888
        %vm923 = vcmask 1046528
        %v924 = vsel %vm923, %v919, %v885
        %v925 = vsel %vm923, %v920, %v886
        %v926 = vsel %vm923, %v921, %v887
        %v927 = vsel %vm923, %v922, %v888
        %v928 = vld [vmem:[#allocation10] sm:$0xff]
        %v929 = vld [vmem:[#allocation10 + $0x8] sm:$0xff]
        %v930 = vld [vmem:[#allocation10 + $0x10] sm:$0xff]
        %v931 = vld [vmem:[#allocation10 + $0x18] sm:$0xff]
        %v932 = vld [vmem:[#allocation10 + $0x20] sm:$0xff]
        %v933 = vld [vmem:[#allocation10 + $0x28] sm:$0xff]
        %v934 = vld [vmem:[#allocation10 + $0x30] sm:$0xff]
        %v935 = vld [vmem:[#allocation10 + $0x38] sm:$0xff]
        %v936 = vld [vmem:[#allocation10 + $0x40] sm:$0xff]
        %v937 = vld [vmem:[#allocation10 + $0x48] sm:$0xff]
        %v938 = vld [vmem:[#allocation10 + $0x50] sm:$0xff]
        %v939 = vld [vmem:[#allocation10 + $0x58] sm:$0xff]
        %v940 = vld [vmem:[#allocation10 + $0x60] sm:$0xff]
        %v941 = vld [vmem:[#allocation10 + $0x68] sm:$0xff]
        %v942 = vld [vmem:[#allocation10 + $0x70] sm:$0xff]
        %v943 = vld [vmem:[#allocation10 + $0x78] sm:$0xff]
        %v944 = vld [vmem:[#allocation10 + $0x80] sm:$0xff]
        %v945 = vld [vmem:[#allocation10 + $0x88] sm:$0xff]
        %v946 = vld [vmem:[#allocation10 + $0x90] sm:$0xff]
        %v947 = vld [vmem:[#allocation10 + $0x98] sm:$0xff]
        %v948 = vld [vmem:[#allocation10 + $0xa0] sm:$0xff]
        %v949 = vld [vmem:[#allocation10 + $0xa8] sm:$0xff]
        %v950 = vld [vmem:[#allocation10 + $0xb0] sm:$0xff]
        %v951 = vld [vmem:[#allocation10 + $0xb8] sm:$0xff]
        %v952 = vld [vmem:[#allocation10 + $0xc0] sm:$0xff]
        %v953 = vld [vmem:[#allocation10 + $0xc8] sm:$0xff]
        %v954 = vld [vmem:[#allocation10 + $0xd0] sm:$0xff]
        %v955 = vld [vmem:[#allocation10 + $0xd8] sm:$0xff]
        %v956 = vld [vmem:[#allocation10 + $0xe0] sm:$0xff]
        %v957 = vld [vmem:[#allocation10 + $0xe8] sm:$0xff]
        %v958 = vld [vmem:[#allocation10 + $0xf0] sm:$0xff]
        %v959 = vld [vmem:[#allocation10 + $0xf8] sm:$0xff]
        %v960 = vld [vmem:[#allocation10 + $0x100] sm:$0xff]
        %v961 = vld [vmem:[#allocation10 + $0x108] sm:$0xff]
        %v962 = vld [vmem:[#allocation10 + $0x110] sm:$0xff]
        %v963 = vld [vmem:[#allocation10 + $0x118] sm:$0xff]
        %v965 = vrot.slane 0.0, 7
        %v966 = vrot.slane %v853, 7
        %v967 = vrot.slane %v857, 7
        %v968 = vrot.slane %v854, 7
        %v969 = vrot.slane %v858, 7
        %v975 = vsel %vm893, 0.0, %v965
        %v976 = vsel %vm893, 0.0, %v966
        %v977 = vsel %vm893, 0.0, %v967
        %v978 = vsel %vm893, 0.0, %v968
        %v979 = vsel %vm893, 0.0, %v969
        %v980 = vsel %vm913, %v975, 0.0
        %v981 = vsel %vm913, %v976, 0.0
        %v982 = vsel %vm913, %v977, 0.0
        %v983 = vsel %vm913, %v978, 0.0
        %v984 = vsel %vm913, %v979, 0.0
        %v989 = vrot.slane %v980, 1
        %v990 = vrot.slane %v981, 1
        %v991 = vrot.slane %v982, 1
        %v992 = vrot.slane %v983, 1
        %993 = vrot.lane.b32.xlu0 %v989, 32
        %v994 = vpop.permute.xlu0 %993
        %995 = vrot.lane.b32.xlu0 %v990, 32
        %v996 = vpop.permute.xlu0 %995
        %997 = vrot.lane.b32.xlu0 %v991, 32
        %v998 = vpop.permute.xlu0 %997
        %999 = vrot.lane.b32.xlu0 %v992, 32
        %v1000 = vpop.permute.xlu0 %999
        %v1005 = vrot.slane %v980, 2
        %v1006 = vrot.slane %v981, 2
        %v1007 = vrot.slane %v982, 2
        %v1008 = vrot.slane %v983, 2
        %1009 = vrot.lane.b32.xlu0 %v1005, 64
        %v1010 = vpop.permute.xlu0 %1009
        %1011 = vrot.lane.b32.xlu0 %v1006, 64
        %v1012 = vpop.permute.xlu0 %1011
        %1013 = vrot.lane.b32.xlu0 %v1007, 64
        %v1014 = vpop.permute.xlu0 %1013
        %1015 = vrot.lane.b32.xlu0 %v1008, 64
        %v1016 = vpop.permute.xlu0 %1015
        %1022 = vrot.lane.b32.xlu0 %v981, 96
        %v1023 = vpop.permute.xlu0 %1022
        %1024 = vrot.lane.b32.xlu0 %v982, 96
        %v1025 = vpop.permute.xlu0 %1024
        %1026 = vrot.lane.b32.xlu0 %v983, 96
        %v1027 = vpop.permute.xlu0 %1026
        %1028 = vrot.lane.b32.xlu0 %v984, 96
        %v1029 = vpop.permute.xlu0 %1028
        %v1034 = vrot.slane %v984, 1
        %v1039 = vrot.slane %v984, 2
        %1040 = vrot.lane.b32.xlu0 %v1006, 32
        %v1041 = vpop.permute.xlu0 %1040
        %1042 = vrot.lane.b32.xlu0 %v1007, 32
        %v1043 = vpop.permute.xlu0 %1042
        %1044 = vrot.lane.b32.xlu0 %v1008, 32
        %v1045 = vpop.permute.xlu0 %1044
        %1046 = vrot.lane.b32.xlu0 %v1039, 32
        %v1047 = vpop.permute.xlu0 %1046
        %1052 = vrot.lane.b32.xlu0 %v982, 64
        %v1053 = vpop.permute.xlu0 %1052
        %1054 = vrot.lane.b32.xlu0 %v983, 64
        %v1055 = vpop.permute.xlu0 %1054
        %1056 = vrot.lane.b32.xlu0 %v984, 64
        %v1057 = vpop.permute.xlu0 %1056
        %1058 = vrot.lane.b32.xlu0 %v980, 64
        %v1059 = vpop.permute.xlu0 %1058
        %1064 = vrot.lane.b32.xlu0 %v991, 96
        %v1065 = vpop.permute.xlu0 %1064
        %1066 = vrot.lane.b32.xlu0 %v992, 96
        %v1067 = vpop.permute.xlu0 %1066
        %1068 = vrot.lane.b32.xlu0 %v1034, 96
        %v1069 = vpop.permute.xlu0 %1068
        %1070 = vrot.lane.b32.xlu0 %v989, 96
        %v1071 = vpop.permute.xlu0 %1070
        %v1076 = vsel %vm819, %v980, %v994
        %v1077 = vsel %vm819, %v981, %v996
        %v1078 = vsel %vm819, %v982, %v998
        %v1079 = vsel %vm819, %v983, %v1000
        %vm1080 = vcmask 523264
        %v1081 = vsel %vm1080, %v1076, %v1010
        %v1082 = vsel %vm1080, %v1077, %v1012
        %v1083 = vsel %vm1080, %v1078, %v1014
        %v1084 = vsel %vm1080, %v1079, %v1016
        %vm1085 = vcmask 785408
        %v1086 = vsel %vm1085, %v1081, %v1023
        %v1087 = vsel %vm1085, %v1082, %v1025
        %v1088 = vsel %vm1085, %v1083, %v1027
        %v1089 = vsel %vm1085, %v1084, %v1029
        %v1090 = vsel %vm819, %v990, %v1041
        %v1091 = vsel %vm819, %v991, %v1043
        %v1092 = vsel %vm819, %v992, %v1045
        %v1093 = vsel %vm819, %v1034, %v1047
        %v1094 = vsel %vm1080, %v1090, %v1053
        %v1095 = vsel %vm1080, %v1091, %v1055
        %v1096 = vsel %vm1080, %v1092, %v1057
        %v1097 = vsel %vm1080, %v1093, %v1059
        %v1098 = vsel %vm1085, %v1094, %v1065
        %v1099 = vsel %vm1085, %v1095, %v1067
        %v1100 = vsel %vm1085, %v1096, %v1069
        %v1101 = vsel %vm1085, %v1097, %v1071
        %v1110 = vrot.slane %v1098, 4
        %v1111 = vrot.slane %v1099, 4
        %v1112 = vrot.slane %v1100, 4
        %v1113 = vrot.slane %v1101, 4
        %v1114 = vsel %vm908, %v1086, %v1110
        %v1115 = vsel %vm908, %v1087, %v1111
        %v1116 = vsel %vm908, %v1088, %v1112
        %v1117 = vsel %vm908, %v1089, %v1113
        %1118 = vst [vmem:[#allocation1] ss:$2 sm:$0xff] %v1114
        %s1119 = scalar_lea.vmem [#allocation1], 1
        %1120 = vst [vmem:[%s1119] ss:$2 sm:$0xff] %v1115
        %s1121 = scalar_lea.vmem [#allocation1], 16
        %1122 = vst [vmem:[%s1121] ss:$2 sm:$0xff] %v1007
        %s1123 = scalar_lea.vmem [#allocation1], 17
        %1124 = vst [vmem:[%s1123] ss:$2 sm:$0xff] %v1008
        %s1125 = scalar_lea.vmem [#allocation1], 32
        %1126 = vst [vmem:[%s1125] ss:$2 sm:$0xff] %v1116
        %s1127 = scalar_lea.vmem [#allocation1], 33
        %1128 = vst [vmem:[%s1127] ss:$2 sm:$0xff] %v1117
        %s1129 = scalar_lea.vmem [#allocation1], 48
        %1130 = vst [vmem:[%s1129] ss:$2 sm:$0xff] %v1039
        %s1131 = scalar_lea.vmem [#allocation1], 49
        %1132 = vst [vmem:[%s1131] ss:$2 sm:$0xff] %v1005
        %v1133 = vld.sshfl [vmem:[#allocation1] sm:$0xff pattern:$0x75316420]
        %v1134 = vld.sshfl [vmem:[#allocation1 + $0x8] sm:$0xff pattern:$0x75316420]
        %v1135 = vld.sshfl [vmem:[#allocation1 + $0x10] sm:$0xff pattern:$0x75316420]
        %v1136 = vld.sshfl [vmem:[#allocation1 + $0x20] sm:$0xff pattern:$0x75316420]
        %v1137 = vld.sshfl [vmem:[#allocation1 + $0x28] sm:$0xff pattern:$0x75316420]
        %v1138 = vld.sshfl [vmem:[#allocation1 + $0x30] sm:$0xff pattern:$0x75316420]
        %v1143 = vsel %vm819, %v1135, 0
        %v1145 = vsel %vm819, %v1138, 0
        %1147 = vmatpush.msra.mxu0 %v943
        %1148 = vmatpush.msra.mxu0 %v942
        %1149 = vmatpush.msra.mxu0 %v941
        %1150 = vmatpush.msra.mxu0 %v940
        %1151 = vmatpush.msra.mxu0 %v939
        %1152 = vmatpush.msra.mxu0 %v938
        %1153 = vmatpush.msra.mxu0 %v937
        %1154 = vmatpush.msra.mxu0 %v936
        %1155 = vmatpush.msra.mxu0 %v935
        %1156 = vmatpush.msra.mxu0 %v934
        %1157 = vmatpush.msra.mxu0 %v933
        %1158 = vmatpush.msra.mxu0 %v932
        %1159 = vmatpush.msra.mxu0 %v931
        %1160 = vmatpush.msra.mxu0 %v930
        %1161 = vmatpush.msra.mxu0 %v929
        %1162 = vmatpush.msra.mxu0 %v928
        %1163 = vmatmul.f32.gmra.mxu0 %v1133
        %v1164 = vpop.f32.mrf.mxu0
        %v1165 = vadd.f32 0.0, %v1164
        %1166 = vmatmul.f32.gmra.mxu0 %v1136
        %v1167 = vpop.f32.mrf.mxu0
        %v1168 = vadd.f32 0.0, %v1167
        %1169 = vdwg.mxu0
        %1170 = vmatpush.msra.mxu0 %v959
        %1171 = vmatpush.msra.mxu0 %v958
        %1172 = vmatpush.msra.mxu0 %v957
        %1173 = vmatpush.msra.mxu0 %v956
        %1174 = vmatpush.msra.mxu0 %v955
        %1175 = vmatpush.msra.mxu0 %v954
        %1176 = vmatpush.msra.mxu0 %v953
        %1177 = vmatpush.msra.mxu0 %v952
        %1178 = vmatpush.msra.mxu0 %v951
        %1179 = vmatpush.msra.mxu0 %v950
        %1180 = vmatpush.msra.mxu0 %v949
        %1181 = vmatpush.msra.mxu0 %v948
        %1182 = vmatpush.msra.mxu0 %v947
        %1183 = vmatpush.msra.mxu0 %v946
        %1184 = vmatpush.msra.mxu0 %v945
        %1185 = vmatpush.msra.mxu0 %v944
        %1186 = vmatmul.f32.gmra.mxu0 %v1134
        %v1187 = vpop.f32.mrf.mxu0
        %v1188 = vadd.f32 %v1165, %v1187
        %1189 = vmatmul.f32.gmra.mxu0 %v1137
        %v1190 = vpop.f32.mrf.mxu0
        %v1191 = vadd.f32 %v1168, %v1190
        %1192 = vdwg.mxu0
        %1193 = vmatpush.msra.mxu0 0.0
        %1194 = vmatpush.msra.mxu0 0.0
        %1195 = vmatpush.msra.mxu0 0.0
        %1196 = vmatpush.msra.mxu0 0.0
        %1197 = vmatpush.msra.mxu0 0.0
        %1198 = vmatpush.msra.mxu0 0.0
        %1199 = vmatpush.msra.mxu0 0.0
        %1200 = vmatpush.msra.mxu0 0.0
        %1201 = vmatpush.msra.mxu0 0.0
        %1202 = vmatpush.msra.mxu0 0.0
        %1203 = vmatpush.msra.mxu0 0.0
        %1204 = vmatpush.msra.mxu0 0.0
        %1205 = vmatpush.msra.mxu0 %v963
        %1206 = vmatpush.msra.mxu0 %v962
        %1207 = vmatpush.msra.mxu0 %v961
        %1208 = vmatpush.msra.mxu0 %v960
        %1209 = vmatmul.f32.gmra.mxu0 %v1143
        %v1210 = vpop.f32.mrf.mxu0
        %v1211 = vadd.f32 %v1188, %v1210
        %1212 = vmatmul.f32.gmra.mxu0 %v1145
        %v1213 = vpop.f32.mrf.mxu0
        %v1214 = vadd.f32 %v1191, %v1213
        %1215 = vdwg.mxu0
        %v1216 = vperm.slane %v800, 1
        %v1217 = vmul.f32 %v1211, %v1216
        %v1218 = vmul.f32 %v1214, %v1216
        %v1219 = vperm.slane %v801, 1
        %v1220 = vadd.f32 %v1217, %v1219
        %v1221 = vadd.f32 %v1218, %v1219
        %v1222 = vmax.f32 %v1220, 0.0
        %v1223 = vmax.f32 %v1221, 0.0
        %v1224 = vld [vmem:[#allocation11] sm:$0xff]
        %v1225 = vld [vmem:[#allocation11 + $0x8] sm:$0xff]
        %v1226 = vld [vmem:[#allocation11 + $0x10] sm:$0xff]
        %vm1227 = vcmask 195584
        %v1229 = vsel %vm1227, %v788, 0
        %v1232 = vsel %vm1227, %v789, 0
        %v1235 = vsel %vm1227, %v790, 0
        %v1238 = vsel %vm1227, %v791, 0
        %v1241 = vsel %vm1227, %v792, 0
        %v1244 = vsel %vm1227, %v793, 0
        %v1247 = vsel %vm1227, %v794, 0
        %v1250 = vsel %vm1227, %v795, 0
        %1252 = vmatpush.msra.mxu0 0.0
        %1253 = vmatpush.msra.mxu0 0.0
        %1254 = vmatpush.msra.mxu0 0.0
        %1255 = vmatpush.msra.mxu0 0.0
        %1256 = vmatpush.msra.mxu0 0.0
        %1257 = vmatpush.msra.mxu0 0.0
        %1258 = vmatpush.msra.mxu0 0.0
        %1259 = vmatpush.msra.mxu0 0.0
        %1260 = vmatpush.msra.mxu0 0.0
        %1261 = vmatpush.msra.mxu0 0.0
        %1262 = vmatpush.msra.mxu0 0.0
        %1263 = vmatpush.msra.mxu0 0.0
        %1264 = vmatpush.msra.mxu0 0.0
        %1265 = vmatpush.msra.mxu0 %v1226
        %1266 = vmatpush.msra.mxu0 %v1225
        %1267 = vmatpush.msra.mxu0 %v1224
        %1268 = vmatmul.f32.gmra.mxu0 %v1229
        %v1269 = vpop.f32.mrf.mxu0
        %v1270 = vadd.f32 0.0, %v1269
        %1271 = vmatmul.f32.gmra.mxu0 %v1232
        %v1272 = vpop.f32.mrf.mxu0
        %v1273 = vadd.f32 0.0, %v1272
        %1274 = vmatmul.f32.gmra.mxu0 %v1235
        %v1275 = vpop.f32.mrf.mxu0
        %v1276 = vadd.f32 0.0, %v1275
        %1277 = vmatmul.f32.gmra.mxu0 %v1238
        %v1278 = vpop.f32.mrf.mxu0
        %v1279 = vadd.f32 0.0, %v1278
        %1280 = vmatmul.f32.gmra.mxu0 %v1241
        %v1281 = vpop.f32.mrf.mxu0
        %v1282 = vadd.f32 0.0, %v1281
        %1283 = vmatmul.f32.gmra.mxu0 %v1244
        %v1284 = vpop.f32.mrf.mxu0
        %v1285 = vadd.f32 0.0, %v1284
        %1286 = vmatmul.f32.gmra.mxu0 %v1247
        %v1287 = vpop.f32.mrf.mxu0
        %v1288 = vadd.f32 0.0, %v1287
        %1289 = vmatmul.f32.gmra.mxu0 %v1250
        %v1290 = vpop.f32.mrf.mxu0
        %v1291 = vadd.f32 0.0, %v1290
        %1292 = vdwg.mxu0
        %v1293 = vperm.slane %v800, 2
        %v1294 = vmul.f32 %v1270, %v1293
        %v1295 = vmul.f32 %v1273, %v1293
        %v1296 = vmul.f32 %v1276, %v1293
        %v1297 = vmul.f32 %v1279, %v1293
        %v1298 = vmul.f32 %v1282, %v1293
        %v1299 = vmul.f32 %v1285, %v1293
        %v1300 = vmul.f32 %v1288, %v1293
        %v1301 = vmul.f32 %v1291, %v1293
        %v1302 = vperm.slane %v801, 2
        %v1303 = vadd.f32 %v1294, %v1302
        %v1304 = vadd.f32 %v1295, %v1302
        %v1305 = vadd.f32 %v1296, %v1302
        %v1306 = vadd.f32 %v1297, %v1302
        %v1307 = vadd.f32 %v1298, %v1302
        %v1308 = vadd.f32 %v1299, %v1302
        %v1309 = vadd.f32 %v1300, %v1302
        %v1310 = vadd.f32 %v1301, %v1302
        %v1311 = vmax.f32 %v1303, 0.0
        %v1312 = vmax.f32 %v1304, 0.0
        %v1313 = vmax.f32 %v1305, 0.0
        %v1314 = vmax.f32 %v1306, 0.0
        %v1315 = vmax.f32 %v1307, 0.0
        %v1316 = vmax.f32 %v1308, 0.0
        %v1317 = vmax.f32 %v1309, 0.0
        %v1318 = vmax.f32 %v1310, 0.0
        %v1319 = vadd.f32 %v1311, %v924
        %v1320 = vadd.f32 %v1312, %v924
        %v1321 = vadd.f32 %v1313, %v925
        %v1322 = vadd.f32 %v1314, %v925
        %v1323 = vadd.f32 %v1315, %v926
        %v1324 = vadd.f32 %v1316, %v926
        %v1325 = vadd.f32 %v1317, %v927
        %v1326 = vadd.f32 %v1318, %v927
        %v1335 = vrot.slane %v1319, 7
        %v1336 = vrot.slane %v1320, 7
        %v1337 = vrot.slane %v1321, 7
        %v1338 = vrot.slane %v1322, 7
        %v1339 = vrot.slane %v1323, 7
        %v1340 = vrot.slane %v1324, 7
        %v1341 = vrot.slane %v1325, 7
        %v1342 = vrot.slane %v1326, 7
        %v1351 = vrot.slane %v1319, 6
        %v1352 = vrot.slane %v1320, 6
        %v1353 = vrot.slane %v1321, 6
        %v1354 = vrot.slane %v1322, 6
        %v1355 = vrot.slane %v1323, 6
        %v1356 = vrot.slane %v1324, 6
        %v1357 = vrot.slane %v1325, 6
        %v1358 = vrot.slane %v1326, 6
        %v1367 = vrot.slane %v1319, 5
        %v1368 = vrot.slane %v1320, 5
        %v1369 = vrot.slane %v1321, 5
        %v1370 = vrot.slane %v1322, 5
        %v1371 = vrot.slane %v1323, 5
        %v1372 = vrot.slane %v1324, 5
        %v1373 = vrot.slane %v1325, 5
        %v1374 = vrot.slane %v1326, 5
        %v1383 = vrot.slane %v1319, 4
        %v1384 = vrot.slane %v1320, 4
        %v1385 = vrot.slane %v1321, 4
        %v1386 = vrot.slane %v1322, 4
        %v1387 = vrot.slane %v1323, 4
        %v1388 = vrot.slane %v1324, 4
        %v1389 = vrot.slane %v1325, 4
        %v1390 = vrot.slane %v1326, 4
        %v1399 = vrot.slane %v1319, 3
        %v1400 = vrot.slane %v1320, 3
        %v1401 = vrot.slane %v1321, 3
        %v1402 = vrot.slane %v1322, 3
        %v1403 = vrot.slane %v1323, 3
        %v1404 = vrot.slane %v1324, 3
        %v1405 = vrot.slane %v1325, 3
        %v1406 = vrot.slane %v1326, 3
        %v1415 = vrot.slane %v1319, 2
        %v1416 = vrot.slane %v1320, 2
        %v1417 = vrot.slane %v1321, 2
        %v1418 = vrot.slane %v1322, 2
        %v1419 = vrot.slane %v1323, 2
        %v1420 = vrot.slane %v1324, 2
        %v1421 = vrot.slane %v1325, 2
        %v1422 = vrot.slane %v1326, 2
        %v1431 = vrot.slane %v1319, 1
        %v1432 = vrot.slane %v1320, 1
        %v1433 = vrot.slane %v1321, 1
        %v1434 = vrot.slane %v1322, 1
        %v1435 = vrot.slane %v1323, 1
        %v1436 = vrot.slane %v1324, 1
        %v1437 = vrot.slane %v1325, 1
        %v1438 = vrot.slane %v1326, 1
        %v1447 = vsel %vm893, %v1319, %v1335
        %v1448 = vsel %vm893, %v1320, %v1336
        %v1449 = vsel %vm893, %v1321, %v1337
        %v1450 = vsel %vm893, %v1322, %v1338
        %v1451 = vsel %vm893, %v1323, %v1339
        %v1452 = vsel %vm893, %v1324, %v1340
        %v1453 = vsel %vm893, %v1325, %v1341
        %v1454 = vsel %vm893, %v1326, %v1342
        %v1455 = vsel %vm898, %v1447, %v1335
        %v1456 = vsel %vm898, %v1448, %v1336
        %v1457 = vsel %vm898, %v1449, %v1337
        %v1458 = vsel %vm898, %v1450, %v1338
        %v1459 = vsel %vm898, %v1451, %v1339
        %v1460 = vsel %vm898, %v1452, %v1340
        %v1461 = vsel %vm898, %v1453, %v1341
        %v1462 = vsel %vm898, %v1454, %v1342
        %v1463 = vsel %vm903, %v1455, %v1351
        %v1464 = vsel %vm903, %v1456, %v1352
        %v1465 = vsel %vm903, %v1457, %v1353
        %v1466 = vsel %vm903, %v1458, %v1354
        %v1467 = vsel %vm903, %v1459, %v1355
        %v1468 = vsel %vm903, %v1460, %v1356
        %v1469 = vsel %vm903, %v1461, %v1357
        %v1470 = vsel %vm903, %v1462, %v1358
        %v1471 = vsel %vm908, %v1463, %v1351
        %v1472 = vsel %vm908, %v1464, %v1352
        %v1473 = vsel %vm908, %v1465, %v1353
        %v1474 = vsel %vm908, %v1466, %v1354
        %v1475 = vsel %vm908, %v1467, %v1355
        %v1476 = vsel %vm908, %v1468, %v1356
        %v1477 = vsel %vm908, %v1469, %v1357
        %v1478 = vsel %vm908, %v1470, %v1358
        %v1479 = vsel %vm913, %v1471, %v1367
        %v1480 = vsel %vm913, %v1472, %v1368
        %v1481 = vsel %vm913, %v1473, %v1369
        %v1482 = vsel %vm913, %v1474, %v1370
        %v1483 = vsel %vm913, %v1475, %v1371
        %v1484 = vsel %vm913, %v1476, %v1372
        %v1485 = vsel %vm913, %v1477, %v1373
        %v1486 = vsel %vm913, %v1478, %v1374
        %v1487 = vsel %vm918, %v1479, %v1367
        %v1488 = vsel %vm918, %v1480, %v1368
        %v1489 = vsel %vm918, %v1481, %v1369
        %v1490 = vsel %vm918, %v1482, %v1370
        %v1491 = vsel %vm918, %v1483, %v1371
        %v1492 = vsel %vm918, %v1484, %v1372
        %v1493 = vsel %vm918, %v1485, %v1373
        %v1494 = vsel %vm918, %v1486, %v1374
        %v1495 = vsel %vm923, %v1487, %v1383
        %v1496 = vsel %vm923, %v1488, %v1384
        %v1497 = vsel %vm923, %v1489, %v1385
        %v1498 = vsel %vm923, %v1490, %v1386
        %v1499 = vsel %vm923, %v1491, %v1387
        %v1500 = vsel %vm923, %v1492, %v1388
        %v1501 = vsel %vm923, %v1493, %v1389
        %v1502 = vsel %vm923, %v1494, %v1390
        %v1503 = vsel %vm893, %v1383, %v1399
        %v1504 = vsel %vm893, %v1384, %v1400
        %v1505 = vsel %vm893, %v1385, %v1401
        %v1506 = vsel %vm893, %v1386, %v1402
        %v1507 = vsel %vm893, %v1387, %v1403
        %v1508 = vsel %vm893, %v1388, %v1404
        %v1509 = vsel %vm893, %v1389, %v1405
        %v1510 = vsel %vm893, %v1390, %v1406
        %v1511 = vsel %vm898, %v1503, %v1399
        %v1512 = vsel %vm898, %v1504, %v1400
        %v1513 = vsel %vm898, %v1505, %v1401
        %v1514 = vsel %vm898, %v1506, %v1402
        %v1515 = vsel %vm898, %v1507, %v1403
        %v1516 = vsel %vm898, %v1508, %v1404
        %v1517 = vsel %vm898, %v1509, %v1405
        %v1518 = vsel %vm898, %v1510, %v1406
        %v1519 = vsel %vm903, %v1511, %v1415
        %v1520 = vsel %vm903, %v1512, %v1416
        %v1521 = vsel %vm903, %v1513, %v1417
        %v1522 = vsel %vm903, %v1514, %v1418
        %v1523 = vsel %vm903, %v1515, %v1419
        %v1524 = vsel %vm903, %v1516, %v1420
        %v1525 = vsel %vm903, %v1517, %v1421
        %v1526 = vsel %vm903, %v1518, %v1422
        %v1527 = vsel %vm908, %v1519, %v1415
        %v1528 = vsel %vm908, %v1520, %v1416
        %v1529 = vsel %vm908, %v1521, %v1417
        %v1530 = vsel %vm908, %v1522, %v1418
        %v1531 = vsel %vm908, %v1523, %v1419
        %v1532 = vsel %vm908, %v1524, %v1420
        %v1533 = vsel %vm908, %v1525, %v1421
        %v1534 = vsel %vm908, %v1526, %v1422
        %v1535 = vsel %vm913, %v1527, %v1431
        %v1536 = vsel %vm913, %v1528, %v1432
        %v1537 = vsel %vm913, %v1529, %v1433
        %v1538 = vsel %vm913, %v1530, %v1434
        %v1539 = vsel %vm913, %v1531, %v1435
        %v1540 = vsel %vm913, %v1532, %v1436
        %v1541 = vsel %vm913, %v1533, %v1437
        %v1542 = vsel %vm913, %v1534, %v1438
        %v1543 = vsel %vm918, %v1535, %v1431
        %v1544 = vsel %vm918, %v1536, %v1432
        %v1545 = vsel %vm918, %v1537, %v1433
        %v1546 = vsel %vm918, %v1538, %v1434
        %v1547 = vsel %vm918, %v1539, %v1435
        %v1548 = vsel %vm918, %v1540, %v1436
        %v1549 = vsel %vm918, %v1541, %v1437
        %v1550 = vsel %vm918, %v1542, %v1438
        %v1551 = vsel %vm923, %v1543, %v1319
        %v1552 = vsel %vm923, %v1544, %v1320
        %v1553 = vsel %vm923, %v1545, %v1321
        %v1554 = vsel %vm923, %v1546, %v1322
        %v1555 = vsel %vm923, %v1547, %v1323
        %v1556 = vsel %vm923, %v1548, %v1324
        %v1557 = vsel %vm923, %v1549, %v1325
        %v1558 = vsel %vm923, %v1550, %v1326
        %v1559 = vld [vmem:[#allocation13] sm:$0xff]
        %v1560 = vld [vmem:[#allocation13 + $0x8] sm:$0xff]
        %v1561 = vld [vmem:[#allocation13 + $0x10] sm:$0xff]
        %v1562 = vld [vmem:[#allocation13 + $0x18] sm:$0xff]
        %v1563 = vld [vmem:[#allocation13 + $0x20] sm:$0xff]
        %v1564 = vld [vmem:[#allocation13 + $0x28] sm:$0xff]
        %v1565 = vld [vmem:[#allocation13 + $0x30] sm:$0xff]
        %v1566 = vld [vmem:[#allocation13 + $0x38] sm:$0xff]
        %v1567 = vld [vmem:[#allocation13 + $0x40] sm:$0xff]
        %v1568 = vld [vmem:[#allocation13 + $0x48] sm:$0xff]
        %v1569 = vld [vmem:[#allocation13 + $0x50] sm:$0xff]
        %v1570 = vld [vmem:[#allocation13 + $0x58] sm:$0xff]
        %v1571 = vld [vmem:[#allocation13 + $0x60] sm:$0xff]
        %v1572 = vld [vmem:[#allocation13 + $0x68] sm:$0xff]
        %v1573 = vld [vmem:[#allocation13 + $0x70] sm:$0xff]
        %v1574 = vld [vmem:[#allocation13 + $0x78] sm:$0xff]
        %v1575 = vld [vmem:[#allocation13 + $0x80] sm:$0xff]
        %v1576 = vld [vmem:[#allocation13 + $0x88] sm:$0xff]
        %v1577 = vld [vmem:[#allocation13 + $0x90] sm:$0xff]
        %v1578 = vld [vmem:[#allocation13 + $0x98] sm:$0xff]
        %v1579 = vld [vmem:[#allocation13 + $0xa0] sm:$0xff]
        %v1580 = vld [vmem:[#allocation13 + $0xa8] sm:$0xff]
        %v1581 = vld [vmem:[#allocation13 + $0xb0] sm:$0xff]
        %v1582 = vld [vmem:[#allocation13 + $0xb8] sm:$0xff]
        %v1583 = vld [vmem:[#allocation13 + $0xc0] sm:$0xff]
        %v1584 = vld [vmem:[#allocation13 + $0xc8] sm:$0xff]
        %v1585 = vld [vmem:[#allocation13 + $0xd0] sm:$0xff]
        %v1586 = vld [vmem:[#allocation13 + $0xd8] sm:$0xff]
        %v1587 = vld [vmem:[#allocation13 + $0xe0] sm:$0xff]
        %v1588 = vld [vmem:[#allocation13 + $0xe8] sm:$0xff]
        %v1589 = vld [vmem:[#allocation13 + $0xf0] sm:$0xff]
        %v1590 = vld [vmem:[#allocation13 + $0xf8] sm:$0xff]
        %v1591 = vld [vmem:[#allocation13 + $0x100] sm:$0xff]
        %v1592 = vld [vmem:[#allocation13 + $0x108] sm:$0xff]
        %v1593 = vld [vmem:[#allocation13 + $0x110] sm:$0xff]
        %v1594 = vld [vmem:[#allocation13 + $0x118] sm:$0xff]
        %v1595 = vsel %vm893, 0.0, %v1335
        %v1596 = vsel %vm893, 0.0, %v1336
        %v1597 = vsel %vm893, 0.0, %v1337
        %v1598 = vsel %vm893, 0.0, %v1338
        %v1599 = vsel %vm893, 0.0, %v1339
        %v1600 = vsel %vm893, 0.0, %v1340
        %v1601 = vsel %vm893, 0.0, %v1341
        %v1602 = vsel %vm893, 0.0, %v1342
        %v1603 = vsel %vm893, %v965, 0.0
        %v1604 = vsel %vm893, %v1335, 0.0
        %v1605 = vsel %vm893, %v1336, 0.0
        %v1606 = vsel %vm893, %v1337, 0.0
        %v1607 = vsel %vm893, %v1338, 0.0
        %v1608 = vsel %vm893, %v1339, 0.0
        %v1609 = vsel %vm893, %v1340, 0.0
        %v1610 = vsel %vm893, %v1341, 0.0
        %v1611 = vsel %vm893, %v1342, 0.0
        %v1628 = vrot.slane %v975, 1
        %v1629 = vrot.slane %v1603, 1
        %v1630 = vsel %vm923, %v1628, %v1629
        %v1631 = vrot.slane %v1595, 1
        %v1632 = vrot.slane %v1604, 1
        %v1633 = vsel %vm923, %v1631, %v1632
        %v1634 = vrot.slane %v1596, 1
        %v1635 = vrot.slane %v1605, 1
        %v1636 = vsel %vm923, %v1634, %v1635
        %v1637 = vrot.slane %v1597, 1
        %v1638 = vrot.slane %v1606, 1
        %v1639 = vsel %vm923, %v1637, %v1638
        %v1640 = vrot.slane %v1598, 1
        %v1641 = vrot.slane %v1607, 1
        %v1642 = vsel %vm923, %v1640, %v1641
        %v1643 = vrot.slane %v1599, 1
        %v1644 = vrot.slane %v1608, 1
        %v1645 = vsel %vm923, %v1643, %v1644
        %v1646 = vrot.slane %v1600, 1
        %v1647 = vrot.slane %v1609, 1
        %v1648 = vsel %vm923, %v1646, %v1647
        %v1649 = vrot.slane %v1601, 1
        %v1650 = vrot.slane %v1610, 1
        %v1651 = vsel %vm923, %v1649, %v1650
        %1652 = vrot.lane.b32.xlu0 %v1630, 32
        %v1653 = vpop.permute.xlu0 %1652
        %1654 = vrot.lane.b32.xlu0 %v1633, 32
        %v1655 = vpop.permute.xlu0 %1654
        %1656 = vrot.lane.b32.xlu0 %v1636, 32
        %v1657 = vpop.permute.xlu0 %1656
        %1658 = vrot.lane.b32.xlu0 %v1639, 32
        %v1659 = vpop.permute.xlu0 %1658
        %1660 = vrot.lane.b32.xlu0 %v1642, 32
        %v1661 = vpop.permute.xlu0 %1660
        %1662 = vrot.lane.b32.xlu0 %v1645, 32
        %v1663 = vpop.permute.xlu0 %1662
        %1664 = vrot.lane.b32.xlu0 %v1648, 32
        %v1665 = vpop.permute.xlu0 %1664
        %1666 = vrot.lane.b32.xlu0 %v1651, 32
        %v1667 = vpop.permute.xlu0 %1666
        %v1676 = vrot.slane %v975, 2
        %v1677 = vrot.slane %v1603, 2
        %v1678 = vsel %vm918, %v1676, %v1677
        %v1679 = vrot.slane %v1595, 2
        %v1680 = vrot.slane %v1604, 2
        %v1681 = vsel %vm918, %v1679, %v1680
        %v1682 = vrot.slane %v1596, 2
        %v1683 = vrot.slane %v1605, 2
        %v1684 = vsel %vm918, %v1682, %v1683
        %v1685 = vrot.slane %v1597, 2
        %v1686 = vrot.slane %v1606, 2
        %v1687 = vsel %vm918, %v1685, %v1686
        %v1688 = vrot.slane %v1598, 2
        %v1689 = vrot.slane %v1607, 2
        %v1690 = vsel %vm918, %v1688, %v1689
        %v1691 = vrot.slane %v1599, 2
        %v1692 = vrot.slane %v1608, 2
        %v1693 = vsel %vm918, %v1691, %v1692
        %v1694 = vrot.slane %v1600, 2
        %v1695 = vrot.slane %v1609, 2
        %v1696 = vsel %vm918, %v1694, %v1695
        %v1697 = vrot.slane %v1601, 2
        %v1698 = vrot.slane %v1610, 2
        %v1699 = vsel %vm918, %v1697, %v1698
        %1700 = vrot.lane.b32.xlu0 %v1678, 64
        %v1701 = vpop.permute.xlu0 %1700
        %1702 = vrot.lane.b32.xlu0 %v1681, 64
        %v1703 = vpop.permute.xlu0 %1702
        %1704 = vrot.lane.b32.xlu0 %v1684, 64
        %v1705 = vpop.permute.xlu0 %1704
        %1706 = vrot.lane.b32.xlu0 %v1687, 64
        %v1707 = vpop.permute.xlu0 %1706
        %1708 = vrot.lane.b32.xlu0 %v1690, 64
        %v1709 = vpop.permute.xlu0 %1708
        %1710 = vrot.lane.b32.xlu0 %v1693, 64
        %v1711 = vpop.permute.xlu0 %1710
        %1712 = vrot.lane.b32.xlu0 %v1696, 64
        %v1713 = vpop.permute.xlu0 %1712
        %1714 = vrot.lane.b32.xlu0 %v1699, 64
        %v1715 = vpop.permute.xlu0 %1714
        %1725 = vrot.lane.b32.xlu0 %v1595, 96
        %v1726 = vpop.permute.xlu0 %1725
        %1727 = vrot.lane.b32.xlu0 %v1596, 96
        %v1728 = vpop.permute.xlu0 %1727
        %1729 = vrot.lane.b32.xlu0 %v1597, 96
        %v1730 = vpop.permute.xlu0 %1729
        %1731 = vrot.lane.b32.xlu0 %v1598, 96
        %v1732 = vpop.permute.xlu0 %1731
        %1733 = vrot.lane.b32.xlu0 %v1599, 96
        %v1734 = vpop.permute.xlu0 %1733
        %1735 = vrot.lane.b32.xlu0 %v1600, 96
        %v1736 = vpop.permute.xlu0 %1735
        %1737 = vrot.lane.b32.xlu0 %v1601, 96
        %v1738 = vpop.permute.xlu0 %1737
        %1739 = vrot.lane.b32.xlu0 %v1602, 96
        %v1740 = vpop.permute.xlu0 %1739
        %v1750 = vrot.slane %v1602, 1
        %v1751 = vrot.slane %v1611, 1
        %v1752 = vsel %vm923, %v1750, %v1751
        %v1761 = vrot.slane %v1602, 2
        %v1762 = vrot.slane %v1611, 2
        %v1763 = vsel %vm918, %v1761, %v1762
        %1764 = vrot.lane.b32.xlu0 %v1681, 32
        %v1765 = vpop.permute.xlu0 %1764
        %1766 = vrot.lane.b32.xlu0 %v1684, 32
        %v1767 = vpop.permute.xlu0 %1766
        %1768 = vrot.lane.b32.xlu0 %v1687, 32
        %v1769 = vpop.permute.xlu0 %1768
        %1770 = vrot.lane.b32.xlu0 %v1690, 32
        %v1771 = vpop.permute.xlu0 %1770
        %1772 = vrot.lane.b32.xlu0 %v1693, 32
        %v1773 = vpop.permute.xlu0 %1772
        %1774 = vrot.lane.b32.xlu0 %v1696, 32
        %v1775 = vpop.permute.xlu0 %1774
        %1776 = vrot.lane.b32.xlu0 %v1699, 32
        %v1777 = vpop.permute.xlu0 %1776
        %1778 = vrot.lane.b32.xlu0 %v1763, 32
        %v1779 = vpop.permute.xlu0 %1778
        %1788 = vrot.lane.b32.xlu0 %v1596, 64
        %v1789 = vpop.permute.xlu0 %1788
        %1790 = vrot.lane.b32.xlu0 %v1597, 64
        %v1791 = vpop.permute.xlu0 %1790
        %1792 = vrot.lane.b32.xlu0 %v1598, 64
        %v1793 = vpop.permute.xlu0 %1792
        %1794 = vrot.lane.b32.xlu0 %v1599, 64
        %v1795 = vpop.permute.xlu0 %1794
        %1796 = vrot.lane.b32.xlu0 %v1600, 64
        %v1797 = vpop.permute.xlu0 %1796
        %1798 = vrot.lane.b32.xlu0 %v1601, 64
        %v1799 = vpop.permute.xlu0 %1798
        %1800 = vrot.lane.b32.xlu0 %v1602, 64
        %v1801 = vpop.permute.xlu0 %1800
        %1802 = vrot.lane.b32.xlu0 %v975, 64
        %v1803 = vpop.permute.xlu0 %1802
        %1812 = vrot.lane.b32.xlu0 %v1636, 96
        %v1813 = vpop.permute.xlu0 %1812
        %1814 = vrot.lane.b32.xlu0 %v1639, 96
        %v1815 = vpop.permute.xlu0 %1814
        %1816 = vrot.lane.b32.xlu0 %v1642, 96
        %v1817 = vpop.permute.xlu0 %1816
        %1818 = vrot.lane.b32.xlu0 %v1645, 96
        %v1819 = vpop.permute.xlu0 %1818
        %1820 = vrot.lane.b32.xlu0 %v1648, 96
        %v1821 = vpop.permute.xlu0 %1820
        %1822 = vrot.lane.b32.xlu0 %v1651, 96
        %v1823 = vpop.permute.xlu0 %1822
        %1824 = vrot.lane.b32.xlu0 %v1752, 96
        %v1825 = vpop.permute.xlu0 %1824
        %1826 = vrot.lane.b32.xlu0 %v1630, 96
        %v1827 = vpop.permute.xlu0 %1826
        %v1836 = vsel %vm819, %v975, %v1653
        %v1837 = vsel %vm819, %v1595, %v1655
        %v1838 = vsel %vm819, %v1596, %v1657
        %v1839 = vsel %vm819, %v1597, %v1659
        %v1840 = vsel %vm819, %v1598, %v1661
        %v1841 = vsel %vm819, %v1599, %v1663
        %v1842 = vsel %vm819, %v1600, %v1665
        %v1843 = vsel %vm819, %v1601, %v1667
        %v1844 = vsel %vm1080, %v1836, %v1701
        %v1845 = vsel %vm1080, %v1837, %v1703
        %v1846 = vsel %vm1080, %v1838, %v1705
        %v1847 = vsel %vm1080, %v1839, %v1707
        %v1848 = vsel %vm1080, %v1840, %v1709
        %v1849 = vsel %vm1080, %v1841, %v1711
        %v1850 = vsel %vm1080, %v1842, %v1713
        %v1851 = vsel %vm1080, %v1843, %v1715
        %v1852 = vsel %vm1085, %v1844, %v1726
        %v1853 = vsel %vm1085, %v1845, %v1728
        %v1854 = vsel %vm1085, %v1846, %v1730
        %v1855 = vsel %vm1085, %v1847, %v1732
        %v1856 = vsel %vm1085, %v1848, %v1734
        %v1857 = vsel %vm1085, %v1849, %v1736
        %v1858 = vsel %vm1085, %v1850, %v1738
        %v1859 = vsel %vm1085, %v1851, %v1740
        %v1860 = vsel %vm819, %v1633, %v1765
        %v1861 = vsel %vm819, %v1636, %v1767
        %v1862 = vsel %vm819, %v1639, %v1769
        %v1863 = vsel %vm819, %v1642, %v1771
        %v1864 = vsel %vm819, %v1645, %v1773
        %v1865 = vsel %vm819, %v1648, %v1775
        %v1866 = vsel %vm819, %v1651, %v1777
        %v1867 = vsel %vm819, %v1752, %v1779
        %v1868 = vsel %vm1080, %v1860, %v1789
        %v1869 = vsel %vm1080, %v1861, %v1791
        %v1870 = vsel %vm1080, %v1862, %v1793
        %v1871 = vsel %vm1080, %v1863, %v1795
        %v1872 = vsel %vm1080, %v1864, %v1797
        %v1873 = vsel %vm1080, %v1865, %v1799
        %v1874 = vsel %vm1080, %v1866, %v1801
        %v1875 = vsel %vm1080, %v1867, %v1803
        %v1876 = vsel %vm1085, %v1868, %v1813
        %v1877 = vsel %vm1085, %v1869, %v1815
        %v1878 = vsel %vm1085, %v1870, %v1817
        %v1879 = vsel %vm1085, %v1871, %v1819
        %v1880 = vsel %vm1085, %v1872, %v1821
        %v1881 = vsel %vm1085, %v1873, %v1823
        %v1882 = vsel %vm1085, %v1874, %v1825
        %v1883 = vsel %vm1085, %v1875, %v1827
        %v1884 = vsel %vm819, %v1684, 0
        %v1886 = vsel %vm819, %v1687, 0
        %v1888 = vsel %vm819, %v1690, 0
        %v1890 = vsel %vm819, %v1693, 0
        %v1892 = vsel %vm819, %v1696, 0
        %v1894 = vsel %vm819, %v1699, 0
        %v1896 = vsel %vm819, %v1763, 0
        %v1898 = vsel %vm819, %v1678, 0
        %1900 = vmatpush.msra.mxu0 %v1574
        %1901 = vmatpush.msra.mxu0 %v1573
        %1902 = vmatpush.msra.mxu0 %v1572
        %1903 = vmatpush.msra.mxu0 %v1571
        %1904 = vmatpush.msra.mxu0 %v1570
        %1905 = vmatpush.msra.mxu0 %v1569
        %1906 = vmatpush.msra.mxu0 %v1568
        %1907 = vmatpush.msra.mxu0 %v1567
        %1908 = vmatpush.msra.mxu0 %v1566
        %1909 = vmatpush.msra.mxu0 %v1565
        %1910 = vmatpush.msra.mxu0 %v1564
        %1911 = vmatpush.msra.mxu0 %v1563
        %1912 = vmatpush.msra.mxu0 %v1562
        %1913 = vmatpush.msra.mxu0 %v1561
        %1914 = vmatpush.msra.mxu0 %v1560
        %1915 = vmatpush.msra.mxu0 %v1559
        %1916 = vmatmul.f32.gmra.mxu0 %v1852
        %v1917 = vpop.f32.mrf.mxu0
        %v1918 = vadd.f32 0.0, %v1917
        %1919 = vmatmul.f32.gmra.mxu0 %v1853
        %v1920 = vpop.f32.mrf.mxu0
        %v1921 = vadd.f32 0.0, %v1920
        %1922 = vmatmul.f32.gmra.mxu0 %v1854
        %v1923 = vpop.f32.mrf.mxu0
        %v1924 = vadd.f32 0.0, %v1923
        %1925 = vmatmul.f32.gmra.mxu0 %v1855
        %v1926 = vpop.f32.mrf.mxu0
        %v1927 = vadd.f32 0.0, %v1926
        %1928 = vmatmul.f32.gmra.mxu0 %v1856
        %v1929 = vpop.f32.mrf.mxu0
        %v1930 = vadd.f32 0.0, %v1929
        %1931 = vmatmul.f32.gmra.mxu0 %v1857
        %v1932 = vpop.f32.mrf.mxu0
        %v1933 = vadd.f32 0.0, %v1932
        %1934 = vmatmul.f32.gmra.mxu0 %v1858
        %v1935 = vpop.f32.mrf.mxu0
        %v1936 = vadd.f32 0.0, %v1935
        %1937 = vmatmul.f32.gmra.mxu0 %v1859
        %v1938 = vpop.f32.mrf.mxu0
        %v1939 = vadd.f32 0.0, %v1938
        %1940 = vdwg.mxu0
        %1941 = vmatpush.msra.mxu0 %v1590
        %1942 = vmatpush.msra.mxu0 %v1589
        %1943 = vmatpush.msra.mxu0 %v1588
        %1944 = vmatpush.msra.mxu0 %v1587
        %1945 = vmatpush.msra.mxu0 %v1586
        %1946 = vmatpush.msra.mxu0 %v1585
        %1947 = vmatpush.msra.mxu0 %v1584
        %1948 = vmatpush.msra.mxu0 %v1583
        %1949 = vmatpush.msra.mxu0 %v1582
        %1950 = vmatpush.msra.mxu0 %v1581
        %1951 = vmatpush.msra.mxu0 %v1580
        %1952 = vmatpush.msra.mxu0 %v1579
        %1953 = vmatpush.msra.mxu0 %v1578
        %1954 = vmatpush.msra.mxu0 %v1577
        %1955 = vmatpush.msra.mxu0 %v1576
        %1956 = vmatpush.msra.mxu0 %v1575
        %1957 = vmatmul.f32.gmra.mxu0 %v1876
        %v1958 = vpop.f32.mrf.mxu0
        %v1959 = vadd.f32 %v1918, %v1958
        %1960 = vmatmul.f32.gmra.mxu0 %v1877
        %v1961 = vpop.f32.mrf.mxu0
        %v1962 = vadd.f32 %v1921, %v1961
        %1963 = vmatmul.f32.gmra.mxu0 %v1878
        %v1964 = vpop.f32.mrf.mxu0
        %v1965 = vadd.f32 %v1924, %v1964
        %1966 = vmatmul.f32.gmra.mxu0 %v1879
        %v1967 = vpop.f32.mrf.mxu0
        %v1968 = vadd.f32 %v1927, %v1967
        %1969 = vmatmul.f32.gmra.mxu0 %v1880
        %v1970 = vpop.f32.mrf.mxu0
        %v1971 = vadd.f32 %v1930, %v1970
        %1972 = vmatmul.f32.gmra.mxu0 %v1881
        %v1973 = vpop.f32.mrf.mxu0
        %v1974 = vadd.f32 %v1933, %v1973
        %1975 = vmatmul.f32.gmra.mxu0 %v1882
        %v1976 = vpop.f32.mrf.mxu0
        %v1977 = vadd.f32 %v1936, %v1976
        %1978 = vmatmul.f32.gmra.mxu0 %v1883
        %v1979 = vpop.f32.mrf.mxu0
        %v1980 = vadd.f32 %v1939, %v1979
        %1981 = vdwg.mxu0
        %1982 = vmatpush.msra.mxu0 0.0
        %1983 = vmatpush.msra.mxu0 0.0
        %1984 = vmatpush.msra.mxu0 0.0
        %1985 = vmatpush.msra.mxu0 0.0
        %1986 = vmatpush.msra.mxu0 0.0
        %1987 = vmatpush.msra.mxu0 0.0
        %1988 = vmatpush.msra.mxu0 0.0
        %1989 = vmatpush.msra.mxu0 0.0
        %1990 = vmatpush.msra.mxu0 0.0
        %1991 = vmatpush.msra.mxu0 0.0
        %1992 = vmatpush.msra.mxu0 0.0
        %1993 = vmatpush.msra.mxu0 0.0
        %1994 = vmatpush.msra.mxu0 %v1594
        %1995 = vmatpush.msra.mxu0 %v1593
        %1996 = vmatpush.msra.mxu0 %v1592
        %1997 = vmatpush.msra.mxu0 %v1591
        %1998 = vmatmul.f32.gmra.mxu0 %v1884
        %v1999 = vpop.f32.mrf.mxu0
        %v2000 = vadd.f32 %v1959, %v1999
        %2001 = vmatmul.f32.gmra.mxu0 %v1886
        %v2002 = vpop.f32.mrf.mxu0
        %v2003 = vadd.f32 %v1962, %v2002
        %2004 = vmatmul.f32.gmra.mxu0 %v1888
        %v2005 = vpop.f32.mrf.mxu0
        %v2006 = vadd.f32 %v1965, %v2005
        %2007 = vmatmul.f32.gmra.mxu0 %v1890
        %v2008 = vpop.f32.mrf.mxu0
        %v2009 = vadd.f32 %v1968, %v2008
        %2010 = vmatmul.f32.gmra.mxu0 %v1892
        %v2011 = vpop.f32.mrf.mxu0
        %v2012 = vadd.f32 %v1971, %v2011
        %2013 = vmatmul.f32.gmra.mxu0 %v1894
        %v2014 = vpop.f32.mrf.mxu0
        %v2015 = vadd.f32 %v1974, %v2014
        %2016 = vmatmul.f32.gmra.mxu0 %v1896
        %v2017 = vpop.f32.mrf.mxu0
        %v2018 = vadd.f32 %v1977, %v2017
        %2019 = vmatmul.f32.gmra.mxu0 %v1898
        %v2020 = vpop.f32.mrf.mxu0
        %v2021 = vadd.f32 %v1980, %v2020
        %2022 = vdwg.mxu0
        %v2023 = vperm.slane %v800, 3
        %v2024 = vmul.f32 %v2000, %v2023
        %v2025 = vmul.f32 %v2003, %v2023
        %v2026 = vmul.f32 %v2006, %v2023
        %v2027 = vmul.f32 %v2009, %v2023
        %v2028 = vmul.f32 %v2012, %v2023
        %v2029 = vmul.f32 %v2015, %v2023
        %v2030 = vmul.f32 %v2018, %v2023
        %v2031 = vmul.f32 %v2021, %v2023
        %v2032 = vperm.slane %v801, 3
        %v2033 = vadd.f32 %v2024, %v2032
        %v2034 = vadd.f32 %v2025, %v2032
        %v2035 = vadd.f32 %v2026, %v2032
        %v2036 = vadd.f32 %v2027, %v2032
        %v2037 = vadd.f32 %v2028, %v2032
        %v2038 = vadd.f32 %v2029, %v2032
        %v2039 = vadd.f32 %v2030, %v2032
        %v2040 = vadd.f32 %v2031, %v2032
        %v2041 = vmax.f32 %v2033, 0.0
        %v2042 = vmax.f32 %v2034, 0.0
        %v2043 = vmax.f32 %v2035, 0.0
        %v2044 = vmax.f32 %v2036, 0.0
        %v2045 = vmax.f32 %v2037, 0.0
        %v2046 = vmax.f32 %v2038, 0.0
        %v2047 = vmax.f32 %v2039, 0.0
        %v2048 = vmax.f32 %v2040, 0.0
        %v2049 = vld [vmem:[%s7] sm:$0xff]
        %v2050 = vld [vmem:[%s7 + $0x8] sm:$0xff]
        %vm2051 = vcmask 130048
        %v2053 = vsel %vm2051, %v756, 0
        %v2056 = vsel %vm2051, %v757, 0
        %v2059 = vsel %vm2051, %v758, 0
        %v2062 = vsel %vm2051, %v759, 0
        %v2065 = vsel %vm2051, %v760, 0
        %v2068 = vsel %vm2051, %v761, 0
        %v2071 = vsel %vm2051, %v762, 0
        %v2074 = vsel %vm2051, %v763, 0
        %v2077 = vsel %vm2051, %v764, 0
        %v2080 = vsel %vm2051, %v765, 0
        %v2083 = vsel %vm2051, %v766, 0
        %v2086 = vsel %vm2051, %v767, 0
        %v2089 = vsel %vm2051, %v768, 0
        %v2092 = vsel %vm2051, %v769, 0
        %v2095 = vsel %vm2051, %v770, 0
        %v2098 = vsel %vm2051, %v771, 0
        %v2101 = vsel %vm2051, %v772, 0
        %v2104 = vsel %vm2051, %v773, 0
        %v2107 = vsel %vm2051, %v774, 0
        %v2110 = vsel %vm2051, %v775, 0
        %v2113 = vsel %vm2051, %v776, 0
        %v2116 = vsel %vm2051, %v777, 0
        %v2119 = vsel %vm2051, %v778, 0
        %v2122 = vsel %vm2051, %v779, 0
        %v2125 = vsel %vm2051, %v780, 0
        %v2128 = vsel %vm2051, %v781, 0
        %v2131 = vsel %vm2051, %v782, 0
        %v2134 = vsel %vm2051, %v783, 0
        %v2137 = vsel %vm2051, %v784, 0
        %v2140 = vsel %vm2051, %v785, 0
        %v2143 = vsel %vm2051, %v786, 0
        %v2146 = vsel %vm2051, %v787, 0
        %2148 = vmatpush.msra.mxu0 0.0
        %2149 = vmatpush.msra.mxu0 0.0
        %2150 = vmatpush.msra.mxu0 0.0
        %2151 = vmatpush.msra.mxu0 0.0
        %2152 = vmatpush.msra.mxu0 0.0
        %2153 = vmatpush.msra.mxu0 0.0
        %2154 = vmatpush.msra.mxu0 0.0
        %2155 = vmatpush.msra.mxu0 0.0
        %2156 = vmatpush.msra.mxu0 0.0
        %2157 = vmatpush.msra.mxu0 0.0
        %2158 = vmatpush.msra.mxu0 0.0
        %2159 = vmatpush.msra.mxu0 0.0
        %2160 = vmatpush.msra.mxu0 0.0
        %2161 = vmatpush.msra.mxu0 0.0
        %2162 = vmatpush.msra.mxu0 %v2050
        %2163 = vmatpush.msra.mxu0 %v2049
        %2164 = vmatmul.f32.gmra.mxu0 %v2053
        %v2165 = vpop.f32.mrf.mxu0
        %v2166 = vadd.f32 0.0, %v2165
        %2167 = vmatmul.f32.gmra.mxu0 %v2056
        %v2168 = vpop.f32.mrf.mxu0
        %v2169 = vadd.f32 0.0, %v2168
        %2170 = vmatmul.f32.gmra.mxu0 %v2059
        %v2171 = vpop.f32.mrf.mxu0
        %v2172 = vadd.f32 0.0, %v2171
        %2173 = vmatmul.f32.gmra.mxu0 %v2062
        %v2174 = vpop.f32.mrf.mxu0
        %v2175 = vadd.f32 0.0, %v2174
        %2176 = vmatmul.f32.gmra.mxu0 %v2065
        %v2177 = vpop.f32.mrf.mxu0
        %v2178 = vadd.f32 0.0, %v2177
        %2179 = vmatmul.f32.gmra.mxu0 %v2068
        %v2180 = vpop.f32.mrf.mxu0
        %v2181 = vadd.f32 0.0, %v2180
        %2182 = vmatmul.f32.gmra.mxu0 %v2071
        %v2183 = vpop.f32.mrf.mxu0
        %v2184 = vadd.f32 0.0, %v2183
        %2185 = vmatmul.f32.gmra.mxu0 %v2074
        %v2186 = vpop.f32.mrf.mxu0
        %v2187 = vadd.f32 0.0, %v2186
        %2188 = vmatmul.f32.gmra.mxu0 %v2077
        %v2189 = vpop.f32.mrf.mxu0
        %v2190 = vadd.f32 0.0, %v2189
        %2191 = vmatmul.f32.gmra.mxu0 %v2080
        %v2192 = vpop.f32.mrf.mxu0
        %v2193 = vadd.f32 0.0, %v2192
        %2194 = vmatmul.f32.gmra.mxu0 %v2083
        %v2195 = vpop.f32.mrf.mxu0
        %v2196 = vadd.f32 0.0, %v2195
        %2197 = vmatmul.f32.gmra.mxu0 %v2086
        %v2198 = vpop.f32.mrf.mxu0
        %v2199 = vadd.f32 0.0, %v2198
        %2200 = vmatmul.f32.gmra.mxu0 %v2089
        %v2201 = vpop.f32.mrf.mxu0
        %v2202 = vadd.f32 0.0, %v2201
        %2203 = vmatmul.f32.gmra.mxu0 %v2092
        %v2204 = vpop.f32.mrf.mxu0
        %v2205 = vadd.f32 0.0, %v2204
        %2206 = vmatmul.f32.gmra.mxu0 %v2095
        %v2207 = vpop.f32.mrf.mxu0
        %v2208 = vadd.f32 0.0, %v2207
        %2209 = vmatmul.f32.gmra.mxu0 %v2098
        %v2210 = vpop.f32.mrf.mxu0
        %v2211 = vadd.f32 0.0, %v2210
        %2212 = vmatmul.f32.gmra.mxu0 %v2101
        %v2213 = vpop.f32.mrf.mxu0
        %v2214 = vadd.f32 0.0, %v2213
        %2215 = vmatmul.f32.gmra.mxu0 %v2104
        %v2216 = vpop.f32.mrf.mxu0
        %v2217 = vadd.f32 0.0, %v2216
        %2218 = vmatmul.f32.gmra.mxu0 %v2107
        %v2219 = vpop.f32.mrf.mxu0
        %v2220 = vadd.f32 0.0, %v2219
        %2221 = vmatmul.f32.gmra.mxu0 %v2110
        %v2222 = vpop.f32.mrf.mxu0
        %v2223 = vadd.f32 0.0, %v2222
        %2224 = vmatmul.f32.gmra.mxu0 %v2113
        %v2225 = vpop.f32.mrf.mxu0
        %v2226 = vadd.f32 0.0, %v2225
        %2227 = vmatmul.f32.gmra.mxu0 %v2116
        %v2228 = vpop.f32.mrf.mxu0
        %v2229 = vadd.f32 0.0, %v2228
        %2230 = vmatmul.f32.gmra.mxu0 %v2119
        %v2231 = vpop.f32.mrf.mxu0
        %v2232 = vadd.f32 0.0, %v2231
        %2233 = vmatmul.f32.gmra.mxu0 %v2122
        %v2234 = vpop.f32.mrf.mxu0
        %v2235 = vadd.f32 0.0, %v2234
        %2236 = vmatmul.f32.gmra.mxu0 %v2125
        %v2237 = vpop.f32.mrf.mxu0
        %v2238 = vadd.f32 0.0, %v2237
        %2239 = vmatmul.f32.gmra.mxu0 %v2128
        %v2240 = vpop.f32.mrf.mxu0
        %v2241 = vadd.f32 0.0, %v2240
        %2242 = vmatmul.f32.gmra.mxu0 %v2131
        %v2243 = vpop.f32.mrf.mxu0
        %v2244 = vadd.f32 0.0, %v2243
        %2245 = vmatmul.f32.gmra.mxu0 %v2134
        %v2246 = vpop.f32.mrf.mxu0
        %v2247 = vadd.f32 0.0, %v2246
        %2248 = vmatmul.f32.gmra.mxu0 %v2137
        %v2249 = vpop.f32.mrf.mxu0
        %v2250 = vadd.f32 0.0, %v2249
        %2251 = vmatmul.f32.gmra.mxu0 %v2140
        %v2252 = vpop.f32.mrf.mxu0
        %v2253 = vadd.f32 0.0, %v2252
        %2254 = vmatmul.f32.gmra.mxu0 %v2143
        %v2255 = vpop.f32.mrf.mxu0
        %v2256 = vadd.f32 0.0, %v2255
        %2257 = vmatmul.f32.gmra.mxu0 %v2146
        %v2258 = vpop.f32.mrf.mxu0
        %v2259 = vadd.f32 0.0, %v2258
        %2260 = vdwg.mxu0
        %v2261 = vperm.slane %v800, 4
        %v2262 = vmul.f32 %v2166, %v2261
        %v2263 = vmul.f32 %v2169, %v2261
        %v2264 = vmul.f32 %v2172, %v2261
        %v2265 = vmul.f32 %v2175, %v2261
        %v2266 = vmul.f32 %v2178, %v2261
        %v2267 = vmul.f32 %v2181, %v2261
        %v2268 = vmul.f32 %v2184, %v2261
        %v2269 = vmul.f32 %v2187, %v2261
        %v2270 = vmul.f32 %v2190, %v2261
        %v2271 = vmul.f32 %v2193, %v2261
        %v2272 = vmul.f32 %v2196, %v2261
        %v2273 = vmul.f32 %v2199, %v2261
        %v2274 = vmul.f32 %v2202, %v2261
        %v2275 = vmul.f32 %v2205, %v2261
        %v2276 = vmul.f32 %v2208, %v2261
        %v2277 = vmul.f32 %v2211, %v2261
        %v2278 = vmul.f32 %v2214, %v2261
        %v2279 = vmul.f32 %v2217, %v2261
        %v2280 = vmul.f32 %v2220, %v2261
        %v2281 = vmul.f32 %v2223, %v2261
        %v2282 = vmul.f32 %v2226, %v2261
        %v2283 = vmul.f32 %v2229, %v2261
        %v2284 = vmul.f32 %v2232, %v2261
        %v2285 = vmul.f32 %v2235, %v2261
        %v2286 = vmul.f32 %v2238, %v2261
        %v2287 = vmul.f32 %v2241, %v2261
        %v2288 = vmul.f32 %v2244, %v2261
        %v2289 = vmul.f32 %v2247, %v2261
        %v2290 = vmul.f32 %v2250, %v2261
        %v2291 = vmul.f32 %v2253, %v2261
        %v2292 = vmul.f32 %v2256, %v2261
        %v2293 = vmul.f32 %v2259, %v2261
        %v2294 = vperm.slane %v801, 4
        %v2295 = vadd.f32 %v2262, %v2294
        %v2296 = vadd.f32 %v2263, %v2294
        %v2297 = vadd.f32 %v2264, %v2294
        %v2298 = vadd.f32 %v2265, %v2294
        %v2299 = vadd.f32 %v2266, %v2294
        %v2300 = vadd.f32 %v2267, %v2294
        %v2301 = vadd.f32 %v2268, %v2294
        %v2302 = vadd.f32 %v2269, %v2294
        %v2303 = vadd.f32 %v2270, %v2294
        %v2304 = vadd.f32 %v2271, %v2294
        %v2305 = vadd.f32 %v2272, %v2294
        %v2306 = vadd.f32 %v2273, %v2294
        %v2307 = vadd.f32 %v2274, %v2294
        %v2308 = vadd.f32 %v2275, %v2294
        %v2309 = vadd.f32 %v2276, %v2294
        %v2310 = vadd.f32 %v2277, %v2294
        %v2311 = vadd.f32 %v2278, %v2294
        %v2312 = vadd.f32 %v2279, %v2294
        %v2313 = vadd.f32 %v2280, %v2294
        %v2314 = vadd.f32 %v2281, %v2294
        %v2315 = vadd.f32 %v2282, %v2294
        %v2316 = vadd.f32 %v2283, %v2294
        %v2317 = vadd.f32 %v2284, %v2294
        %v2318 = vadd.f32 %v2285, %v2294
        %v2319 = vadd.f32 %v2286, %v2294
        %v2320 = vadd.f32 %v2287, %v2294
        %v2321 = vadd.f32 %v2288, %v2294
        %v2322 = vadd.f32 %v2289, %v2294
        %v2323 = vadd.f32 %v2290, %v2294
        %v2324 = vadd.f32 %v2291, %v2294
        %v2325 = vadd.f32 %v2292, %v2294
        %v2326 = vadd.f32 %v2293, %v2294
        %v2327 = vmax.f32 %v2295, 0.0
        %v2328 = vmax.f32 %v2296, 0.0
        %v2329 = vmax.f32 %v2297, 0.0
        %v2330 = vmax.f32 %v2298, 0.0
        %v2331 = vmax.f32 %v2299, 0.0
        %v2332 = vmax.f32 %v2300, 0.0
        %v2333 = vmax.f32 %v2301, 0.0
        %v2334 = vmax.f32 %v2302, 0.0
        %v2335 = vmax.f32 %v2303, 0.0
        %v2336 = vmax.f32 %v2304, 0.0
        %v2337 = vmax.f32 %v2305, 0.0
        %v2338 = vmax.f32 %v2306, 0.0
        %v2339 = vmax.f32 %v2307, 0.0
        %v2340 = vmax.f32 %v2308, 0.0
        %v2341 = vmax.f32 %v2309, 0.0
        %v2342 = vmax.f32 %v2310, 0.0
        %v2343 = vmax.f32 %v2311, 0.0
        %v2344 = vmax.f32 %v2312, 0.0
        %v2345 = vmax.f32 %v2313, 0.0
        %v2346 = vmax.f32 %v2314, 0.0
        %v2347 = vmax.f32 %v2315, 0.0
        %v2348 = vmax.f32 %v2316, 0.0
        %v2349 = vmax.f32 %v2317, 0.0
        %v2350 = vmax.f32 %v2318, 0.0
        %v2351 = vmax.f32 %v2319, 0.0
        %v2352 = vmax.f32 %v2320, 0.0
        %v2353 = vmax.f32 %v2321, 0.0
        %v2354 = vmax.f32 %v2322, 0.0
        %v2355 = vmax.f32 %v2323, 0.0
        %v2356 = vmax.f32 %v2324, 0.0
        %v2357 = vmax.f32 %v2325, 0.0
        %v2358 = vmax.f32 %v2326, 0.0
        %v2359 = vadd.f32 %v2327, %v1495
        %v2360 = vadd.f32 %v2328, %v1551
        %v2361 = vadd.f32 %v2329, %v1495
        %v2362 = vadd.f32 %v2330, %v1551
        %v2363 = vadd.f32 %v2331, %v1496
        %v2364 = vadd.f32 %v2332, %v1552
        %v2365 = vadd.f32 %v2333, %v1496
        %v2366 = vadd.f32 %v2334, %v1552
        %v2367 = vadd.f32 %v2335, %v1497
        %v2368 = vadd.f32 %v2336, %v1553
        %v2369 = vadd.f32 %v2337, %v1497
        %v2370 = vadd.f32 %v2338, %v1553
        %v2371 = vadd.f32 %v2339, %v1498
        %v2372 = vadd.f32 %v2340, %v1554
        %v2373 = vadd.f32 %v2341, %v1498
        %v2374 = vadd.f32 %v2342, %v1554
        %v2375 = vadd.f32 %v2343, %v1499
        %v2376 = vadd.f32 %v2344, %v1555
        %v2377 = vadd.f32 %v2345, %v1499
        %v2378 = vadd.f32 %v2346, %v1555
        %v2379 = vadd.f32 %v2347, %v1500
        %v2380 = vadd.f32 %v2348, %v1556
        %v2381 = vadd.f32 %v2349, %v1500
        %v2382 = vadd.f32 %v2350, %v1556
        %v2383 = vadd.f32 %v2351, %v1501
        %v2384 = vadd.f32 %v2352, %v1557
        %v2385 = vadd.f32 %v2353, %v1501
        %v2386 = vadd.f32 %v2354, %v1557
        %v2387 = vadd.f32 %v2355, %v1502
        %v2388 = vadd.f32 %v2356, %v1558
        %v2389 = vadd.f32 %v2357, %v1502
        %v2390 = vadd.f32 %v2358, %v1558
        %v2391 = vld [vmem:[#allocation14] sm:$0xff]
        %v2392 = vld [vmem:[#allocation14 + $0x8] sm:$0xff]
        %v2393 = vld [vmem:[#allocation14 + $0x10] sm:$0xff]
        %v2394 = vld [vmem:[#allocation14 + $0x18] sm:$0xff]
        %v2395 = vld [vmem:[#allocation14 + $0x20] sm:$0xff]
        %v2396 = vld [vmem:[#allocation14 + $0x28] sm:$0xff]
        %v2397 = vld [vmem:[#allocation14 + $0x30] sm:$0xff]
        %v2398 = vld [vmem:[#allocation14 + $0x38] sm:$0xff]
        %v2399 = vld [vmem:[#allocation14 + $0x40] sm:$0xff]
        %v2400 = vld [vmem:[#allocation14 + $0x48] sm:$0xff]
        %v2401 = vld [vmem:[#allocation14 + $0x50] sm:$0xff]
        %v2402 = vld [vmem:[#allocation14 + $0x58] sm:$0xff]
        %v2403 = vld [vmem:[#allocation14 + $0x60] sm:$0xff]
        %v2404 = vld [vmem:[#allocation14 + $0x68] sm:$0xff]
        %v2405 = vld [vmem:[#allocation14 + $0x70] sm:$0xff]
        %v2406 = vld [vmem:[#allocation14 + $0x78] sm:$0xff]
        %v2407 = vld [vmem:[#allocation14 + $0x80] sm:$0xff]
        %v2408 = vld [vmem:[#allocation14 + $0x88] sm:$0xff]
        %v2409 = vld [vmem:[#allocation14 + $0x90] sm:$0xff]
        %v2410 = vld [vmem:[#allocation14 + $0x98] sm:$0xff]
        %v2411 = vld [vmem:[#allocation14 + $0xa0] sm:$0xff]
        %v2412 = vld [vmem:[#allocation14 + $0xa8] sm:$0xff]
        %v2413 = vld [vmem:[#allocation14 + $0xb0] sm:$0xff]
        %v2414 = vld [vmem:[#allocation14 + $0xb8] sm:$0xff]
        %v2415 = vld [vmem:[#allocation14 + $0xc0] sm:$0xff]
        %v2416 = vld [vmem:[#allocation14 + $0xc8] sm:$0xff]
        %v2417 = vld [vmem:[#allocation14 + $0xd0] sm:$0xff]
        %v2418 = vld [vmem:[#allocation14 + $0xd8] sm:$0xff]
        %v2419 = vld [vmem:[#allocation14 + $0xe0] sm:$0xff]
        %v2420 = vld [vmem:[#allocation14 + $0xe8] sm:$0xff]
        %v2421 = vld [vmem:[#allocation14 + $0xf0] sm:$0xff]
        %v2422 = vld [vmem:[#allocation14 + $0xf8] sm:$0xff]
        %v2423 = vld [vmem:[#allocation14 + $0x100] sm:$0xff]
        %v2424 = vld [vmem:[#allocation14 + $0x108] sm:$0xff]
        %v2425 = vld [vmem:[#allocation14 + $0x110] sm:$0xff]
        %v2426 = vld [vmem:[#allocation14 + $0x118] sm:$0xff]
        %v2427 = vrot.slane %v796, 7
        %v2428 = vrot.slane %v797, 7
        %v2429 = vrot.slane %v798, 7
        %v2430 = vrot.slane %v799, 7
        %v2435 = vsel %vm893, 0.0, %v2427
        %v2436 = vsel %vm893, 0.0, %v2428
        %v2437 = vsel %vm893, 0.0, %v2429
        %v2438 = vsel %vm893, 0.0, %v2430
        %v2439 = vsel %vm913, %v2435, 0.0
        %v2440 = vsel %vm913, %v2436, 0.0
        %v2441 = vsel %vm913, %v2437, 0.0
        %v2442 = vsel %vm913, %v2438, 0.0
        %2444 = vrot.lane.b32.xlu0 %v2439, 96
        %v2445 = vpop.permute.xlu0 %2444
        %v2447 = vrot.slane %v2439, 1
        %v2449 = vrot.slane %v2439, 2
        %2450 = vrot.lane.b32.xlu0 %v2449, 32
        %v2451 = vpop.permute.xlu0 %2450
        %2454 = vrot.lane.b32.xlu0 %v2440, 64
        %v2455 = vpop.permute.xlu0 %2454
        %v2457 = vrot.slane %v2440, 1
        %2458 = vrot.lane.b32.xlu0 %v2457, 96
        %v2459 = vpop.permute.xlu0 %2458
        %v2461 = vrot.slane %v2440, 2
        %v2463 = vsel %vm1085, %v1081, %v2445
        %v2464 = vsel %vm819, %v2447, %v2451
        %v2465 = vsel %vm1080, %v2464, %v2455
        %v2466 = vsel %vm1085, %v2465, %v2459
        %2467 = vrot.lane.b32.xlu0 %v2457, 32
        %v2468 = vpop.permute.xlu0 %2467
        %2470 = vrot.lane.b32.xlu0 %v2461, 64
        %v2471 = vpop.permute.xlu0 %2470
        %2474 = vrot.lane.b32.xlu0 %v2441, 96
        %v2475 = vpop.permute.xlu0 %2474
        %v2477 = vrot.slane %v2441, 1
        %v2479 = vrot.slane %v2441, 2
        %2480 = vrot.lane.b32.xlu0 %v2479, 32
        %v2481 = vpop.permute.xlu0 %2480
        %2484 = vrot.lane.b32.xlu0 %v2442, 64
        %v2485 = vpop.permute.xlu0 %2484
        %v2487 = vrot.slane %v2442, 1
        %2488 = vrot.lane.b32.xlu0 %v2487, 96
        %v2489 = vpop.permute.xlu0 %2488
        %v2491 = vrot.slane %v2442, 2
        %v2492 = vsel %vm819, %v2440, %v2468
        %v2493 = vsel %vm1080, %v2492, %v2471
        %v2494 = vsel %vm1085, %v2493, %v2475
        %v2495 = vsel %vm819, %v2477, %v2481
        %v2496 = vsel %vm1080, %v2495, %v2485
        %v2497 = vsel %vm1085, %v2496, %v2489
        %v2500 = vrot.slane %v2463, 1
        %v2501 = vrot.slane %v2466, 1
        %v2502 = vrot.slane %v2461, 1
        %v2508 = vrot.slane %v2494, 6
        %v2509 = vrot.slane %v2497, 6
        %v2510 = vrot.slane %v2491, 6
        %v2514 = vrot.slane %v2494, 7
        %v2515 = vrot.slane %v2497, 7
        %v2516 = vrot.slane %v2491, 7
        %v2520 = vsel %vm893, %v2463, %v2500
        %v2521 = vsel %vm893, %v2466, %v2501
        %v2522 = vsel %vm893, %v2461, %v2502
        %v2523 = vsel %vm898, %v2520, %v2508
        %v2524 = vsel %vm898, %v2521, %v2509
        %v2525 = vsel %vm898, %v2522, %v2510
        %v2526 = vsel %vm903, %v2523, %v2514
        %v2527 = vsel %vm903, %v2524, %v2515
        %v2528 = vsel %vm903, %v2525, %v2516
        %v2530 = vsel %vm819, %v2528, 0
        %2532 = vmatpush.msra.mxu0 %v2406
        %2533 = vmatpush.msra.mxu0 %v2405
        %2534 = vmatpush.msra.mxu0 %v2404
        %2535 = vmatpush.msra.mxu0 %v2403
        %2536 = vmatpush.msra.mxu0 %v2402
        %2537 = vmatpush.msra.mxu0 %v2401
        %2538 = vmatpush.msra.mxu0 %v2400
        %2539 = vmatpush.msra.mxu0 %v2399
        %2540 = vmatpush.msra.mxu0 %v2398
        %2541 = vmatpush.msra.mxu0 %v2397
        %2542 = vmatpush.msra.mxu0 %v2396
        %2543 = vmatpush.msra.mxu0 %v2395
        %2544 = vmatpush.msra.mxu0 %v2394
        %2545 = vmatpush.msra.mxu0 %v2393
        %2546 = vmatpush.msra.mxu0 %v2392
        %2547 = vmatpush.msra.mxu0 %v2391
        %2548 = vmatmul.f32.gmra.mxu0 %v2526
        %v2549 = vpop.f32.mrf.mxu0
        %v2550 = vadd.f32 0.0, %v2549
        %2551 = vdwg.mxu0
        %2552 = vmatpush.msra.mxu0 %v2422
        %2553 = vmatpush.msra.mxu0 %v2421
        %2554 = vmatpush.msra.mxu0 %v2420
        %2555 = vmatpush.msra.mxu0 %v2419
        %2556 = vmatpush.msra.mxu0 %v2418
        %2557 = vmatpush.msra.mxu0 %v2417
        %2558 = vmatpush.msra.mxu0 %v2416
        %2559 = vmatpush.msra.mxu0 %v2415
        %2560 = vmatpush.msra.mxu0 %v2414
        %2561 = vmatpush.msra.mxu0 %v2413
        %2562 = vmatpush.msra.mxu0 %v2412
        %2563 = vmatpush.msra.mxu0 %v2411
        %2564 = vmatpush.msra.mxu0 %v2410
        %2565 = vmatpush.msra.mxu0 %v2409
        %2566 = vmatpush.msra.mxu0 %v2408
        %2567 = vmatpush.msra.mxu0 %v2407
        %2568 = vmatmul.f32.gmra.mxu0 %v2527
        %v2569 = vpop.f32.mrf.mxu0
        %v2570 = vadd.f32 %v2550, %v2569
        %2571 = vdwg.mxu0
        %2572 = vmatpush.msra.mxu0 0.0
        %2573 = vmatpush.msra.mxu0 0.0
        %2574 = vmatpush.msra.mxu0 0.0
        %2575 = vmatpush.msra.mxu0 0.0
        %2576 = vmatpush.msra.mxu0 0.0
        %2577 = vmatpush.msra.mxu0 0.0
        %2578 = vmatpush.msra.mxu0 0.0
        %2579 = vmatpush.msra.mxu0 0.0
        %2580 = vmatpush.msra.mxu0 0.0
        %2581 = vmatpush.msra.mxu0 0.0
        %2582 = vmatpush.msra.mxu0 0.0
        %2583 = vmatpush.msra.mxu0 0.0
        %2584 = vmatpush.msra.mxu0 %v2426
        %2585 = vmatpush.msra.mxu0 %v2425
        %2586 = vmatpush.msra.mxu0 %v2424
        %2587 = vmatpush.msra.mxu0 %v2423
        %2588 = vmatmul.f32.gmra.mxu0 %v2530
        %v2589 = vpop.f32.mrf.mxu0
        %v2590 = vadd.f32 %v2570, %v2589
        %2591 = vdwg.mxu0
        %v2592 = vperm.slane %v800, 5
        %v2593 = vmul.f32 %v2590, %v2592
        %v2594 = vperm.slane %v801, 5
        %v2595 = vadd.f32 %v2593, %v2594
        %v2596 = vmax.f32 %v2595, 0.0
        %v2598 = vrot.slane %v2596, 2
        %v2599 = vld [vmem:[#allocation16] sm:$0xff]
        %v2600 = vld [vmem:[#allocation16 + $0x8] sm:$0xff]
        %v2601 = vld [vmem:[#allocation16 + $0x10] sm:$0xff]
        %v2602 = vld [vmem:[#allocation16 + $0x18] sm:$0xff]
        %v2603 = vld [vmem:[#allocation16 + $0x20] sm:$0xff]
        %v2604 = vld [vmem:[#allocation16 + $0x28] sm:$0xff]
        %v2605 = vld [vmem:[#allocation16 + $0x30] sm:$0xff]
        %v2606 = vld [vmem:[#allocation16 + $0x38] sm:$0xff]
        %v2607 = vld [vmem:[#allocation16 + $0x40] sm:$0xff]
        %v2608 = vld [vmem:[#allocation16 + $0x48] sm:$0xff]
        %v2609 = vld [vmem:[#allocation16 + $0x50] sm:$0xff]
        %v2610 = vld [vmem:[#allocation16 + $0x58] sm:$0xff]
        %v2611 = vld [vmem:[#allocation16 + $0x60] sm:$0xff]
        %v2612 = vld [vmem:[#allocation16 + $0x68] sm:$0xff]
        %v2613 = vld [vmem:[#allocation16 + $0x70] sm:$0xff]
        %v2614 = vld [vmem:[#allocation16 + $0x78] sm:$0xff]
        %v2615 = vld [vmem:[#allocation16 + $0x80] sm:$0xff]
        %v2616 = vld [vmem:[#allocation16 + $0x88] sm:$0xff]
        %v2617 = vld [vmem:[#allocation16 + $0x90] sm:$0xff]
        %v2618 = vld [vmem:[#allocation16 + $0x98] sm:$0xff]
        %v2619 = vld [vmem:[#allocation16 + $0xa0] sm:$0xff]
        %v2620 = vld [vmem:[#allocation16 + $0xa8] sm:$0xff]
        %v2621 = vld [vmem:[#allocation16 + $0xb0] sm:$0xff]
        %v2622 = vld [vmem:[#allocation16 + $0xb8] sm:$0xff]
        %v2623 = vld [vmem:[#allocation16 + $0xc0] sm:$0xff]
        %v2624 = vld [vmem:[#allocation16 + $0xc8] sm:$0xff]
        %v2625 = vld [vmem:[#allocation16 + $0xd0] sm:$0xff]
        %v2626 = vld [vmem:[#allocation16 + $0xd8] sm:$0xff]
        %v2627 = vld [vmem:[#allocation16 + $0xe0] sm:$0xff]
        %v2628 = vld [vmem:[#allocation16 + $0xe8] sm:$0xff]
        %v2629 = vld [vmem:[#allocation16 + $0xf0] sm:$0xff]
        %v2630 = vld [vmem:[#allocation16 + $0xf8] sm:$0xff]
        %v2631 = vld [vmem:[#allocation16 + $0x100] sm:$0xff]
        %v2632 = vld [vmem:[#allocation16 + $0x108] sm:$0xff]
        %v2633 = vld [vmem:[#allocation16 + $0x110] sm:$0xff]
        %v2634 = vld [vmem:[#allocation16 + $0x118] sm:$0xff]
        %v2635 = vrot.slane %v2596, 7
        %v2636 = vrot.slane %v2598, 7
        %v2639 = vsel %vm893, 0.0, %v2635
        %v2640 = vsel %vm893, 0.0, %v2636
        %v2641 = vsel %vm903, %v975, 0.0
        %v2642 = vsel %vm903, %v2639, 0.0
        %v2643 = vsel %vm903, %v2640, 0.0
        %v2645 = vrot.slane %v2641, 1
        %2646 = vrot.lane.b32.xlu0 %v2645, 32
        %v2647 = vpop.permute.xlu0 %2646
        %v2649 = vrot.slane %v2641, 2
        %2650 = vrot.lane.b32.xlu0 %v2649, 64
        %v2651 = vpop.permute.xlu0 %2650
        %2654 = vrot.lane.b32.xlu0 %v2642, 96
        %v2655 = vpop.permute.xlu0 %2654
        %v2657 = vrot.slane %v2642, 1
        %v2659 = vrot.slane %v2642, 2
        %2660 = vrot.lane.b32.xlu0 %v2659, 32
        %v2661 = vpop.permute.xlu0 %2660
        %2664 = vrot.lane.b32.xlu0 %v2643, 64
        %v2665 = vpop.permute.xlu0 %2664
        %v2667 = vrot.slane %v2643, 1
        %2668 = vrot.lane.b32.xlu0 %v2667, 96
        %v2669 = vpop.permute.xlu0 %2668
        %v2671 = vrot.slane %v2643, 2
        %v2672 = vsel %vm819, %v2641, %v2647
        %v2673 = vsel %vm1080, %v2672, %v2651
        %v2674 = vsel %vm1085, %v2673, %v2655
        %v2675 = vsel %vm819, %v2657, %v2661
        %v2676 = vsel %vm1080, %v2675, %v2665
        %v2677 = vsel %vm1085, %v2676, %v2669
        %v2678 = vsel %vm819, %v2671, 0
        %2680 = vmatpush.msra.mxu0 %v2614
        %2681 = vmatpush.msra.mxu0 %v2613
        %2682 = vmatpush.msra.mxu0 %v2612
        %2683 = vmatpush.msra.mxu0 %v2611
        %2684 = vmatpush.msra.mxu0 %v2610
        %2685 = vmatpush.msra.mxu0 %v2609
        %2686 = vmatpush.msra.mxu0 %v2608
        %2687 = vmatpush.msra.mxu0 %v2607
        %2688 = vmatpush.msra.mxu0 %v2606
        %2689 = vmatpush.msra.mxu0 %v2605
        %2690 = vmatpush.msra.mxu0 %v2604
        %2691 = vmatpush.msra.mxu0 %v2603
        %2692 = vmatpush.msra.mxu0 %v2602
        %2693 = vmatpush.msra.mxu0 %v2601
        %2694 = vmatpush.msra.mxu0 %v2600
        %2695 = vmatpush.msra.mxu0 %v2599
        %2696 = vmatmul.f32.gmra.mxu0 %v2674
        %v2697 = vpop.f32.mrf.mxu0
        %v2698 = vadd.f32 0.0, %v2697
        %2699 = vdwg.mxu0
        %2700 = vmatpush.msra.mxu0 %v2630
        %2701 = vmatpush.msra.mxu0 %v2629
        %2702 = vmatpush.msra.mxu0 %v2628
        %2703 = vmatpush.msra.mxu0 %v2627
        %2704 = vmatpush.msra.mxu0 %v2626
        %2705 = vmatpush.msra.mxu0 %v2625
        %2706 = vmatpush.msra.mxu0 %v2624
        %2707 = vmatpush.msra.mxu0 %v2623
        %2708 = vmatpush.msra.mxu0 %v2622
        %2709 = vmatpush.msra.mxu0 %v2621
        %2710 = vmatpush.msra.mxu0 %v2620
        %2711 = vmatpush.msra.mxu0 %v2619
        %2712 = vmatpush.msra.mxu0 %v2618
        %2713 = vmatpush.msra.mxu0 %v2617
        %2714 = vmatpush.msra.mxu0 %v2616
        %2715 = vmatpush.msra.mxu0 %v2615
        %2716 = vmatmul.f32.gmra.mxu0 %v2677
        %v2717 = vpop.f32.mrf.mxu0
        %v2718 = vadd.f32 %v2698, %v2717
        %2719 = vdwg.mxu0
        %2720 = vmatpush.msra.mxu0 0.0
        %2721 = vmatpush.msra.mxu0 0.0
        %2722 = vmatpush.msra.mxu0 0.0
        %2723 = vmatpush.msra.mxu0 0.0
        %2724 = vmatpush.msra.mxu0 0.0
        %2725 = vmatpush.msra.mxu0 0.0
        %2726 = vmatpush.msra.mxu0 0.0
        %2727 = vmatpush.msra.mxu0 0.0
        %2728 = vmatpush.msra.mxu0 0.0
        %2729 = vmatpush.msra.mxu0 0.0
        %2730 = vmatpush.msra.mxu0 0.0
        %2731 = vmatpush.msra.mxu0 0.0
        %2732 = vmatpush.msra.mxu0 %v2634
        %2733 = vmatpush.msra.mxu0 %v2633
        %2734 = vmatpush.msra.mxu0 %v2632
        %2735 = vmatpush.msra.mxu0 %v2631
        %2736 = vmatmul.f32.gmra.mxu0 %v2678
        %v2737 = vpop.f32.mrf.mxu0
        %v2738 = vadd.f32 %v2718, %v2737
        %2739 = vdwg.mxu0
        %v2741 = vrot.slane %v800, 6
        %v2743 = vmul.f32 %v2738, %v2741
        %v2745 = vrot.slane %v801, 6
        %v2747 = vadd.f32 %v2743, %v2745
        %v2748 = vmax.f32 %v2747, 0.0
        %2749 = vst.msk [vmem:[%s728] sm:$0xff] %vm819, %v2359
        %2750 = vst.msk [vmem:[%s728 + $0x8] sm:$0xff] %vm819, %v2360
        %2751 = vst.msk [vmem:[%s728 + $0x10] sm:$0xff] %vm819, %v2361
        %2752 = vst.msk [vmem:[%s728 + $0x18] sm:$0xff] %vm819, %v2362
        %2753 = vst.msk [vmem:[%s728 + $0x20] sm:$0xff] %vm819, %v2363
        %2754 = vst.msk [vmem:[%s728 + $0x28] sm:$0xff] %vm819, %v2364
        %2755 = vst.msk [vmem:[%s728 + $0x30] sm:$0xff] %vm819, %v2365
        %2756 = vst.msk [vmem:[%s728 + $0x38] sm:$0xff] %vm819, %v2366
        %2757 = vst.msk [vmem:[%s728 + $0x40] sm:$0xff] %vm819, %v2367
        %2758 = vst.msk [vmem:[%s728 + $0x48] sm:$0xff] %vm819, %v2368
        %2759 = vst.msk [vmem:[%s728 + $0x50] sm:$0xff] %vm819, %v2369
        %2760 = vst.msk [vmem:[%s728 + $0x58] sm:$0xff] %vm819, %v2370
        %2761 = vst.msk [vmem:[%s728 + $0x60] sm:$0xff] %vm819, %v2371
        %2762 = vst.msk [vmem:[%s728 + $0x68] sm:$0xff] %vm819, %v2372
        %2763 = vst.msk [vmem:[%s728 + $0x70] sm:$0xff] %vm819, %v2373
        %2764 = vst.msk [vmem:[%s728 + $0x78] sm:$0xff] %vm819, %v2374
        %2765 = vst.msk [vmem:[%s728 + $0x80] sm:$0xff] %vm819, %v2375
        %2766 = vst.msk [vmem:[%s728 + $0x88] sm:$0xff] %vm819, %v2376
        %2767 = vst.msk [vmem:[%s728 + $0x90] sm:$0xff] %vm819, %v2377
        %2768 = vst.msk [vmem:[%s728 + $0x98] sm:$0xff] %vm819, %v2378
        %2769 = vst.msk [vmem:[%s728 + $0xa0] sm:$0xff] %vm819, %v2379
        %2770 = vst.msk [vmem:[%s728 + $0xa8] sm:$0xff] %vm819, %v2380
        %2771 = vst.msk [vmem:[%s728 + $0xb0] sm:$0xff] %vm819, %v2381
        %2772 = vst.msk [vmem:[%s728 + $0xb8] sm:$0xff] %vm819, %v2382
        %2773 = vst.msk [vmem:[%s728 + $0xc0] sm:$0xff] %vm819, %v2383
        %2774 = vst.msk [vmem:[%s728 + $0xc8] sm:$0xff] %vm819, %v2384
        %2775 = vst.msk [vmem:[%s728 + $0xd0] sm:$0xff] %vm819, %v2385
        %2776 = vst.msk [vmem:[%s728 + $0xd8] sm:$0xff] %vm819, %v2386
        %2777 = vst.msk [vmem:[%s728 + $0xe0] sm:$0xff] %vm819, %v2387
        %2778 = vst.msk [vmem:[%s728 + $0xe8] sm:$0xff] %vm819, %v2388
        %2779 = vst.msk [vmem:[%s728 + $0xf0] sm:$0xff] %vm819, %v2389
        %2780 = vst.msk [vmem:[%s728 + $0xf8] sm:$0xff] %vm819, %v2390
        %2781 = vst.msk [vmem:[%s735] sm:$0xff] %vm819, %v2041
        %2782 = vst.msk [vmem:[%s735 + $0x8] sm:$0xff] %vm819, %v2042
        %2783 = vst.msk [vmem:[%s735 + $0x10] sm:$0xff] %vm819, %v2043
        %2784 = vst.msk [vmem:[%s735 + $0x18] sm:$0xff] %vm819, %v2044
        %2785 = vst.msk [vmem:[%s735 + $0x20] sm:$0xff] %vm819, %v2045
        %2786 = vst.msk [vmem:[%s735 + $0x28] sm:$0xff] %vm819, %v2046
        %2787 = vst.msk [vmem:[%s735 + $0x30] sm:$0xff] %vm819, %v2047
        %2788 = vst.msk [vmem:[%s735 + $0x38] sm:$0xff] %vm819, %v2048
        %v2791 = vrot.slane %v1222, 4
        %v2792 = vrot.slane %v1223, 4
        %vm2795 = vcmask 257024
        %2796 = vst.msk [vmem:[%s742] sm:$0xf] %vm2795, %v1222
        %2797 = vst.msk [vmem:[%s742 + $0x4] sm:$0xf] %vm2795, %v2791
        %2798 = vst.msk [vmem:[%s742 + $0x8] sm:$0xf] %vm2795, %v1223
        %2799 = vst.msk [vmem:[%s742 + $0xc] sm:$0xf] %vm2795, %v2792
        %vm2801 = vcmask 254976
        %2802 = vst.msk [vmem:[%s749] sm:$0x3] %vm2801, %v2596
        %2803 = vst.msk [vmem:[%s749 + $0x2] sm:$0x3] %vm2801, %v2598
        %vm2804 = vcmask 253952
        %2805 = vst.msk [vmem:[%s755] sm:$0x1] %vm2804, %v2748
        %s2806 = sand.u32 %s321, 1
        %s2807 = scalar_lea.sflag [#allocation4], %s2806
        %s2808 = sand.u32 %s321, 1
        %s2809 = smul.addr %s2808, 256
        %s2810 = scalar_lea.vmem [#allocation17], %s2809
        %s2811 = sand.u32 %s46, 1
        %s2812 = scalar_lea.sflag [#allocation19], %s2811
        %s2813 = sand.u32 %s347, 1
        %s2814 = smul.addr %s2813, 64
        %s2815 = scalar_lea.vmem [#allocation18], %s2814
        %s2816 = sand.u32 %s46, 1
        %s2817 = scalar_lea.sflag [#allocation19], %s2816
        %s2818 = sand.u32 %s373, 1
        %s2819 = smul.addr %s2818, 16
        %s2820 = scalar_lea.vmem [#allocation20], %s2819
        %s2821 = sand.u32 %s46, 1
        %s2822 = scalar_lea.sflag [#allocation22], %s2821
        %s2823 = sand.u32 %s399, 1
        %s2824 = smul.addr %s2823, 4
        %s2825 = scalar_lea.vmem [#allocation21], %s2824
        %s2826 = sand.u32 %s46, 1
        %s2827 = scalar_lea.sflag [#allocation22], %s2826
        %s2828 = sand.u32 %s425, 1
        %s2829 = scalar_lea.vmem [#allocation23], %s2828
        // Predicated region
        $region105: #{feature_pyramid_forward.1} parent=67 // pred_check
          %p2830 = pneg %p331
        $region106: #{feature_pyramid_forward.1} parent=67 // pred_check_branch
          %2832 = sbr.rel (%p2830) target = $region108
        $region107: #{feature_pyramid_forward.1} parent=67 // pred_region
          %2834 = vsyncadd %s2807, 0
          %s2835 = smul.addr %s46, 32
          %s2836 = smul.addr %s2835, 8
          %s2837 = scalar_lea.hbm %s12, %s2836
          %s2838 = sshll.u32 %s2810, 4
          %s2839 = int_to_ptr.vmem [resolvable:$true] %s2838
          %s2840 = sshll.u32 %s2837, 4
          %s2841 = int_to_ptr.hbm [resolvable:$true] %s2840
          %2846 = dma.vmem_to_hbm [thread:$0]  %s2839, 4096, %s2841, %s2807, 128, 128, 8
        $region108: #{feature_pyramid_forward.1} parent=67 // pred_fallthru
          _
        // Predicated region
        $region109: #{feature_pyramid_forward.1} parent=67 // pred_check
          %p2847 = pneg %p357
        $region110: #{feature_pyramid_forward.1} parent=67 // pred_check_branch
          %2849 = sbr.rel (%p2847) target = $region112
        $region111: #{feature_pyramid_forward.1} parent=67 // pred_region
          %2851 = vsyncadd %s2812, 0
          %s2852 = smul.addr %s46, 8
          %s2853 = smul.addr %s2852, 8
          %s2854 = scalar_lea.hbm %s13, %s2853
          %s2855 = sshll.u32 %s2815, 4
          %s2856 = int_to_ptr.vmem [resolvable:$true] %s2855
          %s2857 = sshll.u32 %s2854, 4
          %s2858 = int_to_ptr.hbm [resolvable:$true] %s2857
          %2863 = dma.vmem_to_hbm [thread:$0]  %s2856, 1024, %s2858, %s2812, 128, 128, 8
        $region112: #{feature_pyramid_forward.1} parent=67 // pred_fallthru
          _
        // Predicated region
        $region113: #{feature_pyramid_forward.1} parent=67 // pred_check
          %p2864 = pneg %p383
        $region114: #{feature_pyramid_forward.1} parent=67 // pred_check_branch
          %2866 = sbr.rel (%p2864) target = $region116
        $region115: #{feature_pyramid_forward.1} parent=67 // pred_region
          %2868 = vsyncadd %s2817, 0
          %s2869 = smul.addr %s46, 4
          %s2870 = smul.addr %s2869, 4
          %s2871 = scalar_lea.hbm %s14, %s2870
          %s2872 = sshll.u32 %s2820, 4
          %s2873 = int_to_ptr.vmem [resolvable:$true] %s2872
          %s2874 = sshll.u32 %s2871, 4
          %s2875 = int_to_ptr.hbm [resolvable:$true] %s2874
          %2880 = dma.vmem_to_hbm [thread:$0]  %s2873, 256, %s2875, %s2817, 64, 64, 4
        $region116: #{feature_pyramid_forward.1} parent=67 // pred_fallthru
          _
        // Predicated region
        $region117: #{feature_pyramid_forward.1} parent=67 // pred_check
          %p2881 = pneg %p409
        $region118: #{feature_pyramid_forward.1} parent=67 // pred_check_branch
          %2883 = sbr.rel (%p2881) target = $region120
        $region119: #{feature_pyramid_forward.1} parent=67 // pred_region
          %2885 = vsyncadd %s2822, 0
          %s2886 = smul.addr %s46, 2
          %s2887 = smul.addr %s2886, 2
          %s2888 = scalar_lea.hbm %s15, %s2887
          %s2889 = sshll.u32 %s2825, 4
          %s2890 = int_to_ptr.vmem [resolvable:$true] %s2889
          %s2891 = sshll.u32 %s2888, 4
          %s2892 = int_to_ptr.hbm [resolvable:$true] %s2891
          %2897 = dma.vmem_to_hbm [thread:$0]  %s2890, 64, %s2892, %s2822, 32, 32, 2
        $region120: #{feature_pyramid_forward.1} parent=67 // pred_fallthru
          _
        // Predicated region
        $region121: #{feature_pyramid_forward.1} parent=67 // pred_check
          %p2898 = pneg %p435
        $region122: #{feature_pyramid_forward.1} parent=67 // pred_check_branch
          %2900 = sbr.rel (%p2898) target = $region124
        $region123: #{feature_pyramid_forward.1} parent=67 // pred_region
          %2902 = vsyncadd %s2827, 0
          %s2903 = scalar_lea.hbm %s16, %s46
          %s2905 = sshll.u32 %s2829, 4
          %s2906 = int_to_ptr.vmem [resolvable:$true] %s2905
          %s2907 = sshll.u32 %s2903, 4
          %s2908 = int_to_ptr.hbm [resolvable:$true] %s2907
          %2910 = dma.vmem_to_hbm [thread:$0]  %s2906, 16, %s2908, %s2827
        $region124: #{feature_pyramid_forward.1} parent=67 // pred_fallthru
          _
      $region68: #{feature_pyramid_forward.1} parent=5 // pred_fallthru
        _
      %p2911 = scmp.le.s32.totalorder 2, %s41
      // Predicated region
      $region125: #{feature_pyramid_forward.1} parent=5 // pred_check
        %p2912 = pneg %p2911
      $region126: #{feature_pyramid_forward.1} parent=5 // pred_check_branch
        %2914 = sbr.rel (%p2912) target = $region128
      $region127: #{feature_pyramid_forward.1} parent=5 // pred_region
        %s2915 = ssub.s32 %s41, 2
        // Predicated region
        $region129: #{feature_pyramid_forward.1} parent=127 // pred_check
          %p2916 = pneg %p337
        $region130: #{feature_pyramid_forward.1} parent=127 // pred_check_branch
          %2918 = sbr.rel (%p2916) target = $region132
        $region131: #{feature_pyramid_forward.1} parent=127 // pred_region
          %s2919 = sand.u32 %s322, 1
          %s2920 = scalar_lea.sflag [#allocation4], %s2919
          %s2921 = sand.u32 %s322, 1
          %s2922 = smul.addr %s2921, 256
          %s2923 = scalar_lea.vmem [#allocation17], %s2922
          %2925 = dma.done %s2920, 4096
        $region132: #{feature_pyramid_forward.1} parent=127 // pred_fallthru
          _
        // Predicated region
        $region133: #{feature_pyramid_forward.1} parent=127 // pred_check
          %p2926 = pneg %p363
        $region134: #{feature_pyramid_forward.1} parent=127 // pred_check_branch
          %2928 = sbr.rel (%p2926) target = $region136
        $region135: #{feature_pyramid_forward.1} parent=127 // pred_region
          %s2929 = sand.u32 %s47, 1
          %s2930 = scalar_lea.sflag [#allocation19], %s2929
          %s2931 = sand.u32 %s348, 1
          %s2932 = smul.addr %s2931, 64
          %s2933 = scalar_lea.vmem [#allocation18], %s2932
          %2935 = dma.done %s2930, 1024
        $region136: #{feature_pyramid_forward.1} parent=127 // pred_fallthru
          _
        // Predicated region
        $region137: #{feature_pyramid_forward.1} parent=127 // pred_check
          %p2936 = pneg %p389
        $region138: #{feature_pyramid_forward.1} parent=127 // pred_check_branch
          %2938 = sbr.rel (%p2936) target = $region140
        $region139: #{feature_pyramid_forward.1} parent=127 // pred_region
          %s2939 = sand.u32 %s47, 1
          %s2940 = scalar_lea.sflag [#allocation19], %s2939
          %s2941 = sand.u32 %s374, 1
          %s2942 = smul.addr %s2941, 16
          %s2943 = scalar_lea.vmem [#allocation20], %s2942
          %2945 = dma.done %s2940, 256
        $region140: #{feature_pyramid_forward.1} parent=127 // pred_fallthru
          _
        // Predicated region
        $region141: #{feature_pyramid_forward.1} parent=127 // pred_check
          %p2946 = pneg %p415
        $region142: #{feature_pyramid_forward.1} parent=127 // pred_check_branch
          %2948 = sbr.rel (%p2946) target = $region144
        $region143: #{feature_pyramid_forward.1} parent=127 // pred_region
          %s2949 = sand.u32 %s47, 1
          %s2950 = scalar_lea.sflag [#allocation22], %s2949
          %s2951 = sand.u32 %s400, 1
          %s2952 = smul.addr %s2951, 4
          %s2953 = scalar_lea.vmem [#allocation21], %s2952
          %2955 = dma.done %s2950, 64
        $region144: #{feature_pyramid_forward.1} parent=127 // pred_fallthru
          _
        // Predicated region
        $region145: #{feature_pyramid_forward.1} parent=127 // pred_check
          %p2956 = pneg %p441
        $region146: #{feature_pyramid_forward.1} parent=127 // pred_check_branch
          %2958 = sbr.rel (%p2956) target = $region148
        $region147: #{feature_pyramid_forward.1} parent=127 // pred_region
          %s2959 = sand.u32 %s47, 1
          %s2960 = scalar_lea.sflag [#allocation22], %s2959
          %s2961 = sand.u32 %s426, 1
          %s2962 = scalar_lea.vmem [#allocation23], %s2961
          %2964 = dma.done %s2960, 16
        $region148: #{feature_pyramid_forward.1} parent=127 // pred_fallthru
          _
      $region128: #{feature_pyramid_forward.1} parent=5 // pred_fallthru
        _
    $region6: #{feature_pyramid_forward.1} parent=1 // loop_footer
      %s45 = sadd.s32 1, %s41
    $region7: #{feature_pyramid_forward.1} parent=1 // loop_footer_branch
      %40 = sbr.rel target = $region3
    $region8: #{feature_pyramid_forward.1} parent=1 // loop_exit
      _
    %2965 = vsyncpa [#allocation3], 1
    %s2966 = scalar_lea.sflag [#allocation3], 1
    %2967 = vsyncpa %s2966, 1
    %2968 = vsyncpa [#allocation6], 1
    %s2969 = scalar_lea.sflag [#allocation6], 1
    %2970 = vsyncpa %s2969, 1
    %2971 = vsyncpa [#allocation9], 1
    %2972 = vsyncpa [#allocation12], 1
    %2973 = vsyncpa [#allocation15], 1
    %2974 = vsyncpa [#allocation4], 1
    %s2975 = scalar_lea.sflag [#allocation4], 1
    %2976 = vsyncpa %s2975, 1
    %2977 = vsyncpa [#allocation19], 1
    %s2978 = scalar_lea.sflag [#allocation19], 1
    %2979 = vsyncpa %s2978, 1
    %2980 = vsyncpa [#allocation22], 1
    %s2981 = scalar_lea.sflag [#allocation22], 1
    %2982 = vsyncpa %s2981, 1

</llo_original>
